<compile_context>
chip_gen: v7x
topology: tpu7x:2x2x1
jax: 0.10.0
libtpu: 0.0.40
codegen_flags: <defaults>
</compile_context>

<pallas_src>
import functools

import jax
import jax.numpy as jnp
from jax.experimental import pallas as pl
from jax.experimental.pallas import tpu as pltpu


B_TILE = 8        # images per grid step (>=8 keeps the logits row block sublane aligned)
C_IN_PAD = 16     # pad channels to the bf16 sublane tile so tap-slab writes are tile aligned


# ------------------------------ fused kernel --------------------------------

def _fused_kernel(p_ref, wf_ref, cb_ref, pool_ref, fcw_ref, fcb_ref,
                  logits_ref, taps_ref, *, Wp, N_out):
    """One grid step = one batch tile.

    p_ref   : [C_IN_PAD, L_tile]  bf16   padded flat input lattice of the tile
    wf_ref  : [C_mid, 9*C_IN_PAD] bf16   conv weights, columns ordered (tap, c_in)
    cb_ref  : [C_mid, 1]          f32    conv bias
    pool_ref: [N_out, B_TILE]     f32    1/(H*W) at real pixels of image j, else 0
    fcw_ref : [C_mid, NC_pad]     f32    FC weights (class axis lane-dense)
    fcb_ref : [1, NC_pad]         f32    FC bias
    logits_ref: [B_TILE, NC_pad]  f32    this tile's logits rows (unmasked store)
    taps_ref: [9*C_IN_PAD, N_out] bf16   VMEM scratch tap slab
    """
    # Build the tap slab: 9 static lane-slices of the padded flat lattice, each
    # written as a tile-aligned sublane block (no masks, no iota -- the zero
    # rows/columns baked into the layout handle all conv boundaries).
    for kh in range(3):
        for kw in range(3):
            t = kh * 3 + kw
            start = kh * Wp + kw                               # static lane offset
            taps_ref[t * C_IN_PAD:(t + 1) * C_IN_PAD, :] = \
                p_ref[:, start:start + N_out]

    # ONE fused MXU matmul over K = 9*C_IN_PAD (bf16 inputs, f32 accumulation),
    # then bias + ReLU on the VPU.
    conv = jnp.dot(wf_ref[...], taps_ref[...],
                   preferred_element_type=jnp.float32)          # [C_mid, N_out]
    feats = jnp.maximum(conv + cb_ref[...], 0.0)                # [C_mid, N_out]

    # Global average pool over each image's real pixels as a second MXU matmul
    # against the precomputed pooling matrix (it also zeroes the junk lattice
    # positions, so no separate column mask is needed).
    pooled_cb = jnp.dot(feats, pool_ref[...],
                        preferred_element_type=jnp.float32)     # [C_mid, B_TILE]

    # FC head: logits[b, n] = sum_c pooled[c, b] * fcw[c, n] + fcb[n].
    # pooled is an [8, 8] tile, so the dim-0 contraction is a single-vreg op;
    # transposing it first would cost the same relayout it avoids.  The two big
    # matmuls above are in canonical [M,K]x[K,N] orientation.
    logits_ref[...] = jax.lax.dot_general(
        pooled_cb, fcw_ref[...],
        dimension_numbers=(((0,), (0,)), ((), ())),
        preferred_element_type=jnp.float32) + fcb_ref[...]      # [B_TILE, NC_pad]


# ------------------------------ host wrapper --------------------------------

@jax.jit
def fused_model_tta_forward(x_nchw, params):
    """Returns (logits [B, NC], tent_loss scalar)."""
    B, C_in, H, W = x_nchw.shape
    conv_w = params["conv_w"]                      # [C_mid, C_in, 3, 3] (OIHW)
    C_mid = conv_w.shape[0]
    fc_w = params["fc_w"]                          # [NC, C_mid]
    NC = fc_w.shape[0]

    Hp, Wp = H + 2, W + 2                          # per-image zero-padded height/width
    num_tiles = -(-B // B_TILE)
    B_total = num_tiles * B_TILE
    N_out = B_TILE * Hp * Wp                       # conv output lattice per tile
    L_tile = N_out + 2 * (Wp + 1)                  # + halo so every tap slice start >= 0
    NC_pad = ((NC + 127) // 128) * 128             # lane-dense class axis

    # --- input lattice: each image zero-padded to (Hp, Wp), images stacked flat
    # so a 3x3 tap never crosses into a neighbouring image.  (Small host-side
    # pad/cast pass; x here is KB-scale.  TODO(synk): for large activations this
    # layout pass could itself be fused into the kernel to halve HBM traffic.)
    x_p = jnp.pad(x_nchw, ((0, B_total - B), (0, C_IN_PAD - C_in), (1, 1), (1, 1)))
    x_p = x_p.reshape(num_tiles, B_TILE, C_IN_PAD, Hp * Wp)
    x_p = x_p.transpose(0, 2, 1, 3).reshape(num_tiles, C_IN_PAD, N_out)
    x_p = jnp.pad(x_p, ((0, 0), (0, 0), (Wp + 1, Wp + 1)))       # halo
    p_all = x_p.reshape(num_tiles * C_IN_PAD, L_tile).astype(jnp.bfloat16)

    # --- conv weights flattened to [C_mid, 9*C_IN_PAD], column order (tap, c_in).
    w_taps = jnp.zeros((C_mid, 9, C_IN_PAD), jnp.float32)
    w_taps = w_taps.at[:, :, :C_in].set(
        conv_w.transpose(0, 2, 3, 1).reshape(C_mid, 9, C_in).astype(jnp.float32))
    w_flat = w_taps.reshape(C_mid, 9 * C_IN_PAD).astype(jnp.bfloat16)
    conv_b = params["conv_b"].reshape(C_mid, 1).astype(jnp.float32)

    # --- pooling matrix: pool[o, j] = 1/(H*W) iff lattice position o is a real
    # pixel of tile-image j (same for every tile).
    o = jnp.arange(N_out)
    img = o // (Hp * Wp)
    rem = o - img * (Hp * Wp)
    r = rem // Wp
    q = rem - r * Wp
    valid = (r >= 1) & (r <= H) & (q >= 1) & (q <= W)
    pool_mat = jnp.where(
        valid[:, None] & (img[:, None] == jnp.arange(B_TILE)[None, :]),
        1.0 / (H * W), 0.0).astype(jnp.float32)                  # [N_out, B_TILE]

    # --- FC weights/bias, class axis padded to 128 lanes (f32 epilogue).
    fcw_pad = jnp.zeros((C_mid, NC_pad), jnp.float32).at[:, :NC].set(
        fc_w.T.astype(jnp.float32))
    fcb_pad = jnp.zeros((1, NC_pad), jnp.float32).at[:, :NC].set(
        params["fc_b"].reshape(1, NC).astype(jnp.float32))

    kernel = functools.partial(_fused_kernel, Wp=Wp, N_out=N_out)

    logits_pad = pl.pallas_call(
        kernel,
        out_shape=jax.ShapeDtypeStruct((num_tiles * B_TILE, NC_pad), jnp.float32),
        grid_spec=pltpu.PrefetchScalarGridSpec(
            num_scalar_prefetch=0,
            grid=(num_tiles,),
            in_specs=[
                pl.BlockSpec((C_IN_PAD, L_tile), lambda i: (i, 0)),
                pl.BlockSpec((C_mid, 9 * C_IN_PAD), lambda i: (0, 0)),
                pl.BlockSpec((C_mid, 1), lambda i: (0, 0)),
                pl.BlockSpec((N_out, B_TILE), lambda i: (0, 0)),
                pl.BlockSpec((C_mid, NC_pad), lambda i: (0, 0)),
                pl.BlockSpec((1, NC_pad), lambda i: (0, 0)),
            ],
            out_specs=pl.BlockSpec((B_TILE, NC_pad), lambda i: (i, 0)),
            scratch_shapes=[pltpu.VMEM((9 * C_IN_PAD, N_out), jnp.bfloat16)],
        ),
        compiler_params=pltpu.CompilerParams(
            # Each batch tile is fully independent (own logits row block, no
            # cross-step accumulator) -> megacore-parallel on v7x.
            dimension_semantics=("parallel",),
            # Actual per-step footprint is ~4 MiB (pool matrix + tap slab + x
            # tile, double-buffered); 32 MiB leaves headroom on v5e/v6e/v7x.
            vmem_limit_bytes=32 * 1024 * 1024,
        ),
    )(p_all, w_flat, conv_b, pool_mat, fcw_pad, fcb_pad)

    logits = logits_pad[:B, :NC]

    # Tent loss (pl_type='tent', detect_oods='no' -> pattern of ones dropped),
    # computed from `outputs` just like forward_and_adapt does in the reference.
    sm = jax.nn.softmax(logits, axis=1)
    log_sm = jax.nn.log_softmax(logits, axis=1)
    loss = jnp.mean(-jnp.sum(sm * log_sm, axis=1))
    return logits, loss


# ----------------------------- params / module ------------------------------

def init_params(c_in=4, c_mid=8, num_classes=10, k=3):
    key = jax.random.PRNGKey(42)
    k1, k2, k3, k4 = jax.random.split(key, 4)
    return {
        "conv_w": 0.1 * jax.random.normal(k1, (c_mid, c_in, k, k), jnp.float32),
        "conv_b": 0.05 * jax.random.normal(k3, (c_mid,), jnp.float32),
        "fc_w": 0.1 * jax.random.normal(k2, (num_classes, c_mid), jnp.float32),
        "fc_b": 0.05 * jax.random.normal(k4, (num_classes,), jnp.float32),
    }


class PLPallas:
    """Mirrors PL(model, optimizer, ...) with the default config:
    steps=1, episodic=False, threshold=0.7, pl_type='tent', detect_oods='no'."""

    def __init__(self, params, steps=1, episodic=False, threshold=0.7,
                 pl_type="tent", detect_oods="no", ood_threshold=0.5):
        assert steps > 0, "pl requires >= 1 step(s) to forward and update"
        self.params = params
        self._initial_params = dict(params)        # for episodic reset
        self.steps = steps
        self.episodic = episodic
        self.threshold = threshold
        self.pl_type = pl_type
        self.detect_oods = detect_oods
        self.ood_threshold = ood_threshold
        self.last_loss = None

    def forward(self, x, adapt=True):
        if self.episodic:
            self.reset()
        outputs = None
        for _ in range(self.steps):
            outputs, loss = fused_model_tta_forward(x, self.params)
            if adapt:
                self.last_loss = loss
                # TODO(synk): loss.backward() + optimizer.step() (parameter update)
                # require autodiff/optimizer state and have no clean in-kernel
                # Pallas equivalent; the loss is computed and returned but not applied.
        return outputs

    def reset(self):
        self.params = dict(self._initial_params)


# ----------------------------- pure-JAX reference ----------------------------

def _reference_forward(x, params):
    conv = jax.lax.conv_general_dilated(
        x, params["conv_w"], window_strides=(1, 1), padding="SAME",
        dimension_numbers=("NCHW", "OIHW", "NCHW"))
    conv = jnp.maximum(conv + params["conv_b"].reshape(1, -1, 1, 1), 0.0)
    pooled = jnp.mean(conv, axis=(2, 3))
    logits = pooled @ params["fc_w"].T + params["fc_b"]
    sm = jax.nn.softmax(logits, axis=1)
    log_sm = jax.nn.log_softmax(logits, axis=1)
    loss = jnp.mean(-jnp.sum(sm * log_sm, axis=1))
    return logits, loss


# ---------------------------------- main -------------------------------------

if __name__ == "__main__":
    B, C_IN, H, W = 2, 4, 16, 16
    C_MID, NUM_CLASSES = 8, 10

    params = init_params(c_in=C_IN, c_mid=C_MID, num_classes=NUM_CLASSES, k=3)
    pl_mod = PLPallas(params)

    x = jax.random.normal(jax.random.PRNGKey(0), (B, C_IN, H, W), jnp.float32)
    out = pl_mod.forward(x, adapt=True)
    jax.block_until_ready(out)

    assert out.shape == (B, NUM_CLASSES) and out.dtype == jnp.float32

    # Sanity check against a pure-JAX f32 reference (kernel uses bf16 conv
    # inputs with f32 accumulation -> loose tolerance).
    ref_logits, ref_loss = _reference_forward(x, params)
    assert bool(jnp.allclose(out, ref_logits, atol=5e-2, rtol=5e-2))
    assert bool(jnp.allclose(pl_mod.last_loss, ref_loss, atol=5e-2, rtol=5e-2))

    print("KERNEL_OK")
</pallas_src>

<mosaic_0001>
module attributes {stable_mosaic.version = 11 : i64} {
  func.func @_fused_kernel(%arg0: i32, %arg1: memref<16x2630xbf16, #tpu.memory_space<vmem>>, %arg2: memref<8x144xbf16, #tpu.memory_space<vmem>>, %arg3: memref<8x1xf32, #tpu.memory_space<vmem>>, %arg4: memref<2592x8xf32, #tpu.memory_space<vmem>>, %arg5: memref<8x128xf32, #tpu.memory_space<vmem>>, %arg6: memref<1x128xf32, #tpu.memory_space<vmem>>, %arg7: memref<8x128xf32, #tpu.memory_space<vmem>>, %arg8: memref<144x2592xbf16, #tpu.memory_space<vmem>>) attributes {dimension_semantics = [#tpu.dimension_semantics<parallel>], iteration_bounds = array<i64: 1>, scalar_prefetch = 0 : i64, scratch_operands = 1 : i64, tpu.core_type = #tpu.core_type<tc>, window_params = [{transform_indices = @transform_0, window_bounds = array<i64: 16, 2630>}, {pipeline_mode = #tpu.pipeline_mode<synchronous>, transform_indices = @transform_1, window_bounds = array<i64: 8, 144>}, {pipeline_mode = #tpu.pipeline_mode<synchronous>, transform_indices = @transform_2, window_bounds = array<i64: 8, 1>}, {pipeline_mode = #tpu.pipeline_mode<synchronous>, transform_indices = @transform_3, window_bounds = array<i64: 2592, 8>}, {pipeline_mode = #tpu.pipeline_mode<synchronous>, transform_indices = @transform_4, window_bounds = array<i64: 8, 128>}, {pipeline_mode = #tpu.pipeline_mode<synchronous>, transform_indices = @transform_5, window_bounds = array<i64: 1, 128>}, {transform_indices = @transform_6, window_bounds = array<i64: 8, 128>}]} {
    %c0 = arith.constant 0 : index
    %c0_0 = arith.constant 0 : index
    %0 = vector.load %arg1[%c0, %c0_0] : memref<16x2630xbf16, #tpu.memory_space<vmem>>, vector<16x2592xbf16>
    %c0_1 = arith.constant 0 : index
    %c0_2 = arith.constant 0 : index
    %1 = vector.load %arg8[%c0_1, %c0_2] : memref<144x2592xbf16, #tpu.memory_space<vmem>>, vector<16x2592xbf16>
    tpu.vector_store %arg8[%c0_1, %c0_2], %0 {strides = array<i32>} : memref<144x2592xbf16, #tpu.memory_space<vmem>>, vector<16x2592xbf16>,
    %c0_3 = arith.constant 0 : index
    %c1 = arith.constant 1 : index
    %2 = vector.load %arg1[%c0_3, %c1] : memref<16x2630xbf16, #tpu.memory_space<vmem>>, vector<16x2592xbf16>
    %c16 = arith.constant 16 : index
    %c0_4 = arith.constant 0 : index
    %3 = vector.load %arg8[%c16, %c0_4] : memref<144x2592xbf16, #tpu.memory_space<vmem>>, vector<16x2592xbf16>
    tpu.vector_store %arg8[%c16, %c0_4], %2 {strides = array<i32>} : memref<144x2592xbf16, #tpu.memory_space<vmem>>, vector<16x2592xbf16>,
    %c0_5 = arith.constant 0 : index
    %c2 = arith.constant 2 : index
    %4 = vector.load %arg1[%c0_5, %c2] : memref<16x2630xbf16, #tpu.memory_space<vmem>>, vector<16x2592xbf16>
    %c32 = arith.constant 32 : index
    %c0_6 = arith.constant 0 : index
    %5 = vector.load %arg8[%c32, %c0_6] : memref<144x2592xbf16, #tpu.memory_space<vmem>>, vector<16x2592xbf16>
    tpu.vector_store %arg8[%c32, %c0_6], %4 {strides = array<i32>} : memref<144x2592xbf16, #tpu.memory_space<vmem>>, vector<16x2592xbf16>,
    %c0_7 = arith.constant 0 : index
    %c18 = arith.constant 18 : index
    %6 = vector.load %arg1[%c0_7, %c18] : memref<16x2630xbf16, #tpu.memory_space<vmem>>, vector<16x2592xbf16>
    %c48 = arith.constant 48 : index
    %c0_8 = arith.constant 0 : index
    %7 = vector.load %arg8[%c48, %c0_8] : memref<144x2592xbf16, #tpu.memory_space<vmem>>, vector<16x2592xbf16>
    tpu.vector_store %arg8[%c48, %c0_8], %6 {strides = array<i32>} : memref<144x2592xbf16, #tpu.memory_space<vmem>>, vector<16x2592xbf16>,
    %c0_9 = arith.constant 0 : index
    %c19 = arith.constant 19 : index
    %8 = vector.load %arg1[%c0_9, %c19] : memref<16x2630xbf16, #tpu.memory_space<vmem>>, vector<16x2592xbf16>
    %c64 = arith.constant 64 : index
    %c0_10 = arith.constant 0 : index
    %9 = vector.load %arg8[%c64, %c0_10] : memref<144x2592xbf16, #tpu.memory_space<vmem>>, vector<16x2592xbf16>
    tpu.vector_store %arg8[%c64, %c0_10], %8 {strides = array<i32>} : memref<144x2592xbf16, #tpu.memory_space<vmem>>, vector<16x2592xbf16>,
    %c0_11 = arith.constant 0 : index
    %c20 = arith.constant 20 : index
    %10 = vector.load %arg1[%c0_11, %c20] : memref<16x2630xbf16, #tpu.memory_space<vmem>>, vector<16x2592xbf16>
    %c80 = arith.constant 80 : index
    %c0_12 = arith.constant 0 : index
    %11 = vector.load %arg8[%c80, %c0_12] : memref<144x2592xbf16, #tpu.memory_space<vmem>>, vector<16x2592xbf16>
    tpu.vector_store %arg8[%c80, %c0_12], %10 {strides = array<i32>} : memref<144x2592xbf16, #tpu.memory_space<vmem>>, vector<16x2592xbf16>,
    %c0_13 = arith.constant 0 : index
    %c36 = arith.constant 36 : index
    %12 = vector.load %arg1[%c0_13, %c36] : memref<16x2630xbf16, #tpu.memory_space<vmem>>, vector<16x2592xbf16>
    %c96 = arith.constant 96 : index
    %c0_14 = arith.constant 0 : index
    %13 = vector.load %arg8[%c96, %c0_14] : memref<144x2592xbf16, #tpu.memory_space<vmem>>, vector<16x2592xbf16>
    tpu.vector_store %arg8[%c96, %c0_14], %12 {strides = array<i32>} : memref<144x2592xbf16, #tpu.memory_space<vmem>>, vector<16x2592xbf16>,
    %c0_15 = arith.constant 0 : index
    %c37 = arith.constant 37 : index
    %14 = vector.load %arg1[%c0_15, %c37] : memref<16x2630xbf16, #tpu.memory_space<vmem>>, vector<16x2592xbf16>
    %c112 = arith.constant 112 : index
    %c0_16 = arith.constant 0 : index
    %15 = vector.load %arg8[%c112, %c0_16] : memref<144x2592xbf16, #tpu.memory_space<vmem>>, vector<16x2592xbf16>
    tpu.vector_store %arg8[%c112, %c0_16], %14 {strides = array<i32>} : memref<144x2592xbf16, #tpu.memory_space<vmem>>, vector<16x2592xbf16>,
    %c0_17 = arith.constant 0 : index
    %c38 = arith.constant 38 : index
    %16 = vector.load %arg1[%c0_17, %c38] : memref<16x2630xbf16, #tpu.memory_space<vmem>>, vector<16x2592xbf16>
    %c128 = arith.constant 128 : index
    %c0_18 = arith.constant 0 : index
    %17 = vector.load %arg8[%c128, %c0_18] : memref<144x2592xbf16, #tpu.memory_space<vmem>>, vector<16x2592xbf16>
    tpu.vector_store %arg8[%c128, %c0_18], %16 {strides = array<i32>} : memref<144x2592xbf16, #tpu.memory_space<vmem>>, vector<16x2592xbf16>,
    %c0_19 = arith.constant 0 : index
    %c0_20 = arith.constant 0 : index
    %18 = vector.load %arg2[%c0_19, %c0_20] : memref<8x144xbf16, #tpu.memory_space<vmem>>, vector<8x144xbf16>
    %c0_21 = arith.constant 0 : index
    %c0_22 = arith.constant 0 : index
    %19 = vector.load %arg8[%c0_21, %c0_22] : memref<144x2592xbf16, #tpu.memory_space<vmem>>, vector<144x2592xbf16>
    %cst = arith.constant dense<0.000000e+00> : vector<8x2592xf32>
    %20 = tpu.matmul %18, %19, %cst {dimension_numbers = #tpu.dot_dimension_numbers<[1], [0], [0], [1], [0, 0, 1, 1], [], []>} : vector<8x144xbf16>, vector<144x2592xbf16>, vector<8x2592xf32> -> vector<8x2592xf32>
    %c0_23 = arith.constant 0 : index
    %c0_24 = arith.constant 0 : index
    %21 = vector.load %arg3[%c0_23, %c0_24] : memref<8x1xf32, #tpu.memory_space<vmem>>, vector<8x1xf32>
    %22 = vector.broadcast %21 : vector<8x1xf32> to vector<8x2592xf32>
    %23 = arith.addf %20, %22 : vector<8x2592xf32>
    %cst_25 = arith.constant 0.000000e+00 : f32
    %24 = vector.broadcast %cst_25 : f32 to vector<8x2592xf32>
    %25 = arith.maximumf %23, %24 : vector<8x2592xf32>
    %c0_26 = arith.constant 0 : index
    %c0_27 = arith.constant 0 : index
    %26 = vector.load %arg4[%c0_26, %c0_27] : memref<2592x8xf32, #tpu.memory_space<vmem>>, vector<2592x8xf32>
    %cst_28 = arith.constant dense<0.000000e+00> : vector<8x8xf32>
    %27 = tpu.matmul %25, %26, %cst_28 {dimension_numbers = #tpu.dot_dimension_numbers<[1], [0], [0], [1], [0, 0, 1, 1], [], []>} : vector<8x2592xf32>, vector<2592x8xf32>, vector<8x8xf32> -> vector<8x8xf32>
    %c0_29 = arith.constant 0 : index
    %c0_30 = arith.constant 0 : index
    %28 = vector.load %arg5[%c0_29, %c0_30] : memref<8x128xf32, #tpu.memory_space<vmem>>, vector<8x128xf32>
    %cst_31 = arith.constant dense<0.000000e+00> : vector<8x128xf32>
    %29 = tpu.matmul %27, %28, %cst_31 {dimension_numbers = #tpu.dot_dimension_numbers<[0], [0], [1], [1], [0, 1, 1, 1], [], []>} : vector<8x8xf32>, vector<8x128xf32>, vector<8x128xf32> -> vector<8x128xf32>
    %c0_32 = arith.constant 0 : index
    %c0_33 = arith.constant 0 : index
    %30 = vector.load %arg6[%c0_32, %c0_33] : memref<1x128xf32, #tpu.memory_space<vmem>>, vector<1x128xf32>
    %31 = vector.broadcast %30 : vector<1x128xf32> to vector<8x128xf32>
    %32 = arith.addf %29, %31 : vector<8x128xf32>
    %c0_34 = arith.constant 0 : index
    %c0_35 = arith.constant 0 : index
    %33 = vector.load %arg7[%c0_34, %c0_35] : memref<8x128xf32, #tpu.memory_space<vmem>>, vector<8x128xf32>
    tpu.vector_store %arg7[%c0_34, %c0_35], %32 {strides = array<i32>} : memref<8x128xf32, #tpu.memory_space<vmem>>, vector<8x128xf32>,
    return
  }
  func.func @transform_0(%arg0: i32) -> (i32, i32) {
    %c0_i32 = arith.constant 0 : i32
    %c0_i32_0 = arith.constant 0 : i32
    return %arg0, %c0_i32 : i32, i32
  }
  func.func @transform_1(%arg0: i32) -> (i32, i32) {
    %c0_i32 = arith.constant 0 : i32
    %c0_i32_0 = arith.constant 0 : i32
    %c0_i32_1 = arith.constant 0 : i32
    return %c0_i32, %c0_i32_0 : i32, i32
  }
  func.func @transform_2(%arg0: i32) -> (i32, i32) {
    %c0_i32 = arith.constant 0 : i32
    %c0_i32_0 = arith.constant 0 : i32
    %c0_i32_1 = arith.constant 0 : i32
    return %c0_i32, %c0_i32_0 : i32, i32
  }
  func.func @transform_3(%arg0: i32) -> (i32, i32) {
    %c0_i32 = arith.constant 0 : i32
    %c0_i32_0 = arith.constant 0 : i32
    %c0_i32_1 = arith.constant 0 : i32
    return %c0_i32, %c0_i32_0 : i32, i32
  }
  func.func @transform_4(%arg0: i32) -> (i32, i32) {
    %c0_i32 = arith.constant 0 : i32
    %c0_i32_0 = arith.constant 0 : i32
    %c0_i32_1 = arith.constant 0 : i32
    return %c0_i32, %c0_i32_0 : i32, i32
  }
  func.func @transform_5(%arg0: i32) -> (i32, i32) {
    %c0_i32 = arith.constant 0 : i32
    %c0_i32_0 = arith.constant 0 : i32
    %c0_i32_1 = arith.constant 0 : i32
    return %c0_i32, %c0_i32_0 : i32, i32
  }
  func.func @transform_6(%arg0: i32) -> (i32, i32) {
    %c0_i32 = arith.constant 0 : i32
    %c0_i32_0 = arith.constant 0 : i32
    return %arg0, %c0_i32 : i32, i32
  }
}

</mosaic_0001>

<llo_original>
// kernel: fused_model_tta_forward.1
$region0: #{fused_model_tta_forward.1}
  #allocation0 [shape = 'u32[]', space=smem, size = 0x4, offset = 0x4, fixed_abs, tag = 'smem constant byte address 0x4 - core index']
  #allocation1 [shape = 'u32[144,128]{1,0:T(1,128)}', space=vmem, size = 0x12000, scoped, tag = 'internal scratch']
  #allocation2 [shape = 'bf16[144,2592]{1,0:T(16,128)(2,1)}', space=vmem, size = 0xbd000, scoped, tag = 'scratch operand']
  %s0 = inlined_call_operand.vmem [shape: bf16[16,2630], index: 0, kind: input, shape index: {}]
  %s1 = inlined_call_operand.vmem [shape: bf16[8,144], index: 1, kind: input, shape index: {}]
  %s2 = inlined_call_operand.vmem [shape: f32[8,1], index: 2, kind: input, shape index: {}]
  %s3 = inlined_call_operand.vmem [shape: f32[2592,8], index: 3, kind: input, shape index: {}]
  %s4 = inlined_call_operand.vmem [shape: f32[8,128], index: 4, kind: input, shape index: {}]
  %s5 = inlined_call_operand.vmem [shape: f32[1,128], index: 5, kind: input, shape index: {}]
  %s6 = inlined_call_operand.vmem [shape: f32[8,128], index: 6, kind: output, shape index: {}]
  %s7 = sld [smem:[#allocation0]]
  $region34: #{fused_model_tta_forward.1} parent=0
    _
  %s9 = ssub.s32 1, %s7
  %s10 = scalar_select 0, %s9, %s7
  // Predicated region
  $region2: #{fused_model_tta_forward.1} parent=0 // pred_check
    _
  $region3: #{fused_model_tta_forward.1} parent=0 // pred_check_branch
    %12 = sbr.rel (0) target = $region5
  $region4: #{fused_model_tta_forward.1} parent=0 // pred_region
    _
  $region5: #{fused_model_tta_forward.1} parent=0 // pred_fallthru
    _
  // Predicated region
  $region6: #{fused_model_tta_forward.1} parent=0 // pred_check
    _
  $region7: #{fused_model_tta_forward.1} parent=0 // pred_check_branch
    %14 = sbr.rel (0) target = $region9
  $region8: #{fused_model_tta_forward.1} parent=0 // pred_region
    _
  $region9: #{fused_model_tta_forward.1} parent=0 // pred_fallthru
    _
  // Predicated region
  $region10: #{fused_model_tta_forward.1} parent=0 // pred_check
    _
  $region11: #{fused_model_tta_forward.1} parent=0 // pred_check_branch
    %16 = sbr.rel (0) target = $region13
  $region12: #{fused_model_tta_forward.1} parent=0 // pred_region
    _
  $region13: #{fused_model_tta_forward.1} parent=0 // pred_fallthru
    _
  // Predicated region
  $region14: #{fused_model_tta_forward.1} parent=0 // pred_check
    _
  $region15: #{fused_model_tta_forward.1} parent=0 // pred_check_branch
    %18 = sbr.rel (0) target = $region17
  $region16: #{fused_model_tta_forward.1} parent=0 // pred_region
    _
  $region17: #{fused_model_tta_forward.1} parent=0 // pred_fallthru
    _
  // Predicated region
  $region18: #{fused_model_tta_forward.1} parent=0 // pred_check
    _
  $region19: #{fused_model_tta_forward.1} parent=0 // pred_check_branch
    %20 = sbr.rel (0) target = $region21
  $region20: #{fused_model_tta_forward.1} parent=0 // pred_region
    _
  $region21: #{fused_model_tta_forward.1} parent=0 // pred_fallthru
    _
  // Predicated region
  $region22: #{fused_model_tta_forward.1} parent=0 // pred_check
    _
  $region23: #{fused_model_tta_forward.1} parent=0 // pred_check_branch
    %22 = sbr.rel (0) target = $region25
  $region24: #{fused_model_tta_forward.1} parent=0 // pred_region
    _
  $region25: #{fused_model_tta_forward.1} parent=0 // pred_fallthru
    _
  %v24 = vld [vmem:[%s0] sm:$0xff]
  %v25 = vld [vmem:[%s0 + $0x8] sm:$0xff]
  %v26 = vld [vmem:[%s0 + $0x10] sm:$0xff]
  %v27 = vld [vmem:[%s0 + $0x18] sm:$0xff]
  %v28 = vld [vmem:[%s0 + $0x20] sm:$0xff]
  %v29 = vld [vmem:[%s0 + $0x28] sm:$0xff]
  %v30 = vld [vmem:[%s0 + $0x30] sm:$0xff]
  %v31 = vld [vmem:[%s0 + $0x38] sm:$0xff]
  %v32 = vld [vmem:[%s0 + $0x40] sm:$0xff]
  %v33 = vld [vmem:[%s0 + $0x48] sm:$0xff]
  %v34 = vld [vmem:[%s0 + $0x50] sm:$0xf]
  %v35 = vld [vmem:[%s0 + $0x54] sm:$0xff]
  %v36 = vld [vmem:[%s0 + $0x5c] sm:$0xff]
  %v37 = vld [vmem:[%s0 + $0x64] sm:$0xff]
  %v38 = vld [vmem:[%s0 + $0x6c] sm:$0xff]
  %v39 = vld [vmem:[%s0 + $0x74] sm:$0xff]
  %v40 = vld [vmem:[%s0 + $0x7c] sm:$0xff]
  %v41 = vld [vmem:[%s0 + $0x84] sm:$0xff]
  %v42 = vld [vmem:[%s0 + $0x8c] sm:$0xff]
  %v43 = vld [vmem:[%s0 + $0x94] sm:$0xff]
  %v44 = vld [vmem:[%s0 + $0x9c] sm:$0xff]
  %v45 = vld [vmem:[%s0 + $0xa4] sm:$0xf]
  %v68 = vunpack.c.l.b16 %v24
  %v69 = vunpack.c.h.b16 %v24
  %v70 = vunpack.c.l.b16 %v25
  %v71 = vunpack.c.h.b16 %v25
  %v72 = vunpack.c.l.b16 %v26
  %v73 = vunpack.c.h.b16 %v26
  %v74 = vunpack.c.l.b16 %v27
  %v75 = vunpack.c.h.b16 %v27
  %v76 = vunpack.c.l.b16 %v28
  %v77 = vunpack.c.h.b16 %v28
  %v78 = vunpack.c.l.b16 %v29
  %v79 = vunpack.c.h.b16 %v29
  %v80 = vunpack.c.l.b16 %v30
  %v81 = vunpack.c.h.b16 %v30
  %v82 = vunpack.c.l.b16 %v31
  %v83 = vunpack.c.h.b16 %v31
  %v84 = vunpack.c.l.b16 %v32
  %v85 = vunpack.c.h.b16 %v32
  %v86 = vunpack.c.l.b16 %v33
  %v87 = vunpack.c.h.b16 %v33
  %v88 = vunpack.c.l.b16 %v34
  %v89 = vunpack.c.l.b16 %v35
  %v90 = vunpack.c.h.b16 %v35
  %v91 = vunpack.c.l.b16 %v36
  %v92 = vunpack.c.h.b16 %v36
  %v93 = vunpack.c.l.b16 %v37
  %v94 = vunpack.c.h.b16 %v37
  %v95 = vunpack.c.l.b16 %v38
  %v96 = vunpack.c.h.b16 %v38
  %v97 = vunpack.c.l.b16 %v39
  %v98 = vunpack.c.h.b16 %v39
  %v99 = vunpack.c.l.b16 %v40
  %v100 = vunpack.c.h.b16 %v40
  %v101 = vunpack.c.l.b16 %v41
  %v102 = vunpack.c.h.b16 %v41
  %v103 = vunpack.c.l.b16 %v42
  %v104 = vunpack.c.h.b16 %v42
  %v105 = vunpack.c.l.b16 %v43
  %v106 = vunpack.c.h.b16 %v43
  %v107 = vunpack.c.l.b16 %v44
  %v108 = vunpack.c.h.b16 %v44
  %v109 = vunpack.c.l.b16 %v45
  %v110 = vpack.c.b16 %v89, %v68
  %v111 = vpack.c.b16 %v90, %v69
  %v112 = vpack.c.b16 %v91, %v70
  %v113 = vpack.c.b16 %v92, %v71
  %v114 = vpack.c.b16 %v93, %v72
  %v115 = vpack.c.b16 %v94, %v73
  %v116 = vpack.c.b16 %v95, %v74
  %v117 = vpack.c.b16 %v96, %v75
  %v118 = vpack.c.b16 %v97, %v76
  %v119 = vpack.c.b16 %v98, %v77
  %v120 = vpack.c.b16 %v99, %v78
  %v121 = vpack.c.b16 %v100, %v79
  %v122 = vpack.c.b16 %v101, %v80
  %v123 = vpack.c.b16 %v102, %v81
  %v124 = vpack.c.b16 %v103, %v82
  %v125 = vpack.c.b16 %v104, %v83
  %v126 = vpack.c.b16 %v105, %v84
  %v127 = vpack.c.b16 %v106, %v85
  %v128 = vpack.c.b16 %v107, %v86
  %v129 = vpack.c.b16 %v108, %v87
  %v130 = vpack.c.b16 %v109, %v88
  %152 = vst [vmem:[#allocation2] sm:$0xff] %v110
  %153 = vst [vmem:[#allocation2 + $0x8] sm:$0xff] %v111
  %154 = vst [vmem:[#allocation2 + $0x10] sm:$0xff] %v112
  %155 = vst [vmem:[#allocation2 + $0x18] sm:$0xff] %v113
  %156 = vst [vmem:[#allocation2 + $0x20] sm:$0xff] %v114
  %157 = vst [vmem:[#allocation2 + $0x28] sm:$0xff] %v115
  %158 = vst [vmem:[#allocation2 + $0x30] sm:$0xff] %v116
  %159 = vst [vmem:[#allocation2 + $0x38] sm:$0xff] %v117
  %160 = vst [vmem:[#allocation2 + $0x40] sm:$0xff] %v118
  %161 = vst [vmem:[#allocation2 + $0x48] sm:$0xff] %v119
  %162 = vst [vmem:[#allocation2 + $0x50] sm:$0xff] %v120
  %163 = vst [vmem:[#allocation2 + $0x58] sm:$0xff] %v121
  %164 = vst [vmem:[#allocation2 + $0x60] sm:$0xff] %v122
  %165 = vst [vmem:[#allocation2 + $0x68] sm:$0xff] %v123
  %166 = vst [vmem:[#allocation2 + $0x70] sm:$0xff] %v124
  %167 = vst [vmem:[#allocation2 + $0x78] sm:$0xff] %v125
  %168 = vst [vmem:[#allocation2 + $0x80] sm:$0xff] %v126
  %169 = vst [vmem:[#allocation2 + $0x88] sm:$0xff] %v127
  %170 = vst [vmem:[#allocation2 + $0x90] sm:$0xff] %v128
  %171 = vst [vmem:[#allocation2 + $0x98] sm:$0xff] %v129
  %vm172 = vcmask 261120
  %173 = vst.msk [vmem:[#allocation2 + $0xa0] sm:$0xff] %vm172, %v130
  %v174 = vld [vmem:[%s0] sm:$0xff]
  %v175 = vld [vmem:[%s0 + $0x8] sm:$0xff]
  %v176 = vld [vmem:[%s0 + $0x10] sm:$0xff]
  %v177 = vld [vmem:[%s0 + $0x18] sm:$0xff]
  %v178 = vld [vmem:[%s0 + $0x20] sm:$0xff]
  %v179 = vld [vmem:[%s0 + $0x28] sm:$0xff]
  %v180 = vld [vmem:[%s0 + $0x30] sm:$0xff]
  %v181 = vld [vmem:[%s0 + $0x38] sm:$0xff]
  %v182 = vld [vmem:[%s0 + $0x40] sm:$0xff]
  %v183 = vld [vmem:[%s0 + $0x48] sm:$0xff]
  %v184 = vld [vmem:[%s0 + $0x50] sm:$0xf]
  %v185 = vld [vmem:[%s0 + $0x54] sm:$0xff]
  %v186 = vld [vmem:[%s0 + $0x5c] sm:$0xff]
  %v187 = vld [vmem:[%s0 + $0x64] sm:$0xff]
  %v188 = vld [vmem:[%s0 + $0x6c] sm:$0xff]
  %v189 = vld [vmem:[%s0 + $0x74] sm:$0xff]
  %v190 = vld [vmem:[%s0 + $0x7c] sm:$0xff]
  %v191 = vld [vmem:[%s0 + $0x84] sm:$0xff]
  %v192 = vld [vmem:[%s0 + $0x8c] sm:$0xff]
  %v193 = vld [vmem:[%s0 + $0x94] sm:$0xff]
  %v194 = vld [vmem:[%s0 + $0x9c] sm:$0xff]
  %v195 = vld [vmem:[%s0 + $0xa4] sm:$0xf]
  %v218 = vunpack.c.l.b16 %v174
  %v219 = vunpack.c.h.b16 %v174
  %v220 = vunpack.c.l.b16 %v175
  %v221 = vunpack.c.h.b16 %v175
  %v222 = vunpack.c.l.b16 %v176
  %v223 = vunpack.c.h.b16 %v176
  %v224 = vunpack.c.l.b16 %v177
  %v225 = vunpack.c.h.b16 %v177
  %v226 = vunpack.c.l.b16 %v178
  %v227 = vunpack.c.h.b16 %v178
  %v228 = vunpack.c.l.b16 %v179
  %v229 = vunpack.c.h.b16 %v179
  %v230 = vunpack.c.l.b16 %v180
  %v231 = vunpack.c.h.b16 %v180
  %v232 = vunpack.c.l.b16 %v181
  %v233 = vunpack.c.h.b16 %v181
  %v234 = vunpack.c.l.b16 %v182
  %v235 = vunpack.c.h.b16 %v182
  %v236 = vunpack.c.l.b16 %v183
  %v237 = vunpack.c.h.b16 %v183
  %v238 = vunpack.c.l.b16 %v184
  %v239 = vunpack.c.l.b16 %v185
  %v240 = vunpack.c.h.b16 %v185
  %v241 = vunpack.c.l.b16 %v186
  %v242 = vunpack.c.h.b16 %v186
  %v243 = vunpack.c.l.b16 %v187
  %v244 = vunpack.c.h.b16 %v187
  %v245 = vunpack.c.l.b16 %v188
  %v246 = vunpack.c.h.b16 %v188
  %v247 = vunpack.c.l.b16 %v189
  %v248 = vunpack.c.h.b16 %v189
  %v249 = vunpack.c.l.b16 %v190
  %v250 = vunpack.c.h.b16 %v190
  %v251 = vunpack.c.l.b16 %v191
  %v252 = vunpack.c.h.b16 %v191
  %v253 = vunpack.c.l.b16 %v192
  %v254 = vunpack.c.h.b16 %v192
  %v255 = vunpack.c.l.b16 %v193
  %v256 = vunpack.c.h.b16 %v193
  %v257 = vunpack.c.l.b16 %v194
  %v258 = vunpack.c.h.b16 %v194
  %v259 = vunpack.c.l.b16 %v195
  %v260 = vpack.c.b16 %v239, %v218
  %v261 = vpack.c.b16 %v240, %v219
  %v262 = vpack.c.b16 %v241, %v220
  %v263 = vpack.c.b16 %v242, %v221
  %v264 = vpack.c.b16 %v243, %v222
  %v265 = vpack.c.b16 %v244, %v223
  %v266 = vpack.c.b16 %v245, %v224
  %v267 = vpack.c.b16 %v246, %v225
  %v268 = vpack.c.b16 %v247, %v226
  %v269 = vpack.c.b16 %v248, %v227
  %v270 = vpack.c.b16 %v249, %v228
  %v271 = vpack.c.b16 %v250, %v229
  %v272 = vpack.c.b16 %v251, %v230
  %v273 = vpack.c.b16 %v252, %v231
  %v274 = vpack.c.b16 %v253, %v232
  %v275 = vpack.c.b16 %v254, %v233
  %v276 = vpack.c.b16 %v255, %v234
  %v277 = vpack.c.b16 %v256, %v235
  %v278 = vpack.c.b16 %v257, %v236
  %v279 = vpack.c.b16 %v258, %v237
  %v280 = vpack.c.b16 %v259, %v238
  %281 = vrot.lane.b32.xlu0 %v260, 127
  %v282 = vpop.permute.xlu0 %281
  %283 = vrot.lane.b32.xlu0 %v261, 127
  %v284 = vpop.permute.xlu0 %283
  %285 = vrot.lane.b32.xlu0 %v262, 127
  %v286 = vpop.permute.xlu0 %285
  %287 = vrot.lane.b32.xlu0 %v263, 127
  %v288 = vpop.permute.xlu0 %287
  %289 = vrot.lane.b32.xlu0 %v264, 127
  %v290 = vpop.permute.xlu0 %289
  %291 = vrot.lane.b32.xlu0 %v265, 127
  %v292 = vpop.permute.xlu0 %291
  %293 = vrot.lane.b32.xlu0 %v266, 127
  %v294 = vpop.permute.xlu0 %293
  %295 = vrot.lane.b32.xlu0 %v267, 127
  %v296 = vpop.permute.xlu0 %295
  %297 = vrot.lane.b32.xlu0 %v268, 127
  %v298 = vpop.permute.xlu0 %297
  %299 = vrot.lane.b32.xlu0 %v269, 127
  %v300 = vpop.permute.xlu0 %299
  %301 = vrot.lane.b32.xlu0 %v270, 127
  %v302 = vpop.permute.xlu0 %301
  %303 = vrot.lane.b32.xlu0 %v271, 127
  %v304 = vpop.permute.xlu0 %303
  %305 = vrot.lane.b32.xlu0 %v272, 127
  %v306 = vpop.permute.xlu0 %305
  %307 = vrot.lane.b32.xlu0 %v273, 127
  %v308 = vpop.permute.xlu0 %307
  %309 = vrot.lane.b32.xlu0 %v274, 127
  %v310 = vpop.permute.xlu0 %309
  %311 = vrot.lane.b32.xlu0 %v275, 127
  %v312 = vpop.permute.xlu0 %311
  %313 = vrot.lane.b32.xlu0 %v276, 127
  %v314 = vpop.permute.xlu0 %313
  %315 = vrot.lane.b32.xlu0 %v277, 127
  %v316 = vpop.permute.xlu0 %315
  %317 = vrot.lane.b32.xlu0 %v278, 127
  %v318 = vpop.permute.xlu0 %317
  %319 = vrot.lane.b32.xlu0 %v279, 127
  %v320 = vpop.permute.xlu0 %319
  %321 = vrot.lane.b32.xlu0 %v280, 127
  %v322 = vpop.permute.xlu0 %321
  %vm323 = vcmask 1039360
  %v324 = vsel %vm323, %v282, %v284
  %v325 = vsel %vm323, %v284, %v286
  %v326 = vsel %vm323, %v286, %v288
  %v327 = vsel %vm323, %v288, %v290
  %v328 = vsel %vm323, %v290, %v292
  %v329 = vsel %vm323, %v292, %v294
  %v330 = vsel %vm323, %v294, %v296
  %v331 = vsel %vm323, %v296, %v298
  %v332 = vsel %vm323, %v298, %v300
  %v333 = vsel %vm323, %v300, %v302
  %v334 = vsel %vm323, %v302, %v304
  %v335 = vsel %vm323, %v304, %v306
  %v336 = vsel %vm323, %v306, %v308
  %v337 = vsel %vm323, %v308, %v310
  %v338 = vsel %vm323, %v310, %v312
  %v339 = vsel %vm323, %v312, %v314
  %v340 = vsel %vm323, %v314, %v316
  %v341 = vsel %vm323, %v316, %v318
  %v342 = vsel %vm323, %v318, %v320
  %v343 = vsel %vm323, %v320, %v322
  %365 = vst [vmem:[#allocation2 + $0xa8] sm:$0xff] %v324
  %366 = vst [vmem:[#allocation2 + $0xb0] sm:$0xff] %v325
  %367 = vst [vmem:[#allocation2 + $0xb8] sm:$0xff] %v326
  %368 = vst [vmem:[#allocation2 + $0xc0] sm:$0xff] %v327
  %369 = vst [vmem:[#allocation2 + $0xc8] sm:$0xff] %v328
  %370 = vst [vmem:[#allocation2 + $0xd0] sm:$0xff] %v329
  %371 = vst [vmem:[#allocation2 + $0xd8] sm:$0xff] %v330
  %372 = vst [vmem:[#allocation2 + $0xe0] sm:$0xff] %v331
  %373 = vst [vmem:[#allocation2 + $0xe8] sm:$0xff] %v332
  %374 = vst [vmem:[#allocation2 + $0xf0] sm:$0xff] %v333
  %375 = vst [vmem:[#allocation2 + $0xf8] sm:$0xff] %v334
  %376 = vst [vmem:[#allocation2 + $0x100] sm:$0xff] %v335
  %377 = vst [vmem:[#allocation2 + $0x108] sm:$0xff] %v336
  %378 = vst [vmem:[#allocation2 + $0x110] sm:$0xff] %v337
  %379 = vst [vmem:[#allocation2 + $0x118] sm:$0xff] %v338
  %380 = vst [vmem:[#allocation2 + $0x120] sm:$0xff] %v339
  %381 = vst [vmem:[#allocation2 + $0x128] sm:$0xff] %v340
  %382 = vst [vmem:[#allocation2 + $0x130] sm:$0xff] %v341
  %383 = vst [vmem:[#allocation2 + $0x138] sm:$0xff] %v342
  %384 = vst [vmem:[#allocation2 + $0x140] sm:$0xff] %v343
  %385 = vst.msk [vmem:[#allocation2 + $0x148] sm:$0xff] %vm172, %v322
  %v386 = vld [vmem:[%s0] sm:$0xff]
  %v387 = vld [vmem:[%s0 + $0x8] sm:$0xff]
  %v388 = vld [vmem:[%s0 + $0x10] sm:$0xff]
  %v389 = vld [vmem:[%s0 + $0x18] sm:$0xff]
  %v390 = vld [vmem:[%s0 + $0x20] sm:$0xff]
  %v391 = vld [vmem:[%s0 + $0x28] sm:$0xff]
  %v392 = vld [vmem:[%s0 + $0x30] sm:$0xff]
  %v393 = vld [vmem:[%s0 + $0x38] sm:$0xff]
  %v394 = vld [vmem:[%s0 + $0x40] sm:$0xff]
  %v395 = vld [vmem:[%s0 + $0x48] sm:$0xff]
  %v396 = vld [vmem:[%s0 + $0x50] sm:$0xf]
  %v397 = vld [vmem:[%s0 + $0x54] sm:$0xff]
  %v398 = vld [vmem:[%s0 + $0x5c] sm:$0xff]
  %v399 = vld [vmem:[%s0 + $0x64] sm:$0xff]
  %v400 = vld [vmem:[%s0 + $0x6c] sm:$0xff]
  %v401 = vld [vmem:[%s0 + $0x74] sm:$0xff]
  %v402 = vld [vmem:[%s0 + $0x7c] sm:$0xff]
  %v403 = vld [vmem:[%s0 + $0x84] sm:$0xff]
  %v404 = vld [vmem:[%s0 + $0x8c] sm:$0xff]
  %v405 = vld [vmem:[%s0 + $0x94] sm:$0xff]
  %v406 = vld [vmem:[%s0 + $0x9c] sm:$0xff]
  %v407 = vld [vmem:[%s0 + $0xa4] sm:$0xf]
  %v430 = vunpack.c.l.b16 %v386
  %v431 = vunpack.c.h.b16 %v386
  %v432 = vunpack.c.l.b16 %v387
  %v433 = vunpack.c.h.b16 %v387
  %v434 = vunpack.c.l.b16 %v388
  %v435 = vunpack.c.h.b16 %v388
  %v436 = vunpack.c.l.b16 %v389
  %v437 = vunpack.c.h.b16 %v389
  %v438 = vunpack.c.l.b16 %v390
  %v439 = vunpack.c.h.b16 %v390
  %v440 = vunpack.c.l.b16 %v391
  %v441 = vunpack.c.h.b16 %v391
  %v442 = vunpack.c.l.b16 %v392
  %v443 = vunpack.c.h.b16 %v392
  %v444 = vunpack.c.l.b16 %v393
  %v445 = vunpack.c.h.b16 %v393
  %v446 = vunpack.c.l.b16 %v394
  %v447 = vunpack.c.h.b16 %v394
  %v448 = vunpack.c.l.b16 %v395
  %v449 = vunpack.c.h.b16 %v395
  %v450 = vunpack.c.l.b16 %v396
  %v451 = vunpack.c.l.b16 %v397
  %v452 = vunpack.c.h.b16 %v397
  %v453 = vunpack.c.l.b16 %v398
  %v454 = vunpack.c.h.b16 %v398
  %v455 = vunpack.c.l.b16 %v399
  %v456 = vunpack.c.h.b16 %v399
  %v457 = vunpack.c.l.b16 %v400
  %v458 = vunpack.c.h.b16 %v400
  %v459 = vunpack.c.l.b16 %v401
  %v460 = vunpack.c.h.b16 %v401
  %v461 = vunpack.c.l.b16 %v402
  %v462 = vunpack.c.h.b16 %v402
  %v463 = vunpack.c.l.b16 %v403
  %v464 = vunpack.c.h.b16 %v403
  %v465 = vunpack.c.l.b16 %v404
  %v466 = vunpack.c.h.b16 %v404
  %v467 = vunpack.c.l.b16 %v405
  %v468 = vunpack.c.h.b16 %v405
  %v469 = vunpack.c.l.b16 %v406
  %v470 = vunpack.c.h.b16 %v406
  %v471 = vunpack.c.l.b16 %v407
  %v472 = vpack.c.b16 %v451, %v430
  %v473 = vpack.c.b16 %v452, %v431
  %v474 = vpack.c.b16 %v453, %v432
  %v475 = vpack.c.b16 %v454, %v433
  %v476 = vpack.c.b16 %v455, %v434
  %v477 = vpack.c.b16 %v456, %v435
  %v478 = vpack.c.b16 %v457, %v436
  %v479 = vpack.c.b16 %v458, %v437
  %v480 = vpack.c.b16 %v459, %v438
  %v481 = vpack.c.b16 %v460, %v439
  %v482 = vpack.c.b16 %v461, %v440
  %v483 = vpack.c.b16 %v462, %v441
  %v484 = vpack.c.b16 %v463, %v442
  %v485 = vpack.c.b16 %v464, %v443
  %v486 = vpack.c.b16 %v465, %v444
  %v487 = vpack.c.b16 %v466, %v445
  %v488 = vpack.c.b16 %v467, %v446
  %v489 = vpack.c.b16 %v468, %v447
  %v490 = vpack.c.b16 %v469, %v448
  %v491 = vpack.c.b16 %v470, %v449
  %v492 = vpack.c.b16 %v471, %v450
  %493 = vrot.lane.b32.xlu0 %v472, 126
  %v494 = vpop.permute.xlu0 %493
  %495 = vrot.lane.b32.xlu0 %v473, 126
  %v496 = vpop.permute.xlu0 %495
  %497 = vrot.lane.b32.xlu0 %v474, 126
  %v498 = vpop.permute.xlu0 %497
  %499 = vrot.lane.b32.xlu0 %v475, 126
  %v500 = vpop.permute.xlu0 %499
  %501 = vrot.lane.b32.xlu0 %v476, 126
  %v502 = vpop.permute.xlu0 %501
  %503 = vrot.lane.b32.xlu0 %v477, 126
  %v504 = vpop.permute.xlu0 %503
  %505 = vrot.lane.b32.xlu0 %v478, 126
  %v506 = vpop.permute.xlu0 %505
  %507 = vrot.lane.b32.xlu0 %v479, 126
  %v508 = vpop.permute.xlu0 %507
  %509 = vrot.lane.b32.xlu0 %v480, 126
  %v510 = vpop.permute.xlu0 %509
  %511 = vrot.lane.b32.xlu0 %v481, 126
  %v512 = vpop.permute.xlu0 %511
  %513 = vrot.lane.b32.xlu0 %v482, 126
  %v514 = vpop.permute.xlu0 %513
  %515 = vrot.lane.b32.xlu0 %v483, 126
  %v516 = vpop.permute.xlu0 %515
  %517 = vrot.lane.b32.xlu0 %v484, 126
  %v518 = vpop.permute.xlu0 %517
  %519 = vrot.lane.b32.xlu0 %v485, 126
  %v520 = vpop.permute.xlu0 %519
  %521 = vrot.lane.b32.xlu0 %v486, 126
  %v522 = vpop.permute.xlu0 %521
  %523 = vrot.lane.b32.xlu0 %v487, 126
  %v524 = vpop.permute.xlu0 %523
  %525 = vrot.lane.b32.xlu0 %v488, 126
  %v526 = vpop.permute.xlu0 %525
  %527 = vrot.lane.b32.xlu0 %v489, 126
  %v528 = vpop.permute.xlu0 %527
  %529 = vrot.lane.b32.xlu0 %v490, 126
  %v530 = vpop.permute.xlu0 %529
  %531 = vrot.lane.b32.xlu0 %v491, 126
  %v532 = vpop.permute.xlu0 %531
  %533 = vrot.lane.b32.xlu0 %v492, 126
  %v534 = vpop.permute.xlu0 %533
  %vm535 = vcmask 1031168
  %v536 = vsel %vm535, %v494, %v496
  %v537 = vsel %vm535, %v496, %v498
  %v538 = vsel %vm535, %v498, %v500
  %v539 = vsel %vm535, %v500, %v502
  %v540 = vsel %vm535, %v502, %v504
  %v541 = vsel %vm535, %v504, %v506
  %v542 = vsel %vm535, %v506, %v508
  %v543 = vsel %vm535, %v508, %v510
  %v544 = vsel %vm535, %v510, %v512
  %v545 = vsel %vm535, %v512, %v514
  %v546 = vsel %vm535, %v514, %v516
  %v547 = vsel %vm535, %v516, %v518
  %v548 = vsel %vm535, %v518, %v520
  %v549 = vsel %vm535, %v520, %v522
  %v550 = vsel %vm535, %v522, %v524
  %v551 = vsel %vm535, %v524, %v526
  %v552 = vsel %vm535, %v526, %v528
  %v553 = vsel %vm535, %v528, %v530
  %v554 = vsel %vm535, %v530, %v532
  %v555 = vsel %vm535, %v532, %v534
  %577 = vst [vmem:[#allocation2 + $0x150] sm:$0xff] %v536
  %578 = vst [vmem:[#allocation2 + $0x158] sm:$0xff] %v537
  %579 = vst [vmem:[#allocation2 + $0x160] sm:$0xff] %v538
  %580 = vst [vmem:[#allocation2 + $0x168] sm:$0xff] %v539
  %581 = vst [vmem:[#allocation2 + $0x170] sm:$0xff] %v540
  %582 = vst [vmem:[#allocation2 + $0x178] sm:$0xff] %v541
  %583 = vst [vmem:[#allocation2 + $0x180] sm:$0xff] %v542
  %584 = vst [vmem:[#allocation2 + $0x188] sm:$0xff] %v543
  %585 = vst [vmem:[#allocation2 + $0x190] sm:$0xff] %v544
  %586 = vst [vmem:[#allocation2 + $0x198] sm:$0xff] %v545
  %587 = vst [vmem:[#allocation2 + $0x1a0] sm:$0xff] %v546
  %588 = vst [vmem:[#allocation2 + $0x1a8] sm:$0xff] %v547
  %589 = vst [vmem:[#allocation2 + $0x1b0] sm:$0xff] %v548
  %590 = vst [vmem:[#allocation2 + $0x1b8] sm:$0xff] %v549
  %591 = vst [vmem:[#allocation2 + $0x1c0] sm:$0xff] %v550
  %592 = vst [vmem:[#allocation2 + $0x1c8] sm:$0xff] %v551
  %593 = vst [vmem:[#allocation2 + $0x1d0] sm:$0xff] %v552
  %594 = vst [vmem:[#allocation2 + $0x1d8] sm:$0xff] %v553
  %595 = vst [vmem:[#allocation2 + $0x1e0] sm:$0xff] %v554
  %596 = vst [vmem:[#allocation2 + $0x1e8] sm:$0xff] %v555
  %597 = vst.msk [vmem:[#allocation2 + $0x1f0] sm:$0xff] %vm172, %v534
  %v598 = vld [vmem:[%s0] sm:$0xff]
  %v599 = vld [vmem:[%s0 + $0x8] sm:$0xff]
  %v600 = vld [vmem:[%s0 + $0x10] sm:$0xff]
  %v601 = vld [vmem:[%s0 + $0x18] sm:$0xff]
  %v602 = vld [vmem:[%s0 + $0x20] sm:$0xff]
  %v603 = vld [vmem:[%s0 + $0x28] sm:$0xff]
  %v604 = vld [vmem:[%s0 + $0x30] sm:$0xff]
  %v605 = vld [vmem:[%s0 + $0x38] sm:$0xff]
  %v606 = vld [vmem:[%s0 + $0x40] sm:$0xff]
  %v607 = vld [vmem:[%s0 + $0x48] sm:$0xff]
  %v608 = vld [vmem:[%s0 + $0x50] sm:$0xf]
  %v609 = vld [vmem:[%s0 + $0x54] sm:$0xff]
  %v610 = vld [vmem:[%s0 + $0x5c] sm:$0xff]
  %v611 = vld [vmem:[%s0 + $0x64] sm:$0xff]
  %v612 = vld [vmem:[%s0 + $0x6c] sm:$0xff]
  %v613 = vld [vmem:[%s0 + $0x74] sm:$0xff]
  %v614 = vld [vmem:[%s0 + $0x7c] sm:$0xff]
  %v615 = vld [vmem:[%s0 + $0x84] sm:$0xff]
  %v616 = vld [vmem:[%s0 + $0x8c] sm:$0xff]
  %v617 = vld [vmem:[%s0 + $0x94] sm:$0xff]
  %v618 = vld [vmem:[%s0 + $0x9c] sm:$0xff]
  %v619 = vld [vmem:[%s0 + $0xa4] sm:$0xf]
  %v642 = vunpack.c.l.b16 %v598
  %v643 = vunpack.c.h.b16 %v598
  %v644 = vunpack.c.l.b16 %v599
  %v645 = vunpack.c.h.b16 %v599
  %v646 = vunpack.c.l.b16 %v600
  %v647 = vunpack.c.h.b16 %v600
  %v648 = vunpack.c.l.b16 %v601
  %v649 = vunpack.c.h.b16 %v601
  %v650 = vunpack.c.l.b16 %v602
  %v651 = vunpack.c.h.b16 %v602
  %v652 = vunpack.c.l.b16 %v603
  %v653 = vunpack.c.h.b16 %v603
  %v654 = vunpack.c.l.b16 %v604
  %v655 = vunpack.c.h.b16 %v604
  %v656 = vunpack.c.l.b16 %v605
  %v657 = vunpack.c.h.b16 %v605
  %v658 = vunpack.c.l.b16 %v606
  %v659 = vunpack.c.h.b16 %v606
  %v660 = vunpack.c.l.b16 %v607
  %v661 = vunpack.c.h.b16 %v607
  %v662 = vunpack.c.l.b16 %v608
  %v663 = vunpack.c.l.b16 %v609
  %v664 = vunpack.c.h.b16 %v609
  %v665 = vunpack.c.l.b16 %v610
  %v666 = vunpack.c.h.b16 %v610
  %v667 = vunpack.c.l.b16 %v611
  %v668 = vunpack.c.h.b16 %v611
  %v669 = vunpack.c.l.b16 %v612
  %v670 = vunpack.c.h.b16 %v612
  %v671 = vunpack.c.l.b16 %v613
  %v672 = vunpack.c.h.b16 %v613
  %v673 = vunpack.c.l.b16 %v614
  %v674 = vunpack.c.h.b16 %v614
  %v675 = vunpack.c.l.b16 %v615
  %v676 = vunpack.c.h.b16 %v615
  %v677 = vunpack.c.l.b16 %v616
  %v678 = vunpack.c.h.b16 %v616
  %v679 = vunpack.c.l.b16 %v617
  %v680 = vunpack.c.h.b16 %v617
  %v681 = vunpack.c.l.b16 %v618
  %v682 = vunpack.c.h.b16 %v618
  %v683 = vunpack.c.l.b16 %v619
  %v684 = vpack.c.b16 %v663, %v642
  %v685 = vpack.c.b16 %v664, %v643
  %v686 = vpack.c.b16 %v665, %v644
  %v687 = vpack.c.b16 %v666, %v645
  %v688 = vpack.c.b16 %v667, %v646
  %v689 = vpack.c.b16 %v668, %v647
  %v690 = vpack.c.b16 %v669, %v648
  %v691 = vpack.c.b16 %v670, %v649
  %v692 = vpack.c.b16 %v671, %v650
  %v693 = vpack.c.b16 %v672, %v651
  %v694 = vpack.c.b16 %v673, %v652
  %v695 = vpack.c.b16 %v674, %v653
  %v696 = vpack.c.b16 %v675, %v654
  %v697 = vpack.c.b16 %v676, %v655
  %v698 = vpack.c.b16 %v677, %v656
  %v699 = vpack.c.b16 %v678, %v657
  %v700 = vpack.c.b16 %v679, %v658
  %v701 = vpack.c.b16 %v680, %v659
  %v702 = vpack.c.b16 %v681, %v660
  %v703 = vpack.c.b16 %v682, %v661
  %v704 = vpack.c.b16 %v683, %v662
  %705 = vrot.lane.b32.xlu0 %v684, 110
  %v706 = vpop.permute.xlu0 %705
  %707 = vrot.lane.b32.xlu0 %v685, 110
  %v708 = vpop.permute.xlu0 %707
  %709 = vrot.lane.b32.xlu0 %v686, 110
  %v710 = vpop.permute.xlu0 %709
  %711 = vrot.lane.b32.xlu0 %v687, 110
  %v712 = vpop.permute.xlu0 %711
  %713 = vrot.lane.b32.xlu0 %v688, 110
  %v714 = vpop.permute.xlu0 %713
  %715 = vrot.lane.b32.xlu0 %v689, 110
  %v716 = vpop.permute.xlu0 %715
  %717 = vrot.lane.b32.xlu0 %v690, 110
  %v718 = vpop.permute.xlu0 %717
  %719 = vrot.lane.b32.xlu0 %v691, 110
  %v720 = vpop.permute.xlu0 %719
  %721 = vrot.lane.b32.xlu0 %v692, 110
  %v722 = vpop.permute.xlu0 %721
  %723 = vrot.lane.b32.xlu0 %v693, 110
  %v724 = vpop.permute.xlu0 %723
  %725 = vrot.lane.b32.xlu0 %v694, 110
  %v726 = vpop.permute.xlu0 %725
  %727 = vrot.lane.b32.xlu0 %v695, 110
  %v728 = vpop.permute.xlu0 %727
  %729 = vrot.lane.b32.xlu0 %v696, 110
  %v730 = vpop.permute.xlu0 %729
  %731 = vrot.lane.b32.xlu0 %v697, 110
  %v732 = vpop.permute.xlu0 %731
  %733 = vrot.lane.b32.xlu0 %v698, 110
  %v734 = vpop.permute.xlu0 %733
  %735 = vrot.lane.b32.xlu0 %v699, 110
  %v736 = vpop.permute.xlu0 %735
  %737 = vrot.lane.b32.xlu0 %v700, 110
  %v738 = vpop.permute.xlu0 %737
  %739 = vrot.lane.b32.xlu0 %v701, 110
  %v740 = vpop.permute.xlu0 %739
  %741 = vrot.lane.b32.xlu0 %v702, 110
  %v742 = vpop.permute.xlu0 %741
  %743 = vrot.lane.b32.xlu0 %v703, 110
  %v744 = vpop.permute.xlu0 %743
  %745 = vrot.lane.b32.xlu0 %v704, 110
  %v746 = vpop.permute.xlu0 %745
  %vm747 = vcmask 900096
  %v748 = vsel %vm747, %v706, %v708
  %v749 = vsel %vm747, %v708, %v710
  %v750 = vsel %vm747, %v710, %v712
  %v751 = vsel %vm747, %v712, %v714
  %v752 = vsel %vm747, %v714, %v716
  %v753 = vsel %vm747, %v716, %v718
  %v754 = vsel %vm747, %v718, %v720
  %v755 = vsel %vm747, %v720, %v722
  %v756 = vsel %vm747, %v722, %v724
  %v757 = vsel %vm747, %v724, %v726
  %v758 = vsel %vm747, %v726, %v728
  %v759 = vsel %vm747, %v728, %v730
  %v760 = vsel %vm747, %v730, %v732
  %v761 = vsel %vm747, %v732, %v734
  %v762 = vsel %vm747, %v734, %v736
  %v763 = vsel %vm747, %v736, %v738
  %v764 = vsel %vm747, %v738, %v740
  %v765 = vsel %vm747, %v740, %v742
  %v766 = vsel %vm747, %v742, %v744
  %v767 = vsel %vm747, %v744, %v746
  %789 = vst [vmem:[#allocation2 + $0x1f8] sm:$0xff] %v748
  %790 = vst [vmem:[#allocation2 + $0x200] sm:$0xff] %v749
  %791 = vst [vmem:[#allocation2 + $0x208] sm:$0xff] %v750
  %792 = vst [vmem:[#allocation2 + $0x210] sm:$0xff] %v751
  %793 = vst [vmem:[#allocation2 + $0x218] sm:$0xff] %v752
  %794 = vst [vmem:[#allocation2 + $0x220] sm:$0xff] %v753
  %795 = vst [vmem:[#allocation2 + $0x228] sm:$0xff] %v754
  %796 = vst [vmem:[#allocation2 + $0x230] sm:$0xff] %v755
  %797 = vst [vmem:[#allocation2 + $0x238] sm:$0xff] %v756
  %798 = vst [vmem:[#allocation2 + $0x240] sm:$0xff] %v757
  %799 = vst [vmem:[#allocation2 + $0x248] sm:$0xff] %v758
  %800 = vst [vmem:[#allocation2 + $0x250] sm:$0xff] %v759
  %801 = vst [vmem:[#allocation2 + $0x258] sm:$0xff] %v760
  %802 = vst [vmem:[#allocation2 + $0x260] sm:$0xff] %v761
  %803 = vst [vmem:[#allocation2 + $0x268] sm:$0xff] %v762
  %804 = vst [vmem:[#allocation2 + $0x270] sm:$0xff] %v763
  %805 = vst [vmem:[#allocation2 + $0x278] sm:$0xff] %v764
  %806 = vst [vmem:[#allocation2 + $0x280] sm:$0xff] %v765
  %807 = vst [vmem:[#allocation2 + $0x288] sm:$0xff] %v766
  %808 = vst [vmem:[#allocation2 + $0x290] sm:$0xff] %v767
  %809 = vst.msk [vmem:[#allocation2 + $0x298] sm:$0xff] %vm172, %v746
  %v810 = vld [vmem:[%s0] sm:$0xff]
  %v811 = vld [vmem:[%s0 + $0x8] sm:$0xff]
  %v812 = vld [vmem:[%s0 + $0x10] sm:$0xff]
  %v813 = vld [vmem:[%s0 + $0x18] sm:$0xff]
  %v814 = vld [vmem:[%s0 + $0x20] sm:$0xff]
  %v815 = vld [vmem:[%s0 + $0x28] sm:$0xff]
  %v816 = vld [vmem:[%s0 + $0x30] sm:$0xff]
  %v817 = vld [vmem:[%s0 + $0x38] sm:$0xff]
  %v818 = vld [vmem:[%s0 + $0x40] sm:$0xff]
  %v819 = vld [vmem:[%s0 + $0x48] sm:$0xff]
  %v820 = vld [vmem:[%s0 + $0x50] sm:$0xf]
  %v821 = vld [vmem:[%s0 + $0x54] sm:$0xff]
  %v822 = vld [vmem:[%s0 + $0x5c] sm:$0xff]
  %v823 = vld [vmem:[%s0 + $0x64] sm:$0xff]
  %v824 = vld [vmem:[%s0 + $0x6c] sm:$0xff]
  %v825 = vld [vmem:[%s0 + $0x74] sm:$0xff]
  %v826 = vld [vmem:[%s0 + $0x7c] sm:$0xff]
  %v827 = vld [vmem:[%s0 + $0x84] sm:$0xff]
  %v828 = vld [vmem:[%s0 + $0x8c] sm:$0xff]
  %v829 = vld [vmem:[%s0 + $0x94] sm:$0xff]
  %v830 = vld [vmem:[%s0 + $0x9c] sm:$0xff]
  %v831 = vld [vmem:[%s0 + $0xa4] sm:$0xf]
  %v854 = vunpack.c.l.b16 %v810
  %v855 = vunpack.c.h.b16 %v810
  %v856 = vunpack.c.l.b16 %v811
  %v857 = vunpack.c.h.b16 %v811
  %v858 = vunpack.c.l.b16 %v812
  %v859 = vunpack.c.h.b16 %v812
  %v860 = vunpack.c.l.b16 %v813
  %v861 = vunpack.c.h.b16 %v813
  %v862 = vunpack.c.l.b16 %v814
  %v863 = vunpack.c.h.b16 %v814
  %v864 = vunpack.c.l.b16 %v815
  %v865 = vunpack.c.h.b16 %v815
  %v866 = vunpack.c.l.b16 %v816
  %v867 = vunpack.c.h.b16 %v816
  %v868 = vunpack.c.l.b16 %v817
  %v869 = vunpack.c.h.b16 %v817
  %v870 = vunpack.c.l.b16 %v818
  %v871 = vunpack.c.h.b16 %v818
  %v872 = vunpack.c.l.b16 %v819
  %v873 = vunpack.c.h.b16 %v819
  %v874 = vunpack.c.l.b16 %v820
  %v875 = vunpack.c.l.b16 %v821
  %v876 = vunpack.c.h.b16 %v821
  %v877 = vunpack.c.l.b16 %v822
  %v878 = vunpack.c.h.b16 %v822
  %v879 = vunpack.c.l.b16 %v823
  %v880 = vunpack.c.h.b16 %v823
  %v881 = vunpack.c.l.b16 %v824
  %v882 = vunpack.c.h.b16 %v824
  %v883 = vunpack.c.l.b16 %v825
  %v884 = vunpack.c.h.b16 %v825
  %v885 = vunpack.c.l.b16 %v826
  %v886 = vunpack.c.h.b16 %v826
  %v887 = vunpack.c.l.b16 %v827
  %v888 = vunpack.c.h.b16 %v827
  %v889 = vunpack.c.l.b16 %v828
  %v890 = vunpack.c.h.b16 %v828
  %v891 = vunpack.c.l.b16 %v829
  %v892 = vunpack.c.h.b16 %v829
  %v893 = vunpack.c.l.b16 %v830
  %v894 = vunpack.c.h.b16 %v830
  %v895 = vunpack.c.l.b16 %v831
  %v896 = vpack.c.b16 %v875, %v854
  %v897 = vpack.c.b16 %v876, %v855
  %v898 = vpack.c.b16 %v877, %v856
  %v899 = vpack.c.b16 %v878, %v857
  %v900 = vpack.c.b16 %v879, %v858
  %v901 = vpack.c.b16 %v880, %v859
  %v902 = vpack.c.b16 %v881, %v860
  %v903 = vpack.c.b16 %v882, %v861
  %v904 = vpack.c.b16 %v883, %v862
  %v905 = vpack.c.b16 %v884, %v863
  %v906 = vpack.c.b16 %v885, %v864
  %v907 = vpack.c.b16 %v886, %v865
  %v908 = vpack.c.b16 %v887, %v866
  %v909 = vpack.c.b16 %v888, %v867
  %v910 = vpack.c.b16 %v889, %v868
  %v911 = vpack.c.b16 %v890, %v869
  %v912 = vpack.c.b16 %v891, %v870
  %v913 = vpack.c.b16 %v892, %v871
  %v914 = vpack.c.b16 %v893, %v872
  %v915 = vpack.c.b16 %v894, %v873
  %v916 = vpack.c.b16 %v895, %v874
  %917 = vrot.lane.b32.xlu0 %v896, 109
  %v918 = vpop.permute.xlu0 %917
  %919 = vrot.lane.b32.xlu0 %v897, 109
  %v920 = vpop.permute.xlu0 %919
  %921 = vrot.lane.b32.xlu0 %v898, 109
  %v922 = vpop.permute.xlu0 %921
  %923 = vrot.lane.b32.xlu0 %v899, 109
  %v924 = vpop.permute.xlu0 %923
  %925 = vrot.lane.b32.xlu0 %v900, 109
  %v926 = vpop.permute.xlu0 %925
  %927 = vrot.lane.b32.xlu0 %v901, 109
  %v928 = vpop.permute.xlu0 %927
  %929 = vrot.lane.b32.xlu0 %v902, 109
  %v930 = vpop.permute.xlu0 %929
  %931 = vrot.lane.b32.xlu0 %v903, 109
  %v932 = vpop.permute.xlu0 %931
  %933 = vrot.lane.b32.xlu0 %v904, 109
  %v934 = vpop.permute.xlu0 %933
  %935 = vrot.lane.b32.xlu0 %v905, 109
  %v936 = vpop.permute.xlu0 %935
  %937 = vrot.lane.b32.xlu0 %v906, 109
  %v938 = vpop.permute.xlu0 %937
  %939 = vrot.lane.b32.xlu0 %v907, 109
  %v940 = vpop.permute.xlu0 %939
  %941 = vrot.lane.b32.xlu0 %v908, 109
  %v942 = vpop.permute.xlu0 %941
  %943 = vrot.lane.b32.xlu0 %v909, 109
  %v944 = vpop.permute.xlu0 %943
  %945 = vrot.lane.b32.xlu0 %v910, 109
  %v946 = vpop.permute.xlu0 %945
  %947 = vrot.lane.b32.xlu0 %v911, 109
  %v948 = vpop.permute.xlu0 %947
  %949 = vrot.lane.b32.xlu0 %v912, 109
  %v950 = vpop.permute.xlu0 %949
  %951 = vrot.lane.b32.xlu0 %v913, 109
  %v952 = vpop.permute.xlu0 %951
  %953 = vrot.lane.b32.xlu0 %v914, 109
  %v954 = vpop.permute.xlu0 %953
  %955 = vrot.lane.b32.xlu0 %v915, 109
  %v956 = vpop.permute.xlu0 %955
  %957 = vrot.lane.b32.xlu0 %v916, 109
  %v958 = vpop.permute.xlu0 %957
  %vm959 = vcmask 891904
  %v960 = vsel %vm959, %v918, %v920
  %v961 = vsel %vm959, %v920, %v922
  %v962 = vsel %vm959, %v922, %v924
  %v963 = vsel %vm959, %v924, %v926
  %v964 = vsel %vm959, %v926, %v928
  %v965 = vsel %vm959, %v928, %v930
  %v966 = vsel %vm959, %v930, %v932
  %v967 = vsel %vm959, %v932, %v934
  %v968 = vsel %vm959, %v934, %v936
  %v969 = vsel %vm959, %v936, %v938
  %v970 = vsel %vm959, %v938, %v940
  %v971 = vsel %vm959, %v940, %v942
  %v972 = vsel %vm959, %v942, %v944
  %v973 = vsel %vm959, %v944, %v946
  %v974 = vsel %vm959, %v946, %v948
  %v975 = vsel %vm959, %v948, %v950
  %v976 = vsel %vm959, %v950, %v952
  %v977 = vsel %vm959, %v952, %v954
  %v978 = vsel %vm959, %v954, %v956
  %v979 = vsel %vm959, %v956, %v958
  %1001 = vst [vmem:[#allocation2 + $0x2a0] sm:$0xff] %v960
  %1002 = vst [vmem:[#allocation2 + $0x2a8] sm:$0xff] %v961
  %1003 = vst [vmem:[#allocation2 + $0x2b0] sm:$0xff] %v962
  %1004 = vst [vmem:[#allocation2 + $0x2b8] sm:$0xff] %v963
  %1005 = vst [vmem:[#allocation2 + $0x2c0] sm:$0xff] %v964
  %1006 = vst [vmem:[#allocation2 + $0x2c8] sm:$0xff] %v965
  %1007 = vst [vmem:[#allocation2 + $0x2d0] sm:$0xff] %v966
  %1008 = vst [vmem:[#allocation2 + $0x2d8] sm:$0xff] %v967
  %1009 = vst [vmem:[#allocation2 + $0x2e0] sm:$0xff] %v968
  %1010 = vst [vmem:[#allocation2 + $0x2e8] sm:$0xff] %v969
  %1011 = vst [vmem:[#allocation2 + $0x2f0] sm:$0xff] %v970
  %1012 = vst [vmem:[#allocation2 + $0x2f8] sm:$0xff] %v971
  %1013 = vst [vmem:[#allocation2 + $0x300] sm:$0xff] %v972
  %1014 = vst [vmem:[#allocation2 + $0x308] sm:$0xff] %v973
  %1015 = vst [vmem:[#allocation2 + $0x310] sm:$0xff] %v974
  %1016 = vst [vmem:[#allocation2 + $0x318] sm:$0xff] %v975
  %1017 = vst [vmem:[#allocation2 + $0x320] sm:$0xff] %v976
  %1018 = vst [vmem:[#allocation2 + $0x328] sm:$0xff] %v977
  %1019 = vst [vmem:[#allocation2 + $0x330] sm:$0xff] %v978
  %1020 = vst [vmem:[#allocation2 + $0x338] sm:$0xff] %v979
  %1021 = vst.msk [vmem:[#allocation2 + $0x340] sm:$0xff] %vm172, %v958
  %v1022 = vld [vmem:[%s0] sm:$0xff]
  %v1023 = vld [vmem:[%s0 + $0x8] sm:$0xff]
  %v1024 = vld [vmem:[%s0 + $0x10] sm:$0xff]
  %v1025 = vld [vmem:[%s0 + $0x18] sm:$0xff]
  %v1026 = vld [vmem:[%s0 + $0x20] sm:$0xff]
  %v1027 = vld [vmem:[%s0 + $0x28] sm:$0xff]
  %v1028 = vld [vmem:[%s0 + $0x30] sm:$0xff]
  %v1029 = vld [vmem:[%s0 + $0x38] sm:$0xff]
  %v1030 = vld [vmem:[%s0 + $0x40] sm:$0xff]
  %v1031 = vld [vmem:[%s0 + $0x48] sm:$0xff]
  %v1032 = vld [vmem:[%s0 + $0x50] sm:$0xf]
  %v1033 = vld [vmem:[%s0 + $0x54] sm:$0xff]
  %v1034 = vld [vmem:[%s0 + $0x5c] sm:$0xff]
  %v1035 = vld [vmem:[%s0 + $0x64] sm:$0xff]
  %v1036 = vld [vmem:[%s0 + $0x6c] sm:$0xff]
  %v1037 = vld [vmem:[%s0 + $0x74] sm:$0xff]
  %v1038 = vld [vmem:[%s0 + $0x7c] sm:$0xff]
  %v1039 = vld [vmem:[%s0 + $0x84] sm:$0xff]
  %v1040 = vld [vmem:[%s0 + $0x8c] sm:$0xff]
  %v1041 = vld [vmem:[%s0 + $0x94] sm:$0xff]
  %v1042 = vld [vmem:[%s0 + $0x9c] sm:$0xff]
  %v1043 = vld [vmem:[%s0 + $0xa4] sm:$0xf]
  %v1066 = vunpack.c.l.b16 %v1022
  %v1067 = vunpack.c.h.b16 %v1022
  %v1068 = vunpack.c.l.b16 %v1023
  %v1069 = vunpack.c.h.b16 %v1023
  %v1070 = vunpack.c.l.b16 %v1024
  %v1071 = vunpack.c.h.b16 %v1024
  %v1072 = vunpack.c.l.b16 %v1025
  %v1073 = vunpack.c.h.b16 %v1025
  %v1074 = vunpack.c.l.b16 %v1026
  %v1075 = vunpack.c.h.b16 %v1026
  %v1076 = vunpack.c.l.b16 %v1027
  %v1077 = vunpack.c.h.b16 %v1027
  %v1078 = vunpack.c.l.b16 %v1028
  %v1079 = vunpack.c.h.b16 %v1028
  %v1080 = vunpack.c.l.b16 %v1029
  %v1081 = vunpack.c.h.b16 %v1029
  %v1082 = vunpack.c.l.b16 %v1030
  %v1083 = vunpack.c.h.b16 %v1030
  %v1084 = vunpack.c.l.b16 %v1031
  %v1085 = vunpack.c.h.b16 %v1031
  %v1086 = vunpack.c.l.b16 %v1032
  %v1087 = vunpack.c.l.b16 %v1033
  %v1088 = vunpack.c.h.b16 %v1033
  %v1089 = vunpack.c.l.b16 %v1034
  %v1090 = vunpack.c.h.b16 %v1034
  %v1091 = vunpack.c.l.b16 %v1035
  %v1092 = vunpack.c.h.b16 %v1035
  %v1093 = vunpack.c.l.b16 %v1036
  %v1094 = vunpack.c.h.b16 %v1036
  %v1095 = vunpack.c.l.b16 %v1037
  %v1096 = vunpack.c.h.b16 %v1037
  %v1097 = vunpack.c.l.b16 %v1038
  %v1098 = vunpack.c.h.b16 %v1038
  %v1099 = vunpack.c.l.b16 %v1039
  %v1100 = vunpack.c.h.b16 %v1039
  %v1101 = vunpack.c.l.b16 %v1040
  %v1102 = vunpack.c.h.b16 %v1040
  %v1103 = vunpack.c.l.b16 %v1041
  %v1104 = vunpack.c.h.b16 %v1041
  %v1105 = vunpack.c.l.b16 %v1042
  %v1106 = vunpack.c.h.b16 %v1042
  %v1107 = vunpack.c.l.b16 %v1043
  %v1108 = vpack.c.b16 %v1087, %v1066
  %v1109 = vpack.c.b16 %v1088, %v1067
  %v1110 = vpack.c.b16 %v1089, %v1068
  %v1111 = vpack.c.b16 %v1090, %v1069
  %v1112 = vpack.c.b16 %v1091, %v1070
  %v1113 = vpack.c.b16 %v1092, %v1071
  %v1114 = vpack.c.b16 %v1093, %v1072
  %v1115 = vpack.c.b16 %v1094, %v1073
  %v1116 = vpack.c.b16 %v1095, %v1074
  %v1117 = vpack.c.b16 %v1096, %v1075
  %v1118 = vpack.c.b16 %v1097, %v1076
  %v1119 = vpack.c.b16 %v1098, %v1077
  %v1120 = vpack.c.b16 %v1099, %v1078
  %v1121 = vpack.c.b16 %v1100, %v1079
  %v1122 = vpack.c.b16 %v1101, %v1080
  %v1123 = vpack.c.b16 %v1102, %v1081
  %v1124 = vpack.c.b16 %v1103, %v1082
  %v1125 = vpack.c.b16 %v1104, %v1083
  %v1126 = vpack.c.b16 %v1105, %v1084
  %v1127 = vpack.c.b16 %v1106, %v1085
  %v1128 = vpack.c.b16 %v1107, %v1086
  %1129 = vrot.lane.b32.xlu0 %v1108, 108
  %v1130 = vpop.permute.xlu0 %1129
  %1131 = vrot.lane.b32.xlu0 %v1109, 108
  %v1132 = vpop.permute.xlu0 %1131
  %1133 = vrot.lane.b32.xlu0 %v1110, 108
  %v1134 = vpop.permute.xlu0 %1133
  %1135 = vrot.lane.b32.xlu0 %v1111, 108
  %v1136 = vpop.permute.xlu0 %1135
  %1137 = vrot.lane.b32.xlu0 %v1112, 108
  %v1138 = vpop.permute.xlu0 %1137
  %1139 = vrot.lane.b32.xlu0 %v1113, 108
  %v1140 = vpop.permute.xlu0 %1139
  %1141 = vrot.lane.b32.xlu0 %v1114, 108
  %v1142 = vpop.permute.xlu0 %1141
  %1143 = vrot.lane.b32.xlu0 %v1115, 108
  %v1144 = vpop.permute.xlu0 %1143
  %1145 = vrot.lane.b32.xlu0 %v1116, 108
  %v1146 = vpop.permute.xlu0 %1145
  %1147 = vrot.lane.b32.xlu0 %v1117, 108
  %v1148 = vpop.permute.xlu0 %1147
  %1149 = vrot.lane.b32.xlu0 %v1118, 108
  %v1150 = vpop.permute.xlu0 %1149
  %1151 = vrot.lane.b32.xlu0 %v1119, 108
  %v1152 = vpop.permute.xlu0 %1151
  %1153 = vrot.lane.b32.xlu0 %v1120, 108
  %v1154 = vpop.permute.xlu0 %1153
  %1155 = vrot.lane.b32.xlu0 %v1121, 108
  %v1156 = vpop.permute.xlu0 %1155
  %1157 = vrot.lane.b32.xlu0 %v1122, 108
  %v1158 = vpop.permute.xlu0 %1157
  %1159 = vrot.lane.b32.xlu0 %v1123, 108
  %v1160 = vpop.permute.xlu0 %1159
  %1161 = vrot.lane.b32.xlu0 %v1124, 108
  %v1162 = vpop.permute.xlu0 %1161
  %1163 = vrot.lane.b32.xlu0 %v1125, 108
  %v1164 = vpop.permute.xlu0 %1163
  %1165 = vrot.lane.b32.xlu0 %v1126, 108
  %v1166 = vpop.permute.xlu0 %1165
  %1167 = vrot.lane.b32.xlu0 %v1127, 108
  %v1168 = vpop.permute.xlu0 %1167
  %1169 = vrot.lane.b32.xlu0 %v1128, 108
  %v1170 = vpop.permute.xlu0 %1169
  %vm1171 = vcmask 883712
  %v1172 = vsel %vm1171, %v1130, %v1132
  %v1173 = vsel %vm1171, %v1132, %v1134
  %v1174 = vsel %vm1171, %v1134, %v1136
  %v1175 = vsel %vm1171, %v1136, %v1138
  %v1176 = vsel %vm1171, %v1138, %v1140
  %v1177 = vsel %vm1171, %v1140, %v1142
  %v1178 = vsel %vm1171, %v1142, %v1144
  %v1179 = vsel %vm1171, %v1144, %v1146
  %v1180 = vsel %vm1171, %v1146, %v1148
  %v1181 = vsel %vm1171, %v1148, %v1150
  %v1182 = vsel %vm1171, %v1150, %v1152
  %v1183 = vsel %vm1171, %v1152, %v1154
  %v1184 = vsel %vm1171, %v1154, %v1156
  %v1185 = vsel %vm1171, %v1156, %v1158
  %v1186 = vsel %vm1171, %v1158, %v1160
  %v1187 = vsel %vm1171, %v1160, %v1162
  %v1188 = vsel %vm1171, %v1162, %v1164
  %v1189 = vsel %vm1171, %v1164, %v1166
  %v1190 = vsel %vm1171, %v1166, %v1168
  %v1191 = vsel %vm1171, %v1168, %v1170
  %1213 = vst [vmem:[#allocation2 + $0x348] sm:$0xff] %v1172
  %1214 = vst [vmem:[#allocation2 + $0x350] sm:$0xff] %v1173
  %1215 = vst [vmem:[#allocation2 + $0x358] sm:$0xff] %v1174
  %1216 = vst [vmem:[#allocation2 + $0x360] sm:$0xff] %v1175
  %1217 = vst [vmem:[#allocation2 + $0x368] sm:$0xff] %v1176
  %1218 = vst [vmem:[#allocation2 + $0x370] sm:$0xff] %v1177
  %1219 = vst [vmem:[#allocation2 + $0x378] sm:$0xff] %v1178
  %1220 = vst [vmem:[#allocation2 + $0x380] sm:$0xff] %v1179
  %1221 = vst [vmem:[#allocation2 + $0x388] sm:$0xff] %v1180
  %1222 = vst [vmem:[#allocation2 + $0x390] sm:$0xff] %v1181
  %1223 = vst [vmem:[#allocation2 + $0x398] sm:$0xff] %v1182
  %1224 = vst [vmem:[#allocation2 + $0x3a0] sm:$0xff] %v1183
  %1225 = vst [vmem:[#allocation2 + $0x3a8] sm:$0xff] %v1184
  %1226 = vst [vmem:[#allocation2 + $0x3b0] sm:$0xff] %v1185
  %1227 = vst [vmem:[#allocation2 + $0x3b8] sm:$0xff] %v1186
  %1228 = vst [vmem:[#allocation2 + $0x3c0] sm:$0xff] %v1187
  %1229 = vst [vmem:[#allocation2 + $0x3c8] sm:$0xff] %v1188
  %1230 = vst [vmem:[#allocation2 + $0x3d0] sm:$0xff] %v1189
  %1231 = vst [vmem:[#allocation2 + $0x3d8] sm:$0xff] %v1190
  %1232 = vst [vmem:[#allocation2 + $0x3e0] sm:$0xff] %v1191
  %1233 = vst.msk [vmem:[#allocation2 + $0x3e8] sm:$0xff] %vm172, %v1170
  %v1234 = vld [vmem:[%s0] sm:$0xff]
  %v1235 = vld [vmem:[%s0 + $0x8] sm:$0xff]
  %v1236 = vld [vmem:[%s0 + $0x10] sm:$0xff]
  %v1237 = vld [vmem:[%s0 + $0x18] sm:$0xff]
  %v1238 = vld [vmem:[%s0 + $0x20] sm:$0xff]
  %v1239 = vld [vmem:[%s0 + $0x28] sm:$0xff]
  %v1240 = vld [vmem:[%s0 + $0x30] sm:$0xff]
  %v1241 = vld [vmem:[%s0 + $0x38] sm:$0xff]
  %v1242 = vld [vmem:[%s0 + $0x40] sm:$0xff]
  %v1243 = vld [vmem:[%s0 + $0x48] sm:$0xff]
  %v1244 = vld [vmem:[%s0 + $0x50] sm:$0xf]
  %v1245 = vld [vmem:[%s0 + $0x54] sm:$0xff]
  %v1246 = vld [vmem:[%s0 + $0x5c] sm:$0xff]
  %v1247 = vld [vmem:[%s0 + $0x64] sm:$0xff]
  %v1248 = vld [vmem:[%s0 + $0x6c] sm:$0xff]
  %v1249 = vld [vmem:[%s0 + $0x74] sm:$0xff]
  %v1250 = vld [vmem:[%s0 + $0x7c] sm:$0xff]
  %v1251 = vld [vmem:[%s0 + $0x84] sm:$0xff]
  %v1252 = vld [vmem:[%s0 + $0x8c] sm:$0xff]
  %v1253 = vld [vmem:[%s0 + $0x94] sm:$0xff]
  %v1254 = vld [vmem:[%s0 + $0x9c] sm:$0xff]
  %v1255 = vld [vmem:[%s0 + $0xa4] sm:$0xf]
  %v1278 = vunpack.c.l.b16 %v1234
  %v1279 = vunpack.c.h.b16 %v1234
  %v1280 = vunpack.c.l.b16 %v1235
  %v1281 = vunpack.c.h.b16 %v1235
  %v1282 = vunpack.c.l.b16 %v1236
  %v1283 = vunpack.c.h.b16 %v1236
  %v1284 = vunpack.c.l.b16 %v1237
  %v1285 = vunpack.c.h.b16 %v1237
  %v1286 = vunpack.c.l.b16 %v1238
  %v1287 = vunpack.c.h.b16 %v1238
  %v1288 = vunpack.c.l.b16 %v1239
  %v1289 = vunpack.c.h.b16 %v1239
  %v1290 = vunpack.c.l.b16 %v1240
  %v1291 = vunpack.c.h.b16 %v1240
  %v1292 = vunpack.c.l.b16 %v1241
  %v1293 = vunpack.c.h.b16 %v1241
  %v1294 = vunpack.c.l.b16 %v1242
  %v1295 = vunpack.c.h.b16 %v1242
  %v1296 = vunpack.c.l.b16 %v1243
  %v1297 = vunpack.c.h.b16 %v1243
  %v1298 = vunpack.c.l.b16 %v1244
  %v1299 = vunpack.c.l.b16 %v1245
  %v1300 = vunpack.c.h.b16 %v1245
  %v1301 = vunpack.c.l.b16 %v1246
  %v1302 = vunpack.c.h.b16 %v1246
  %v1303 = vunpack.c.l.b16 %v1247
  %v1304 = vunpack.c.h.b16 %v1247
  %v1305 = vunpack.c.l.b16 %v1248
  %v1306 = vunpack.c.h.b16 %v1248
  %v1307 = vunpack.c.l.b16 %v1249
  %v1308 = vunpack.c.h.b16 %v1249
  %v1309 = vunpack.c.l.b16 %v1250
  %v1310 = vunpack.c.h.b16 %v1250
  %v1311 = vunpack.c.l.b16 %v1251
  %v1312 = vunpack.c.h.b16 %v1251
  %v1313 = vunpack.c.l.b16 %v1252
  %v1314 = vunpack.c.h.b16 %v1252
  %v1315 = vunpack.c.l.b16 %v1253
  %v1316 = vunpack.c.h.b16 %v1253
  %v1317 = vunpack.c.l.b16 %v1254
  %v1318 = vunpack.c.h.b16 %v1254
  %v1319 = vunpack.c.l.b16 %v1255
  %v1320 = vpack.c.b16 %v1299, %v1278
  %v1321 = vpack.c.b16 %v1300, %v1279
  %v1322 = vpack.c.b16 %v1301, %v1280
  %v1323 = vpack.c.b16 %v1302, %v1281
  %v1324 = vpack.c.b16 %v1303, %v1282
  %v1325 = vpack.c.b16 %v1304, %v1283
  %v1326 = vpack.c.b16 %v1305, %v1284
  %v1327 = vpack.c.b16 %v1306, %v1285
  %v1328 = vpack.c.b16 %v1307, %v1286
  %v1329 = vpack.c.b16 %v1308, %v1287
  %v1330 = vpack.c.b16 %v1309, %v1288
  %v1331 = vpack.c.b16 %v1310, %v1289
  %v1332 = vpack.c.b16 %v1311, %v1290
  %v1333 = vpack.c.b16 %v1312, %v1291
  %v1334 = vpack.c.b16 %v1313, %v1292
  %v1335 = vpack.c.b16 %v1314, %v1293
  %v1336 = vpack.c.b16 %v1315, %v1294
  %v1337 = vpack.c.b16 %v1316, %v1295
  %v1338 = vpack.c.b16 %v1317, %v1296
  %v1339 = vpack.c.b16 %v1318, %v1297
  %v1340 = vpack.c.b16 %v1319, %v1298
  %1341 = vrot.lane.b32.xlu0 %v1320, 92
  %v1342 = vpop.permute.xlu0 %1341
  %1343 = vrot.lane.b32.xlu0 %v1321, 92
  %v1344 = vpop.permute.xlu0 %1343
  %1345 = vrot.lane.b32.xlu0 %v1322, 92
  %v1346 = vpop.permute.xlu0 %1345
  %1347 = vrot.lane.b32.xlu0 %v1323, 92
  %v1348 = vpop.permute.xlu0 %1347
  %1349 = vrot.lane.b32.xlu0 %v1324, 92
  %v1350 = vpop.permute.xlu0 %1349
  %1351 = vrot.lane.b32.xlu0 %v1325, 92
  %v1352 = vpop.permute.xlu0 %1351
  %1353 = vrot.lane.b32.xlu0 %v1326, 92
  %v1354 = vpop.permute.xlu0 %1353
  %1355 = vrot.lane.b32.xlu0 %v1327, 92
  %v1356 = vpop.permute.xlu0 %1355
  %1357 = vrot.lane.b32.xlu0 %v1328, 92
  %v1358 = vpop.permute.xlu0 %1357
  %1359 = vrot.lane.b32.xlu0 %v1329, 92
  %v1360 = vpop.permute.xlu0 %1359
  %1361 = vrot.lane.b32.xlu0 %v1330, 92
  %v1362 = vpop.permute.xlu0 %1361
  %1363 = vrot.lane.b32.xlu0 %v1331, 92
  %v1364 = vpop.permute.xlu0 %1363
  %1365 = vrot.lane.b32.xlu0 %v1332, 92
  %v1366 = vpop.permute.xlu0 %1365
  %1367 = vrot.lane.b32.xlu0 %v1333, 92
  %v1368 = vpop.permute.xlu0 %1367
  %1369 = vrot.lane.b32.xlu0 %v1334, 92
  %v1370 = vpop.permute.xlu0 %1369
  %1371 = vrot.lane.b32.xlu0 %v1335, 92
  %v1372 = vpop.permute.xlu0 %1371
  %1373 = vrot.lane.b32.xlu0 %v1336, 92
  %v1374 = vpop.permute.xlu0 %1373
  %1375 = vrot.lane.b32.xlu0 %v1337, 92
  %v1376 = vpop.permute.xlu0 %1375
  %1377 = vrot.lane.b32.xlu0 %v1338, 92
  %v1378 = vpop.permute.xlu0 %1377
  %1379 = vrot.lane.b32.xlu0 %v1339, 92
  %v1380 = vpop.permute.xlu0 %1379
  %1381 = vrot.lane.b32.xlu0 %v1340, 92
  %v1382 = vpop.permute.xlu0 %1381
  %vm1383 = vcmask 752640
  %v1384 = vsel %vm1383, %v1342, %v1344
  %v1385 = vsel %vm1383, %v1344, %v1346
  %v1386 = vsel %vm1383, %v1346, %v1348
  %v1387 = vsel %vm1383, %v1348, %v1350
  %v1388 = vsel %vm1383, %v1350, %v1352
  %v1389 = vsel %vm1383, %v1352, %v1354
  %v1390 = vsel %vm1383, %v1354, %v1356
  %v1391 = vsel %vm1383, %v1356, %v1358
  %v1392 = vsel %vm1383, %v1358, %v1360
  %v1393 = vsel %vm1383, %v1360, %v1362
  %v1394 = vsel %vm1383, %v1362, %v1364
  %v1395 = vsel %vm1383, %v1364, %v1366
  %v1396 = vsel %vm1383, %v1366, %v1368
  %v1397 = vsel %vm1383, %v1368, %v1370
  %v1398 = vsel %vm1383, %v1370, %v1372
  %v1399 = vsel %vm1383, %v1372, %v1374
  %v1400 = vsel %vm1383, %v1374, %v1376
  %v1401 = vsel %vm1383, %v1376, %v1378
  %v1402 = vsel %vm1383, %v1378, %v1380
  %v1403 = vsel %vm1383, %v1380, %v1382
  %1425 = vst [vmem:[#allocation2 + $0x3f0] sm:$0xff] %v1384
  %1426 = vst [vmem:[#allocation2 + $0x3f8] sm:$0xff] %v1385
  %1427 = vst [vmem:[#allocation2 + $0x400] sm:$0xff] %v1386
  %1428 = vst [vmem:[#allocation2 + $0x408] sm:$0xff] %v1387
  %1429 = vst [vmem:[#allocation2 + $0x410] sm:$0xff] %v1388
  %1430 = vst [vmem:[#allocation2 + $0x418] sm:$0xff] %v1389
  %1431 = vst [vmem:[#allocation2 + $0x420] sm:$0xff] %v1390
  %1432 = vst [vmem:[#allocation2 + $0x428] sm:$0xff] %v1391
  %1433 = vst [vmem:[#allocation2 + $0x430] sm:$0xff] %v1392
  %1434 = vst [vmem:[#allocation2 + $0x438] sm:$0xff] %v1393
  %1435 = vst [vmem:[#allocation2 + $0x440] sm:$0xff] %v1394
  %1436 = vst [vmem:[#allocation2 + $0x448] sm:$0xff] %v1395
  %1437 = vst [vmem:[#allocation2 + $0x450] sm:$0xff] %v1396
  %1438 = vst [vmem:[#allocation2 + $0x458] sm:$0xff] %v1397
  %1439 = vst [vmem:[#allocation2 + $0x460] sm:$0xff] %v1398
  %1440 = vst [vmem:[#allocation2 + $0x468] sm:$0xff] %v1399
  %1441 = vst [vmem:[#allocation2 + $0x470] sm:$0xff] %v1400
  %1442 = vst [vmem:[#allocation2 + $0x478] sm:$0xff] %v1401
  %1443 = vst [vmem:[#allocation2 + $0x480] sm:$0xff] %v1402
  %1444 = vst [vmem:[#allocation2 + $0x488] sm:$0xff] %v1403
  %1445 = vst.msk [vmem:[#allocation2 + $0x490] sm:$0xff] %vm172, %v1382
  %v1446 = vld [vmem:[%s0] sm:$0xff]
  %v1447 = vld [vmem:[%s0 + $0x8] sm:$0xff]
  %v1448 = vld [vmem:[%s0 + $0x10] sm:$0xff]
  %v1449 = vld [vmem:[%s0 + $0x18] sm:$0xff]
  %v1450 = vld [vmem:[%s0 + $0x20] sm:$0xff]
  %v1451 = vld [vmem:[%s0 + $0x28] sm:$0xff]
  %v1452 = vld [vmem:[%s0 + $0x30] sm:$0xff]
  %v1453 = vld [vmem:[%s0 + $0x38] sm:$0xff]
  %v1454 = vld [vmem:[%s0 + $0x40] sm:$0xff]
  %v1455 = vld [vmem:[%s0 + $0x48] sm:$0xff]
  %v1456 = vld [vmem:[%s0 + $0x50] sm:$0xf]
  %v1457 = vld [vmem:[%s0 + $0x54] sm:$0xff]
  %v1458 = vld [vmem:[%s0 + $0x5c] sm:$0xff]
  %v1459 = vld [vmem:[%s0 + $0x64] sm:$0xff]
  %v1460 = vld [vmem:[%s0 + $0x6c] sm:$0xff]
  %v1461 = vld [vmem:[%s0 + $0x74] sm:$0xff]
  %v1462 = vld [vmem:[%s0 + $0x7c] sm:$0xff]
  %v1463 = vld [vmem:[%s0 + $0x84] sm:$0xff]
  %v1464 = vld [vmem:[%s0 + $0x8c] sm:$0xff]
  %v1465 = vld [vmem:[%s0 + $0x94] sm:$0xff]
  %v1466 = vld [vmem:[%s0 + $0x9c] sm:$0xff]
  %v1467 = vld [vmem:[%s0 + $0xa4] sm:$0xf]
  %v1490 = vunpack.c.l.b16 %v1446
  %v1491 = vunpack.c.h.b16 %v1446
  %v1492 = vunpack.c.l.b16 %v1447
  %v1493 = vunpack.c.h.b16 %v1447
  %v1494 = vunpack.c.l.b16 %v1448
  %v1495 = vunpack.c.h.b16 %v1448
  %v1496 = vunpack.c.l.b16 %v1449
  %v1497 = vunpack.c.h.b16 %v1449
  %v1498 = vunpack.c.l.b16 %v1450
  %v1499 = vunpack.c.h.b16 %v1450
  %v1500 = vunpack.c.l.b16 %v1451
  %v1501 = vunpack.c.h.b16 %v1451
  %v1502 = vunpack.c.l.b16 %v1452
  %v1503 = vunpack.c.h.b16 %v1452
  %v1504 = vunpack.c.l.b16 %v1453
  %v1505 = vunpack.c.h.b16 %v1453
  %v1506 = vunpack.c.l.b16 %v1454
  %v1507 = vunpack.c.h.b16 %v1454
  %v1508 = vunpack.c.l.b16 %v1455
  %v1509 = vunpack.c.h.b16 %v1455
  %v1510 = vunpack.c.l.b16 %v1456
  %v1511 = vunpack.c.l.b16 %v1457
  %v1512 = vunpack.c.h.b16 %v1457
  %v1513 = vunpack.c.l.b16 %v1458
  %v1514 = vunpack.c.h.b16 %v1458
  %v1515 = vunpack.c.l.b16 %v1459
  %v1516 = vunpack.c.h.b16 %v1459
  %v1517 = vunpack.c.l.b16 %v1460
  %v1518 = vunpack.c.h.b16 %v1460
  %v1519 = vunpack.c.l.b16 %v1461
  %v1520 = vunpack.c.h.b16 %v1461
  %v1521 = vunpack.c.l.b16 %v1462
  %v1522 = vunpack.c.h.b16 %v1462
  %v1523 = vunpack.c.l.b16 %v1463
  %v1524 = vunpack.c.h.b16 %v1463
  %v1525 = vunpack.c.l.b16 %v1464
  %v1526 = vunpack.c.h.b16 %v1464
  %v1527 = vunpack.c.l.b16 %v1465
  %v1528 = vunpack.c.h.b16 %v1465
  %v1529 = vunpack.c.l.b16 %v1466
  %v1530 = vunpack.c.h.b16 %v1466
  %v1531 = vunpack.c.l.b16 %v1467
  %v1532 = vpack.c.b16 %v1511, %v1490
  %v1533 = vpack.c.b16 %v1512, %v1491
  %v1534 = vpack.c.b16 %v1513, %v1492
  %v1535 = vpack.c.b16 %v1514, %v1493
  %v1536 = vpack.c.b16 %v1515, %v1494
  %v1537 = vpack.c.b16 %v1516, %v1495
  %v1538 = vpack.c.b16 %v1517, %v1496
  %v1539 = vpack.c.b16 %v1518, %v1497
  %v1540 = vpack.c.b16 %v1519, %v1498
  %v1541 = vpack.c.b16 %v1520, %v1499
  %v1542 = vpack.c.b16 %v1521, %v1500
  %v1543 = vpack.c.b16 %v1522, %v1501
  %v1544 = vpack.c.b16 %v1523, %v1502
  %v1545 = vpack.c.b16 %v1524, %v1503
  %v1546 = vpack.c.b16 %v1525, %v1504
  %v1547 = vpack.c.b16 %v1526, %v1505
  %v1548 = vpack.c.b16 %v1527, %v1506
  %v1549 = vpack.c.b16 %v1528, %v1507
  %v1550 = vpack.c.b16 %v1529, %v1508
  %v1551 = vpack.c.b16 %v1530, %v1509
  %v1552 = vpack.c.b16 %v1531, %v1510
  %1553 = vrot.lane.b32.xlu0 %v1532, 91
  %v1554 = vpop.permute.xlu0 %1553
  %1555 = vrot.lane.b32.xlu0 %v1533, 91
  %v1556 = vpop.permute.xlu0 %1555
  %1557 = vrot.lane.b32.xlu0 %v1534, 91
  %v1558 = vpop.permute.xlu0 %1557
  %1559 = vrot.lane.b32.xlu0 %v1535, 91
  %v1560 = vpop.permute.xlu0 %1559
  %1561 = vrot.lane.b32.xlu0 %v1536, 91
  %v1562 = vpop.permute.xlu0 %1561
  %1563 = vrot.lane.b32.xlu0 %v1537, 91
  %v1564 = vpop.permute.xlu0 %1563
  %1565 = vrot.lane.b32.xlu0 %v1538, 91
  %v1566 = vpop.permute.xlu0 %1565
  %1567 = vrot.lane.b32.xlu0 %v1539, 91
  %v1568 = vpop.permute.xlu0 %1567
  %1569 = vrot.lane.b32.xlu0 %v1540, 91
  %v1570 = vpop.permute.xlu0 %1569
  %1571 = vrot.lane.b32.xlu0 %v1541, 91
  %v1572 = vpop.permute.xlu0 %1571
  %1573 = vrot.lane.b32.xlu0 %v1542, 91
  %v1574 = vpop.permute.xlu0 %1573
  %1575 = vrot.lane.b32.xlu0 %v1543, 91
  %v1576 = vpop.permute.xlu0 %1575
  %1577 = vrot.lane.b32.xlu0 %v1544, 91
  %v1578 = vpop.permute.xlu0 %1577
  %1579 = vrot.lane.b32.xlu0 %v1545, 91
  %v1580 = vpop.permute.xlu0 %1579
  %1581 = vrot.lane.b32.xlu0 %v1546, 91
  %v1582 = vpop.permute.xlu0 %1581
  %1583 = vrot.lane.b32.xlu0 %v1547, 91
  %v1584 = vpop.permute.xlu0 %1583
  %1585 = vrot.lane.b32.xlu0 %v1548, 91
  %v1586 = vpop.permute.xlu0 %1585
  %1587 = vrot.lane.b32.xlu0 %v1549, 91
  %v1588 = vpop.permute.xlu0 %1587
  %1589 = vrot.lane.b32.xlu0 %v1550, 91
  %v1590 = vpop.permute.xlu0 %1589
  %1591 = vrot.lane.b32.xlu0 %v1551, 91
  %v1592 = vpop.permute.xlu0 %1591
  %1593 = vrot.lane.b32.xlu0 %v1552, 91
  %v1594 = vpop.permute.xlu0 %1593
  %vm1595 = vcmask 744448
  %v1596 = vsel %vm1595, %v1554, %v1556
  %v1597 = vsel %vm1595, %v1556, %v1558
  %v1598 = vsel %vm1595, %v1558, %v1560
  %v1599 = vsel %vm1595, %v1560, %v1562
  %v1600 = vsel %vm1595, %v1562, %v1564
  %v1601 = vsel %vm1595, %v1564, %v1566
  %v1602 = vsel %vm1595, %v1566, %v1568
  %v1603 = vsel %vm1595, %v1568, %v1570
  %v1604 = vsel %vm1595, %v1570, %v1572
  %v1605 = vsel %vm1595, %v1572, %v1574
  %v1606 = vsel %vm1595, %v1574, %v1576
  %v1607 = vsel %vm1595, %v1576, %v1578
  %v1608 = vsel %vm1595, %v1578, %v1580
  %v1609 = vsel %vm1595, %v1580, %v1582
  %v1610 = vsel %vm1595, %v1582, %v1584
  %v1611 = vsel %vm1595, %v1584, %v1586
  %v1612 = vsel %vm1595, %v1586, %v1588
  %v1613 = vsel %vm1595, %v1588, %v1590
  %v1614 = vsel %vm1595, %v1590, %v1592
  %v1615 = vsel %vm1595, %v1592, %v1594
  %1637 = vst [vmem:[#allocation2 + $0x498] sm:$0xff] %v1596
  %1638 = vst [vmem:[#allocation2 + $0x4a0] sm:$0xff] %v1597
  %1639 = vst [vmem:[#allocation2 + $0x4a8] sm:$0xff] %v1598
  %1640 = vst [vmem:[#allocation2 + $0x4b0] sm:$0xff] %v1599
  %1641 = vst [vmem:[#allocation2 + $0x4b8] sm:$0xff] %v1600
  %1642 = vst [vmem:[#allocation2 + $0x4c0] sm:$0xff] %v1601
  %1643 = vst [vmem:[#allocation2 + $0x4c8] sm:$0xff] %v1602
  %1644 = vst [vmem:[#allocation2 + $0x4d0] sm:$0xff] %v1603
  %1645 = vst [vmem:[#allocation2 + $0x4d8] sm:$0xff] %v1604
  %1646 = vst [vmem:[#allocation2 + $0x4e0] sm:$0xff] %v1605
  %1647 = vst [vmem:[#allocation2 + $0x4e8] sm:$0xff] %v1606
  %1648 = vst [vmem:[#allocation2 + $0x4f0] sm:$0xff] %v1607
  %1649 = vst [vmem:[#allocation2 + $0x4f8] sm:$0xff] %v1608
  %1650 = vst [vmem:[#allocation2 + $0x500] sm:$0xff] %v1609
  %1651 = vst [vmem:[#allocation2 + $0x508] sm:$0xff] %v1610
  %1652 = vst [vmem:[#allocation2 + $0x510] sm:$0xff] %v1611
  %1653 = vst [vmem:[#allocation2 + $0x518] sm:$0xff] %v1612
  %1654 = vst [vmem:[#allocation2 + $0x520] sm:$0xff] %v1613
  %1655 = vst [vmem:[#allocation2 + $0x528] sm:$0xff] %v1614
  %1656 = vst [vmem:[#allocation2 + $0x530] sm:$0xff] %v1615
  %1657 = vst.msk [vmem:[#allocation2 + $0x538] sm:$0xff] %vm172, %v1594
  %v1658 = vld [vmem:[%s0] sm:$0xff]
  %v1659 = vld [vmem:[%s0 + $0x8] sm:$0xff]
  %v1660 = vld [vmem:[%s0 + $0x10] sm:$0xff]
  %v1661 = vld [vmem:[%s0 + $0x18] sm:$0xff]
  %v1662 = vld [vmem:[%s0 + $0x20] sm:$0xff]
  %v1663 = vld [vmem:[%s0 + $0x28] sm:$0xff]
  %v1664 = vld [vmem:[%s0 + $0x30] sm:$0xff]
  %v1665 = vld [vmem:[%s0 + $0x38] sm:$0xff]
  %v1666 = vld [vmem:[%s0 + $0x40] sm:$0xff]
  %v1667 = vld [vmem:[%s0 + $0x48] sm:$0xff]
  %v1668 = vld [vmem:[%s0 + $0x50] sm:$0xf]
  %v1669 = vld [vmem:[%s0 + $0x54] sm:$0xff]
  %v1670 = vld [vmem:[%s0 + $0x5c] sm:$0xff]
  %v1671 = vld [vmem:[%s0 + $0x64] sm:$0xff]
  %v1672 = vld [vmem:[%s0 + $0x6c] sm:$0xff]
  %v1673 = vld [vmem:[%s0 + $0x74] sm:$0xff]
  %v1674 = vld [vmem:[%s0 + $0x7c] sm:$0xff]
  %v1675 = vld [vmem:[%s0 + $0x84] sm:$0xff]
  %v1676 = vld [vmem:[%s0 + $0x8c] sm:$0xff]
  %v1677 = vld [vmem:[%s0 + $0x94] sm:$0xff]
  %v1678 = vld [vmem:[%s0 + $0x9c] sm:$0xff]
  %v1679 = vld [vmem:[%s0 + $0xa4] sm:$0xf]
  %v1702 = vunpack.c.l.b16 %v1658
  %v1703 = vunpack.c.h.b16 %v1658
  %v1704 = vunpack.c.l.b16 %v1659
  %v1705 = vunpack.c.h.b16 %v1659
  %v1706 = vunpack.c.l.b16 %v1660
  %v1707 = vunpack.c.h.b16 %v1660
  %v1708 = vunpack.c.l.b16 %v1661
  %v1709 = vunpack.c.h.b16 %v1661
  %v1710 = vunpack.c.l.b16 %v1662
  %v1711 = vunpack.c.h.b16 %v1662
  %v1712 = vunpack.c.l.b16 %v1663
  %v1713 = vunpack.c.h.b16 %v1663
  %v1714 = vunpack.c.l.b16 %v1664
  %v1715 = vunpack.c.h.b16 %v1664
  %v1716 = vunpack.c.l.b16 %v1665
  %v1717 = vunpack.c.h.b16 %v1665
  %v1718 = vunpack.c.l.b16 %v1666
  %v1719 = vunpack.c.h.b16 %v1666
  %v1720 = vunpack.c.l.b16 %v1667
  %v1721 = vunpack.c.h.b16 %v1667
  %v1722 = vunpack.c.l.b16 %v1668
  %v1723 = vunpack.c.l.b16 %v1669
  %v1724 = vunpack.c.h.b16 %v1669
  %v1725 = vunpack.c.l.b16 %v1670
  %v1726 = vunpack.c.h.b16 %v1670
  %v1727 = vunpack.c.l.b16 %v1671
  %v1728 = vunpack.c.h.b16 %v1671
  %v1729 = vunpack.c.l.b16 %v1672
  %v1730 = vunpack.c.h.b16 %v1672
  %v1731 = vunpack.c.l.b16 %v1673
  %v1732 = vunpack.c.h.b16 %v1673
  %v1733 = vunpack.c.l.b16 %v1674
  %v1734 = vunpack.c.h.b16 %v1674
  %v1735 = vunpack.c.l.b16 %v1675
  %v1736 = vunpack.c.h.b16 %v1675
  %v1737 = vunpack.c.l.b16 %v1676
  %v1738 = vunpack.c.h.b16 %v1676
  %v1739 = vunpack.c.l.b16 %v1677
  %v1740 = vunpack.c.h.b16 %v1677
  %v1741 = vunpack.c.l.b16 %v1678
  %v1742 = vunpack.c.h.b16 %v1678
  %v1743 = vunpack.c.l.b16 %v1679
  %v1744 = vpack.c.b16 %v1723, %v1702
  %v1745 = vpack.c.b16 %v1724, %v1703
  %v1746 = vpack.c.b16 %v1725, %v1704
  %v1747 = vpack.c.b16 %v1726, %v1705
  %v1748 = vpack.c.b16 %v1727, %v1706
  %v1749 = vpack.c.b16 %v1728, %v1707
  %v1750 = vpack.c.b16 %v1729, %v1708
  %v1751 = vpack.c.b16 %v1730, %v1709
  %v1752 = vpack.c.b16 %v1731, %v1710
  %v1753 = vpack.c.b16 %v1732, %v1711
  %v1754 = vpack.c.b16 %v1733, %v1712
  %v1755 = vpack.c.b16 %v1734, %v1713
  %v1756 = vpack.c.b16 %v1735, %v1714
  %v1757 = vpack.c.b16 %v1736, %v1715
  %v1758 = vpack.c.b16 %v1737, %v1716
  %v1759 = vpack.c.b16 %v1738, %v1717
  %v1760 = vpack.c.b16 %v1739, %v1718
  %v1761 = vpack.c.b16 %v1740, %v1719
  %v1762 = vpack.c.b16 %v1741, %v1720
  %v1763 = vpack.c.b16 %v1742, %v1721
  %v1764 = vpack.c.b16 %v1743, %v1722
  %1765 = vrot.lane.b32.xlu0 %v1744, 90
  %v1766 = vpop.permute.xlu0 %1765
  %1767 = vrot.lane.b32.xlu0 %v1745, 90
  %v1768 = vpop.permute.xlu0 %1767
  %1769 = vrot.lane.b32.xlu0 %v1746, 90
  %v1770 = vpop.permute.xlu0 %1769
  %1771 = vrot.lane.b32.xlu0 %v1747, 90
  %v1772 = vpop.permute.xlu0 %1771
  %1773 = vrot.lane.b32.xlu0 %v1748, 90
  %v1774 = vpop.permute.xlu0 %1773
  %1775 = vrot.lane.b32.xlu0 %v1749, 90
  %v1776 = vpop.permute.xlu0 %1775
  %1777 = vrot.lane.b32.xlu0 %v1750, 90
  %v1778 = vpop.permute.xlu0 %1777
  %1779 = vrot.lane.b32.xlu0 %v1751, 90
  %v1780 = vpop.permute.xlu0 %1779
  %1781 = vrot.lane.b32.xlu0 %v1752, 90
  %v1782 = vpop.permute.xlu0 %1781
  %1783 = vrot.lane.b32.xlu0 %v1753, 90
  %v1784 = vpop.permute.xlu0 %1783
  %1785 = vrot.lane.b32.xlu0 %v1754, 90
  %v1786 = vpop.permute.xlu0 %1785
  %1787 = vrot.lane.b32.xlu0 %v1755, 90
  %v1788 = vpop.permute.xlu0 %1787
  %1789 = vrot.lane.b32.xlu0 %v1756, 90
  %v1790 = vpop.permute.xlu0 %1789
  %1791 = vrot.lane.b32.xlu0 %v1757, 90
  %v1792 = vpop.permute.xlu0 %1791
  %1793 = vrot.lane.b32.xlu0 %v1758, 90
  %v1794 = vpop.permute.xlu0 %1793
  %1795 = vrot.lane.b32.xlu0 %v1759, 90
  %v1796 = vpop.permute.xlu0 %1795
  %1797 = vrot.lane.b32.xlu0 %v1760, 90
  %v1798 = vpop.permute.xlu0 %1797
  %1799 = vrot.lane.b32.xlu0 %v1761, 90
  %v1800 = vpop.permute.xlu0 %1799
  %1801 = vrot.lane.b32.xlu0 %v1762, 90
  %v1802 = vpop.permute.xlu0 %1801
  %1803 = vrot.lane.b32.xlu0 %v1763, 90
  %v1804 = vpop.permute.xlu0 %1803
  %1805 = vrot.lane.b32.xlu0 %v1764, 90
  %v1806 = vpop.permute.xlu0 %1805
  %vm1807 = vcmask 736256
  %v1808 = vsel %vm1807, %v1766, %v1768
  %v1809 = vsel %vm1807, %v1768, %v1770
  %v1810 = vsel %vm1807, %v1770, %v1772
  %v1811 = vsel %vm1807, %v1772, %v1774
  %v1812 = vsel %vm1807, %v1774, %v1776
  %v1813 = vsel %vm1807, %v1776, %v1778
  %v1814 = vsel %vm1807, %v1778, %v1780
  %v1815 = vsel %vm1807, %v1780, %v1782
  %v1816 = vsel %vm1807, %v1782, %v1784
  %v1817 = vsel %vm1807, %v1784, %v1786
  %v1818 = vsel %vm1807, %v1786, %v1788
  %v1819 = vsel %vm1807, %v1788, %v1790
  %v1820 = vsel %vm1807, %v1790, %v1792
  %v1821 = vsel %vm1807, %v1792, %v1794
  %v1822 = vsel %vm1807, %v1794, %v1796
  %v1823 = vsel %vm1807, %v1796, %v1798
  %v1824 = vsel %vm1807, %v1798, %v1800
  %v1825 = vsel %vm1807, %v1800, %v1802
  %v1826 = vsel %vm1807, %v1802, %v1804
  %v1827 = vsel %vm1807, %v1804, %v1806
  %1849 = vst [vmem:[#allocation2 + $0x540] sm:$0xff] %v1808
  %1850 = vst [vmem:[#allocation2 + $0x548] sm:$0xff] %v1809
  %1851 = vst [vmem:[#allocation2 + $0x550] sm:$0xff] %v1810
  %1852 = vst [vmem:[#allocation2 + $0x558] sm:$0xff] %v1811
  %1853 = vst [vmem:[#allocation2 + $0x560] sm:$0xff] %v1812
  %1854 = vst [vmem:[#allocation2 + $0x568] sm:$0xff] %v1813
  %1855 = vst [vmem:[#allocation2 + $0x570] sm:$0xff] %v1814
  %1856 = vst [vmem:[#allocation2 + $0x578] sm:$0xff] %v1815
  %1857 = vst [vmem:[#allocation2 + $0x580] sm:$0xff] %v1816
  %1858 = vst [vmem:[#allocation2 + $0x588] sm:$0xff] %v1817
  %1859 = vst [vmem:[#allocation2 + $0x590] sm:$0xff] %v1818
  %1860 = vst [vmem:[#allocation2 + $0x598] sm:$0xff] %v1819
  %1861 = vst [vmem:[#allocation2 + $0x5a0] sm:$0xff] %v1820
  %1862 = vst [vmem:[#allocation2 + $0x5a8] sm:$0xff] %v1821
  %1863 = vst [vmem:[#allocation2 + $0x5b0] sm:$0xff] %v1822
  %1864 = vst [vmem:[#allocation2 + $0x5b8] sm:$0xff] %v1823
  %1865 = vst [vmem:[#allocation2 + $0x5c0] sm:$0xff] %v1824
  %1866 = vst [vmem:[#allocation2 + $0x5c8] sm:$0xff] %v1825
  %1867 = vst [vmem:[#allocation2 + $0x5d0] sm:$0xff] %v1826
  %1868 = vst [vmem:[#allocation2 + $0x5d8] sm:$0xff] %v1827
  %1869 = vst.msk [vmem:[#allocation2 + $0x5e0] sm:$0xff] %vm172, %v1806
  %v1870 = vld [vmem:[%s1] sm:$0xff]
  %v1871 = vld [vmem:[#allocation2] sm:$0xff]
  %v1872 = vld [vmem:[#allocation2 + $0x8] sm:$0xff]
  %v1873 = vld [vmem:[#allocation2 + $0x10] sm:$0xff]
  %v1874 = vld [vmem:[#allocation2 + $0x18] sm:$0xff]
  %v1875 = vld [vmem:[#allocation2 + $0x20] sm:$0xff]
  %v1876 = vld [vmem:[#allocation2 + $0x28] sm:$0xff]
  %v1877 = vld [vmem:[#allocation2 + $0x30] sm:$0xff]
  %v1878 = vld [vmem:[#allocation2 + $0x38] sm:$0xff]
  %v1879 = vld [vmem:[#allocation2 + $0x40] sm:$0xff]
  %v1880 = vld [vmem:[#allocation2 + $0x48] sm:$0xff]
  %v1881 = vld [vmem:[#allocation2 + $0x50] sm:$0xff]
  %v1882 = vld [vmem:[#allocation2 + $0x58] sm:$0xff]
  %v1883 = vld [vmem:[#allocation2 + $0x60] sm:$0xff]
  %v1884 = vld [vmem:[#allocation2 + $0x68] sm:$0xff]
  %v1885 = vld [vmem:[#allocation2 + $0x70] sm:$0xff]
  %v1886 = vld [vmem:[#allocation2 + $0x78] sm:$0xff]
  %v1887 = vld [vmem:[#allocation2 + $0x80] sm:$0xff]
  %v1888 = vld [vmem:[#allocation2 + $0x88] sm:$0xff]
  %v1889 = vld [vmem:[#allocation2 + $0x90] sm:$0xff]
  %v1890 = vld [vmem:[#allocation2 + $0x98] sm:$0xff]
  %v1891 = vld [vmem:[#allocation2 + $0xa0] sm:$0xff]
  %v1892 = vld [vmem:[#allocation2 + $0xa8] sm:$0xff]
  %v1893 = vld [vmem:[#allocation2 + $0xb0] sm:$0xff]
  %v1894 = vld [vmem:[#allocation2 + $0xb8] sm:$0xff]
  %v1895 = vld [vmem:[#allocation2 + $0xc0] sm:$0xff]
  %v1896 = vld [vmem:[#allocation2 + $0xc8] sm:$0xff]
  %v1897 = vld [vmem:[#allocation2 + $0xd0] sm:$0xff]
  %v1898 = vld [vmem:[#allocation2 + $0xd8] sm:$0xff]
  %v1899 = vld [vmem:[#allocation2 + $0xe0] sm:$0xff]
  %v1900 = vld [vmem:[#allocation2 + $0xe8] sm:$0xff]
  %v1901 = vld [vmem:[#allocation2 + $0xf0] sm:$0xff]
  %v1902 = vld [vmem:[#allocation2 + $0xf8] sm:$0xff]
  %v1903 = vld [vmem:[#allocation2 + $0x100] sm:$0xff]
  %v1904 = vld [vmem:[#allocation2 + $0x108] sm:$0xff]
  %v1905 = vld [vmem:[#allocation2 + $0x110] sm:$0xff]
  %v1906 = vld [vmem:[#allocation2 + $0x118] sm:$0xff]
  %v1907 = vld [vmem:[#allocation2 + $0x120] sm:$0xff]
  %v1908 = vld [vmem:[#allocation2 + $0x128] sm:$0xff]
  %v1909 = vld [vmem:[#allocation2 + $0x130] sm:$0xff]
  %v1910 = vld [vmem:[#allocation2 + $0x138] sm:$0xff]
  %v1911 = vld [vmem:[#allocation2 + $0x140] sm:$0xff]
  %v1912 = vld [vmem:[#allocation2 + $0x148] sm:$0xff]
  %v1913 = vld [vmem:[#allocation2 + $0x150] sm:$0xff]
  %v1914 = vld [vmem:[#allocation2 + $0x158] sm:$0xff]
  %v1915 = vld [vmem:[#allocation2 + $0x160] sm:$0xff]
  %v1916 = vld [vmem:[#allocation2 + $0x168] sm:$0xff]
  %v1917 = vld [vmem:[#allocation2 + $0x170] sm:$0xff]
  %v1918 = vld [vmem:[#allocation2 + $0x178] sm:$0xff]
  %v1919 = vld [vmem:[#allocation2 + $0x180] sm:$0xff]
  %v1920 = vld [vmem:[#allocation2 + $0x188] sm:$0xff]
  %v1921 = vld [vmem:[#allocation2 + $0x190] sm:$0xff]
  %v1922 = vld [vmem:[#allocation2 + $0x198] sm:$0xff]
  %v1923 = vld [vmem:[#allocation2 + $0x1a0] sm:$0xff]
  %v1924 = vld [vmem:[#allocation2 + $0x1a8] sm:$0xff]
  %v1925 = vld [vmem:[#allocation2 + $0x1b0] sm:$0xff]
  %v1926 = vld [vmem:[#allocation2 + $0x1b8] sm:$0xff]
  %v1927 = vld [vmem:[#allocation2 + $0x1c0] sm:$0xff]
  %v1928 = vld [vmem:[#allocation2 + $0x1c8] sm:$0xff]
  %v1929 = vld [vmem:[#allocation2 + $0x1d0] sm:$0xff]
  %v1930 = vld [vmem:[#allocation2 + $0x1d8] sm:$0xff]
  %v1931 = vld [vmem:[#allocation2 + $0x1e0] sm:$0xff]
  %v1932 = vld [vmem:[#allocation2 + $0x1e8] sm:$0xff]
  %v1933 = vld [vmem:[#allocation2 + $0x1f0] sm:$0xff]
  %v1934 = vld [vmem:[#allocation2 + $0x1f8] sm:$0xff]
  %v1935 = vld [vmem:[#allocation2 + $0x200] sm:$0xff]
  %v1936 = vld [vmem:[#allocation2 + $0x208] sm:$0xff]
  %v1937 = vld [vmem:[#allocation2 + $0x210] sm:$0xff]
  %v1938 = vld [vmem:[#allocation2 + $0x218] sm:$0xff]
  %v1939 = vld [vmem:[#allocation2 + $0x220] sm:$0xff]
  %v1940 = vld [vmem:[#allocation2 + $0x228] sm:$0xff]
  %v1941 = vld [vmem:[#allocation2 + $0x230] sm:$0xff]
  %v1942 = vld [vmem:[#allocation2 + $0x238] sm:$0xff]
  %v1943 = vld [vmem:[#allocation2 + $0x240] sm:$0xff]
  %v1944 = vld [vmem:[#allocation2 + $0x248] sm:$0xff]
  %v1945 = vld [vmem:[#allocation2 + $0x250] sm:$0xff]
  %v1946 = vld [vmem:[#allocation2 + $0x258] sm:$0xff]
  %v1947 = vld [vmem:[#allocation2 + $0x260] sm:$0xff]
  %v1948 = vld [vmem:[#allocation2 + $0x268] sm:$0xff]
  %v1949 = vld [vmem:[#allocation2 + $0x270] sm:$0xff]
  %v1950 = vld [vmem:[#allocation2 + $0x278] sm:$0xff]
  %v1951 = vld [vmem:[#allocation2 + $0x280] sm:$0xff]
  %v1952 = vld [vmem:[#allocation2 + $0x288] sm:$0xff]
  %v1953 = vld [vmem:[#allocation2 + $0x290] sm:$0xff]
  %v1954 = vld [vmem:[#allocation2 + $0x298] sm:$0xff]
  %v1955 = vld [vmem:[#allocation2 + $0x2a0] sm:$0xff]
  %v1956 = vld [vmem:[#allocation2 + $0x2a8] sm:$0xff]
  %v1957 = vld [vmem:[#allocation2 + $0x2b0] sm:$0xff]
  %v1958 = vld [vmem:[#allocation2 + $0x2b8] sm:$0xff]
  %v1959 = vld [vmem:[#allocation2 + $0x2c0] sm:$0xff]
  %v1960 = vld [vmem:[#allocation2 + $0x2c8] sm:$0xff]
  %v1961 = vld [vmem:[#allocation2 + $0x2d0] sm:$0xff]
  %v1962 = vld [vmem:[#allocation2 + $0x2d8] sm:$0xff]
  %v1963 = vld [vmem:[#allocation2 + $0x2e0] sm:$0xff]
  %v1964 = vld [vmem:[#allocation2 + $0x2e8] sm:$0xff]
  %v1965 = vld [vmem:[#allocation2 + $0x2f0] sm:$0xff]
  %v1966 = vld [vmem:[#allocation2 + $0x2f8] sm:$0xff]
  %v1967 = vld [vmem:[#allocation2 + $0x300] sm:$0xff]
  %v1968 = vld [vmem:[#allocation2 + $0x308] sm:$0xff]
  %v1969 = vld [vmem:[#allocation2 + $0x310] sm:$0xff]
  %v1970 = vld [vmem:[#allocation2 + $0x318] sm:$0xff]
  %v1971 = vld [vmem:[#allocation2 + $0x320] sm:$0xff]
  %v1972 = vld [vmem:[#allocation2 + $0x328] sm:$0xff]
  %v1973 = vld [vmem:[#allocation2 + $0x330] sm:$0xff]
  %v1974 = vld [vmem:[#allocation2 + $0x338] sm:$0xff]
  %v1975 = vld [vmem:[#allocation2 + $0x340] sm:$0xff]
  %v1976 = vld [vmem:[#allocation2 + $0x348] sm:$0xff]
  %v1977 = vld [vmem:[#allocation2 + $0x350] sm:$0xff]
  %v1978 = vld [vmem:[#allocation2 + $0x358] sm:$0xff]
  %v1979 = vld [vmem:[#allocation2 + $0x360] sm:$0xff]
  %v1980 = vld [vmem:[#allocation2 + $0x368] sm:$0xff]
  %v1981 = vld [vmem:[#allocation2 + $0x370] sm:$0xff]
  %v1982 = vld [vmem:[#allocation2 + $0x378] sm:$0xff]
  %v1983 = vld [vmem:[#allocation2 + $0x380] sm:$0xff]
  %v1984 = vld [vmem:[#allocation2 + $0x388] sm:$0xff]
  %v1985 = vld [vmem:[#allocation2 + $0x390] sm:$0xff]
  %v1986 = vld [vmem:[#allocation2 + $0x398] sm:$0xff]
  %v1987 = vld [vmem:[#allocation2 + $0x3a0] sm:$0xff]
  %v1988 = vld [vmem:[#allocation2 + $0x3a8] sm:$0xff]
  %v1989 = vld [vmem:[#allocation2 + $0x3b0] sm:$0xff]
  %v1990 = vld [vmem:[#allocation2 + $0x3b8] sm:$0xff]
  %v1991 = vld [vmem:[#allocation2 + $0x3c0] sm:$0xff]
  %v1992 = vld [vmem:[#allocation2 + $0x3c8] sm:$0xff]
  %v1993 = vld [vmem:[#allocation2 + $0x3d0] sm:$0xff]
  %v1994 = vld [vmem:[#allocation2 + $0x3d8] sm:$0xff]
  %v1995 = vld [vmem:[#allocation2 + $0x3e0] sm:$0xff]
  %v1996 = vld [vmem:[#allocation2 + $0x3e8] sm:$0xff]
  %v1997 = vld [vmem:[#allocation2 + $0x3f0] sm:$0xff]
  %v1998 = vld [vmem:[#allocation2 + $0x3f8] sm:$0xff]
  %v1999 = vld [vmem:[#allocation2 + $0x400] sm:$0xff]
  %v2000 = vld [vmem:[#allocation2 + $0x408] sm:$0xff]
  %v2001 = vld [vmem:[#allocation2 + $0x410] sm:$0xff]
  %v2002 = vld [vmem:[#allocation2 + $0x418] sm:$0xff]
  %v2003 = vld [vmem:[#allocation2 + $0x420] sm:$0xff]
  %v2004 = vld [vmem:[#allocation2 + $0x428] sm:$0xff]
  %v2005 = vld [vmem:[#allocation2 + $0x430] sm:$0xff]
  %v2006 = vld [vmem:[#allocation2 + $0x438] sm:$0xff]
  %v2007 = vld [vmem:[#allocation2 + $0x440] sm:$0xff]
  %v2008 = vld [vmem:[#allocation2 + $0x448] sm:$0xff]
  %v2009 = vld [vmem:[#allocation2 + $0x450] sm:$0xff]
  %v2010 = vld [vmem:[#allocation2 + $0x458] sm:$0xff]
  %v2011 = vld [vmem:[#allocation2 + $0x460] sm:$0xff]
  %v2012 = vld [vmem:[#allocation2 + $0x468] sm:$0xff]
  %v2013 = vld [vmem:[#allocation2 + $0x470] sm:$0xff]
  %v2014 = vld [vmem:[#allocation2 + $0x478] sm:$0xff]
  %v2015 = vld [vmem:[#allocation2 + $0x480] sm:$0xff]
  %v2016 = vld [vmem:[#allocation2 + $0x488] sm:$0xff]
  %v2017 = vld [vmem:[#allocation2 + $0x490] sm:$0xff]
  %v2018 = vld [vmem:[#allocation2 + $0x498] sm:$0xff]
  %v2019 = vld [vmem:[#allocation2 + $0x4a0] sm:$0xff]
  %v2020 = vld [vmem:[#allocation2 + $0x4a8] sm:$0xff]
  %v2021 = vld [vmem:[#allocation2 + $0x4b0] sm:$0xff]
  %v2022 = vld [vmem:[#allocation2 + $0x4b8] sm:$0xff]
  %v2023 = vld [vmem:[#allocation2 + $0x4c0] sm:$0xff]
  %v2024 = vld [vmem:[#allocation2 + $0x4c8] sm:$0xff]
  %v2025 = vld [vmem:[#allocation2 + $0x4d0] sm:$0xff]
  %v2026 = vld [vmem:[#allocation2 + $0x4d8] sm:$0xff]
  %v2027 = vld [vmem:[#allocation2 + $0x4e0] sm:$0xff]
  %v2028 = vld [vmem:[#allocation2 + $0x4e8] sm:$0xff]
  %v2029 = vld [vmem:[#allocation2 + $0x4f0] sm:$0xff]
  %v2030 = vld [vmem:[#allocation2 + $0x4f8] sm:$0xff]
  %v2031 = vld [vmem:[#allocation2 + $0x500] sm:$0xff]
  %v2032 = vld [vmem:[#allocation2 + $0x508] sm:$0xff]
  %v2033 = vld [vmem:[#allocation2 + $0x510] sm:$0xff]
  %v2034 = vld [vmem:[#allocation2 + $0x518] sm:$0xff]
  %v2035 = vld [vmem:[#allocation2 + $0x520] sm:$0xff]
  %v2036 = vld [vmem:[#allocation2 + $0x528] sm:$0xff]
  %v2037 = vld [vmem:[#allocation2 + $0x530] sm:$0xff]
  %v2038 = vld [vmem:[#allocation2 + $0x538] sm:$0xff]
  %v2039 = vld [vmem:[#allocation2 + $0x540] sm:$0xff]
  %v2040 = vld [vmem:[#allocation2 + $0x548] sm:$0xff]
  %v2041 = vld [vmem:[#allocation2 + $0x550] sm:$0xff]
  %v2042 = vld [vmem:[#allocation2 + $0x558] sm:$0xff]
  %v2043 = vld [vmem:[#allocation2 + $0x560] sm:$0xff]
  %v2044 = vld [vmem:[#allocation2 + $0x568] sm:$0xff]
  %v2045 = vld [vmem:[#allocation2 + $0x570] sm:$0xff]
  %v2046 = vld [vmem:[#allocation2 + $0x578] sm:$0xff]
  %v2047 = vld [vmem:[#allocation2 + $0x580] sm:$0xff]
  %v2048 = vld [vmem:[#allocation2 + $0x588] sm:$0xff]
  %v2049 = vld [vmem:[#allocation2 + $0x590] sm:$0xff]
  %v2050 = vld [vmem:[#allocation2 + $0x598] sm:$0xff]
  %v2051 = vld [vmem:[#allocation2 + $0x5a0] sm:$0xff]
  %v2052 = vld [vmem:[#allocation2 + $0x5a8] sm:$0xff]
  %v2053 = vld [vmem:[#allocation2 + $0x5b0] sm:$0xff]
  %v2054 = vld [vmem:[#allocation2 + $0x5b8] sm:$0xff]
  %v2055 = vld [vmem:[#allocation2 + $0x5c0] sm:$0xff]
  %v2056 = vld [vmem:[#allocation2 + $0x5c8] sm:$0xff]
  %v2057 = vld [vmem:[#allocation2 + $0x5d0] sm:$0xff]
  %v2058 = vld [vmem:[#allocation2 + $0x5d8] sm:$0xff]
  %v2059 = vld [vmem:[#allocation2 + $0x5e0] sm:$0xff]
  %v2060 = vld [vmem:[%s2] sm:$0xff]
  %2062 = vset.pattern.permute.xlu0 0
  %2063 = vperm.xlu0 %2062, %v2060
  %v2064 = vpop.permute.xlu0 %2063
  %v2067 = vunpack.c.l.b16 %v1870
  %v2068 = vunpack.c.h.b16 %v1870
  %v2069 = vpack.c.b16 %v2067, %v2067
  %v2070 = vpack.c.b16 %v2068, %v2068
  %vm2072 = vcmask 130048
  %v2074 = vsel %vm2072, %v2070, 0
  %2076 = vmatprep.subr.bf16.mxu0 %v1872
  %2077 = vmatpush1.bf16.msra.mxu0 %v1871
  %2078 = vmatprep.subr.bf16.mxu0 %v1893
  %2079 = vmatpush1.bf16.msra.mxu0 %v1892
  %2080 = vmatprep.subr.bf16.mxu0 %v1914
  %2081 = vmatpush1.bf16.msra.mxu0 %v1913
  %2082 = vmatprep.subr.bf16.mxu0 %v1935
  %2083 = vmatpush1.bf16.msra.mxu0 %v1934
  %2084 = vmatprep.subr.bf16.mxu0 %v1956
  %2085 = vmatpush1.bf16.msra.mxu0 %v1955
  %2086 = vmatprep.subr.bf16.mxu0 %v1977
  %2087 = vmatpush1.bf16.msra.mxu0 %v1976
  %2088 = vmatprep.subr.bf16.mxu0 %v1998
  %2089 = vmatpush1.bf16.msra.mxu0 %v1997
  %2090 = vmatprep.subr.bf16.mxu0 %v2019
  %2091 = vmatpush1.bf16.msra.mxu0 %v2018
  %2092 = vmatprep.subr.bf16.mxu0 %v2040
  %2093 = vmatpush1.bf16.msra.mxu0 %v2039
  %2094 = vmatprep.subr.bf16.mxu0 0
  %2095 = vmatpush1.bf16.msra.mxu0 0
  %2096 = vmatprep.subr.bf16.mxu0 0
  %2097 = vmatpush1.bf16.msra.mxu0 0
  %2098 = vmatprep.subr.bf16.mxu0 0
  %2099 = vmatpush1.bf16.msra.mxu0 0
  %2100 = vmatprep.subr.bf16.mxu0 0
  %2101 = vmatpush1.bf16.msra.mxu0 0
  %2102 = vmatprep.subr.bf16.mxu0 0
  %2103 = vmatpush1.bf16.msra.mxu0 0
  %2104 = vmatprep.subr.bf16.mxu0 0
  %2105 = vmatpush1.bf16.msra.mxu0 0
  %2106 = vmatprep.subr.bf16.mxu0 0
  %2107 = vmatpush1.bf16.msra.mxu0 0
  %2108 = vmatprep.mubr.bf16.mxu0 %v2074
  %2109 = vmatmul.mubr.bf16.gmra.mrb[0].mxu0 %v2069
  %v2110 = vpop.f32.mrb[0].mxu0
  %v2111 = vadd.f32 %v2064, %v2110
  %v2112 = vpop.f32.mrb[0].mxu0
  %v2113 = vadd.f32 %v2064, %v2112
  %v2114 = vpop.f32.mrb[0].mxu0
  %v2115 = vpop.f32.mrb[0].mxu0
  %2116 = vdwg.mxu0
  %2117 = vmatprep.subr.bf16.mxu0 %v1874
  %2118 = vmatpush1.bf16.msra.mxu0 %v1873
  %2119 = vmatprep.subr.bf16.mxu0 %v1895
  %2120 = vmatpush1.bf16.msra.mxu0 %v1894
  %2121 = vmatprep.subr.bf16.mxu0 %v1916
  %2122 = vmatpush1.bf16.msra.mxu0 %v1915
  %2123 = vmatprep.subr.bf16.mxu0 %v1937
  %2124 = vmatpush1.bf16.msra.mxu0 %v1936
  %2125 = vmatprep.subr.bf16.mxu0 %v1958
  %2126 = vmatpush1.bf16.msra.mxu0 %v1957
  %2127 = vmatprep.subr.bf16.mxu0 %v1979
  %2128 = vmatpush1.bf16.msra.mxu0 %v1978
  %2129 = vmatprep.subr.bf16.mxu0 %v2000
  %2130 = vmatpush1.bf16.msra.mxu0 %v1999
  %2131 = vmatprep.subr.bf16.mxu0 %v2021
  %2132 = vmatpush1.bf16.msra.mxu0 %v2020
  %2133 = vmatprep.subr.bf16.mxu0 %v2042
  %2134 = vmatpush1.bf16.msra.mxu0 %v2041
  %2135 = vmatprep.subr.bf16.mxu0 0
  %2136 = vmatpush1.bf16.msra.mxu0 0
  %2137 = vmatprep.subr.bf16.mxu0 0
  %2138 = vmatpush1.bf16.msra.mxu0 0
  %2139 = vmatprep.subr.bf16.mxu0 0
  %2140 = vmatpush1.bf16.msra.mxu0 0
  %2141 = vmatprep.subr.bf16.mxu0 0
  %2142 = vmatpush1.bf16.msra.mxu0 0
  %2143 = vmatprep.subr.bf16.mxu0 0
  %2144 = vmatpush1.bf16.msra.mxu0 0
  %2145 = vmatprep.subr.bf16.mxu0 0
  %2146 = vmatpush1.bf16.msra.mxu0 0
  %2147 = vmatprep.subr.bf16.mxu0 0
  %2148 = vmatpush1.bf16.msra.mxu0 0
  %2149 = vmatprep.mubr.bf16.mxu0 %v2074
  %2150 = vmatmul.mubr.bf16.gmra.mrb[0].mxu0 %v2069
  %v2151 = vpop.f32.mrb[0].mxu0
  %v2152 = vadd.f32 %v2064, %v2151
  %v2153 = vpop.f32.mrb[0].mxu0
  %v2154 = vadd.f32 %v2064, %v2153
  %v2155 = vpop.f32.mrb[0].mxu0
  %v2156 = vpop.f32.mrb[0].mxu0
  %2157 = vdwg.mxu0
  %2158 = vmatprep.subr.bf16.mxu0 %v1876
  %2159 = vmatpush1.bf16.msra.mxu0 %v1875
  %2160 = vmatprep.subr.bf16.mxu0 %v1897
  %2161 = vmatpush1.bf16.msra.mxu0 %v1896
  %2162 = vmatprep.subr.bf16.mxu0 %v1918
  %2163 = vmatpush1.bf16.msra.mxu0 %v1917
  %2164 = vmatprep.subr.bf16.mxu0 %v1939
  %2165 = vmatpush1.bf16.msra.mxu0 %v1938
  %2166 = vmatprep.subr.bf16.mxu0 %v1960
  %2167 = vmatpush1.bf16.msra.mxu0 %v1959
  %2168 = vmatprep.subr.bf16.mxu0 %v1981
  %2169 = vmatpush1.bf16.msra.mxu0 %v1980
  %2170 = vmatprep.subr.bf16.mxu0 %v2002
  %2171 = vmatpush1.bf16.msra.mxu0 %v2001
  %2172 = vmatprep.subr.bf16.mxu0 %v2023
  %2173 = vmatpush1.bf16.msra.mxu0 %v2022
  %2174 = vmatprep.subr.bf16.mxu0 %v2044
  %2175 = vmatpush1.bf16.msra.mxu0 %v2043
  %2176 = vmatprep.subr.bf16.mxu0 0
  %2177 = vmatpush1.bf16.msra.mxu0 0
  %2178 = vmatprep.subr.bf16.mxu0 0
  %2179 = vmatpush1.bf16.msra.mxu0 0
  %2180 = vmatprep.subr.bf16.mxu0 0
  %2181 = vmatpush1.bf16.msra.mxu0 0
  %2182 = vmatprep.subr.bf16.mxu0 0
  %2183 = vmatpush1.bf16.msra.mxu0 0
  %2184 = vmatprep.subr.bf16.mxu0 0
  %2185 = vmatpush1.bf16.msra.mxu0 0
  %2186 = vmatprep.subr.bf16.mxu0 0
  %2187 = vmatpush1.bf16.msra.mxu0 0
  %2188 = vmatprep.subr.bf16.mxu0 0
  %2189 = vmatpush1.bf16.msra.mxu0 0
  %2190 = vmatprep.mubr.bf16.mxu0 %v2074
  %2191 = vmatmul.mubr.bf16.gmra.mrb[0].mxu0 %v2069
  %v2192 = vpop.f32.mrb[0].mxu0
  %v2193 = vadd.f32 %v2064, %v2192
  %v2194 = vpop.f32.mrb[0].mxu0
  %v2195 = vadd.f32 %v2064, %v2194
  %v2196 = vpop.f32.mrb[0].mxu0
  %v2197 = vpop.f32.mrb[0].mxu0
  %2198 = vdwg.mxu0
  %2199 = vmatprep.subr.bf16.mxu0 %v1878
  %2200 = vmatpush1.bf16.msra.mxu0 %v1877
  %2201 = vmatprep.subr.bf16.mxu0 %v1899
  %2202 = vmatpush1.bf16.msra.mxu0 %v1898
  %2203 = vmatprep.subr.bf16.mxu0 %v1920
  %2204 = vmatpush1.bf16.msra.mxu0 %v1919
  %2205 = vmatprep.subr.bf16.mxu0 %v1941
  %2206 = vmatpush1.bf16.msra.mxu0 %v1940
  %2207 = vmatprep.subr.bf16.mxu0 %v1962
  %2208 = vmatpush1.bf16.msra.mxu0 %v1961
  %2209 = vmatprep.subr.bf16.mxu0 %v1983
  %2210 = vmatpush1.bf16.msra.mxu0 %v1982
  %2211 = vmatprep.subr.bf16.mxu0 %v2004
  %2212 = vmatpush1.bf16.msra.mxu0 %v2003
  %2213 = vmatprep.subr.bf16.mxu0 %v2025
  %2214 = vmatpush1.bf16.msra.mxu0 %v2024
  %2215 = vmatprep.subr.bf16.mxu0 %v2046
  %2216 = vmatpush1.bf16.msra.mxu0 %v2045
  %2217 = vmatprep.subr.bf16.mxu0 0
  %2218 = vmatpush1.bf16.msra.mxu0 0
  %2219 = vmatprep.subr.bf16.mxu0 0
  %2220 = vmatpush1.bf16.msra.mxu0 0
  %2221 = vmatprep.subr.bf16.mxu0 0
  %2222 = vmatpush1.bf16.msra.mxu0 0
  %2223 = vmatprep.subr.bf16.mxu0 0
  %2224 = vmatpush1.bf16.msra.mxu0 0
  %2225 = vmatprep.subr.bf16.mxu0 0
  %2226 = vmatpush1.bf16.msra.mxu0 0
  %2227 = vmatprep.subr.bf16.mxu0 0
  %2228 = vmatpush1.bf16.msra.mxu0 0
  %2229 = vmatprep.subr.bf16.mxu0 0
  %2230 = vmatpush1.bf16.msra.mxu0 0
  %2231 = vmatprep.mubr.bf16.mxu0 %v2074
  %2232 = vmatmul.mubr.bf16.gmra.mrb[0].mxu0 %v2069
  %v2233 = vpop.f32.mrb[0].mxu0
  %v2234 = vadd.f32 %v2064, %v2233
  %v2235 = vpop.f32.mrb[0].mxu0
  %v2236 = vadd.f32 %v2064, %v2235
  %v2237 = vpop.f32.mrb[0].mxu0
  %v2238 = vpop.f32.mrb[0].mxu0
  %2239 = vdwg.mxu0
  %2240 = vmatprep.subr.bf16.mxu0 %v1880
  %2241 = vmatpush1.bf16.msra.mxu0 %v1879
  %2242 = vmatprep.subr.bf16.mxu0 %v1901
  %2243 = vmatpush1.bf16.msra.mxu0 %v1900
  %2244 = vmatprep.subr.bf16.mxu0 %v1922
  %2245 = vmatpush1.bf16.msra.mxu0 %v1921
  %2246 = vmatprep.subr.bf16.mxu0 %v1943
  %2247 = vmatpush1.bf16.msra.mxu0 %v1942
  %2248 = vmatprep.subr.bf16.mxu0 %v1964
  %2249 = vmatpush1.bf16.msra.mxu0 %v1963
  %2250 = vmatprep.subr.bf16.mxu0 %v1985
  %2251 = vmatpush1.bf16.msra.mxu0 %v1984
  %2252 = vmatprep.subr.bf16.mxu0 %v2006
  %2253 = vmatpush1.bf16.msra.mxu0 %v2005
  %2254 = vmatprep.subr.bf16.mxu0 %v2027
  %2255 = vmatpush1.bf16.msra.mxu0 %v2026
  %2256 = vmatprep.subr.bf16.mxu0 %v2048
  %2257 = vmatpush1.bf16.msra.mxu0 %v2047
  %2258 = vmatprep.subr.bf16.mxu0 0
  %2259 = vmatpush1.bf16.msra.mxu0 0
  %2260 = vmatprep.subr.bf16.mxu0 0
  %2261 = vmatpush1.bf16.msra.mxu0 0
  %2262 = vmatprep.subr.bf16.mxu0 0
  %2263 = vmatpush1.bf16.msra.mxu0 0
  %2264 = vmatprep.subr.bf16.mxu0 0
  %2265 = vmatpush1.bf16.msra.mxu0 0
  %2266 = vmatprep.subr.bf16.mxu0 0
  %2267 = vmatpush1.bf16.msra.mxu0 0
  %2268 = vmatprep.subr.bf16.mxu0 0
  %2269 = vmatpush1.bf16.msra.mxu0 0
  %2270 = vmatprep.subr.bf16.mxu0 0
  %2271 = vmatpush1.bf16.msra.mxu0 0
  %2272 = vmatprep.mubr.bf16.mxu0 %v2074
  %2273 = vmatmul.mubr.bf16.gmra.mrb[0].mxu0 %v2069
  %v2274 = vpop.f32.mrb[0].mxu0
  %v2275 = vadd.f32 %v2064, %v2274
  %v2276 = vpop.f32.mrb[0].mxu0
  %v2277 = vadd.f32 %v2064, %v2276
  %v2278 = vpop.f32.mrb[0].mxu0
  %v2279 = vpop.f32.mrb[0].mxu0
  %2280 = vdwg.mxu0
  %2281 = vmatprep.subr.bf16.mxu0 %v1882
  %2282 = vmatpush1.bf16.msra.mxu0 %v1881
  %2283 = vmatprep.subr.bf16.mxu0 %v1903
  %2284 = vmatpush1.bf16.msra.mxu0 %v1902
  %2285 = vmatprep.subr.bf16.mxu0 %v1924
  %2286 = vmatpush1.bf16.msra.mxu0 %v1923
  %2287 = vmatprep.subr.bf16.mxu0 %v1945
  %2288 = vmatpush1.bf16.msra.mxu0 %v1944
  %2289 = vmatprep.subr.bf16.mxu0 %v1966
  %2290 = vmatpush1.bf16.msra.mxu0 %v1965
  %2291 = vmatprep.subr.bf16.mxu0 %v1987
  %2292 = vmatpush1.bf16.msra.mxu0 %v1986
  %2293 = vmatprep.subr.bf16.mxu0 %v2008
  %2294 = vmatpush1.bf16.msra.mxu0 %v2007
  %2295 = vmatprep.subr.bf16.mxu0 %v2029
  %2296 = vmatpush1.bf16.msra.mxu0 %v2028
  %2297 = vmatprep.subr.bf16.mxu0 %v2050
  %2298 = vmatpush1.bf16.msra.mxu0 %v2049
  %2299 = vmatprep.subr.bf16.mxu0 0
  %2300 = vmatpush1.bf16.msra.mxu0 0
  %2301 = vmatprep.subr.bf16.mxu0 0
  %2302 = vmatpush1.bf16.msra.mxu0 0
  %2303 = vmatprep.subr.bf16.mxu0 0
  %2304 = vmatpush1.bf16.msra.mxu0 0
  %2305 = vmatprep.subr.bf16.mxu0 0
  %2306 = vmatpush1.bf16.msra.mxu0 0
  %2307 = vmatprep.subr.bf16.mxu0 0
  %2308 = vmatpush1.bf16.msra.mxu0 0
  %2309 = vmatprep.subr.bf16.mxu0 0
  %2310 = vmatpush1.bf16.msra.mxu0 0
  %2311 = vmatprep.subr.bf16.mxu0 0
  %2312 = vmatpush1.bf16.msra.mxu0 0
  %2313 = vmatprep.mubr.bf16.mxu0 %v2074
  %2314 = vmatmul.mubr.bf16.gmra.mrb[0].mxu0 %v2069
  %v2315 = vpop.f32.mrb[0].mxu0
  %v2316 = vadd.f32 %v2064, %v2315
  %v2317 = vpop.f32.mrb[0].mxu0
  %v2318 = vadd.f32 %v2064, %v2317
  %v2319 = vpop.f32.mrb[0].mxu0
  %v2320 = vpop.f32.mrb[0].mxu0
  %2321 = vdwg.mxu0
  %2322 = vmatprep.subr.bf16.mxu0 %v1884
  %2323 = vmatpush1.bf16.msra.mxu0 %v1883
  %2324 = vmatprep.subr.bf16.mxu0 %v1905
  %2325 = vmatpush1.bf16.msra.mxu0 %v1904
  %2326 = vmatprep.subr.bf16.mxu0 %v1926
  %2327 = vmatpush1.bf16.msra.mxu0 %v1925
  %2328 = vmatprep.subr.bf16.mxu0 %v1947
  %2329 = vmatpush1.bf16.msra.mxu0 %v1946
  %2330 = vmatprep.subr.bf16.mxu0 %v1968
  %2331 = vmatpush1.bf16.msra.mxu0 %v1967
  %2332 = vmatprep.subr.bf16.mxu0 %v1989
  %2333 = vmatpush1.bf16.msra.mxu0 %v1988
  %2334 = vmatprep.subr.bf16.mxu0 %v2010
  %2335 = vmatpush1.bf16.msra.mxu0 %v2009
  %2336 = vmatprep.subr.bf16.mxu0 %v2031
  %2337 = vmatpush1.bf16.msra.mxu0 %v2030
  %2338 = vmatprep.subr.bf16.mxu0 %v2052
  %2339 = vmatpush1.bf16.msra.mxu0 %v2051
  %2340 = vmatprep.subr.bf16.mxu0 0
  %2341 = vmatpush1.bf16.msra.mxu0 0
  %2342 = vmatprep.subr.bf16.mxu0 0
  %2343 = vmatpush1.bf16.msra.mxu0 0
  %2344 = vmatprep.subr.bf16.mxu0 0
  %2345 = vmatpush1.bf16.msra.mxu0 0
  %2346 = vmatprep.subr.bf16.mxu0 0
  %2347 = vmatpush1.bf16.msra.mxu0 0
  %2348 = vmatprep.subr.bf16.mxu0 0
  %2349 = vmatpush1.bf16.msra.mxu0 0
  %2350 = vmatprep.subr.bf16.mxu0 0
  %2351 = vmatpush1.bf16.msra.mxu0 0
  %2352 = vmatprep.subr.bf16.mxu0 0
  %2353 = vmatpush1.bf16.msra.mxu0 0
  %2354 = vmatprep.mubr.bf16.mxu0 %v2074
  %2355 = vmatmul.mubr.bf16.gmra.mrb[0].mxu0 %v2069
  %v2356 = vpop.f32.mrb[0].mxu0
  %v2357 = vadd.f32 %v2064, %v2356
  %v2358 = vpop.f32.mrb[0].mxu0
  %v2359 = vadd.f32 %v2064, %v2358
  %v2360 = vpop.f32.mrb[0].mxu0
  %v2361 = vpop.f32.mrb[0].mxu0
  %2362 = vdwg.mxu0
  %2363 = vmatprep.subr.bf16.mxu0 %v1886
  %2364 = vmatpush1.bf16.msra.mxu0 %v1885
  %2365 = vmatprep.subr.bf16.mxu0 %v1907
  %2366 = vmatpush1.bf16.msra.mxu0 %v1906
  %2367 = vmatprep.subr.bf16.mxu0 %v1928
  %2368 = vmatpush1.bf16.msra.mxu0 %v1927
  %2369 = vmatprep.subr.bf16.mxu0 %v1949
  %2370 = vmatpush1.bf16.msra.mxu0 %v1948
  %2371 = vmatprep.subr.bf16.mxu0 %v1970
  %2372 = vmatpush1.bf16.msra.mxu0 %v1969
  %2373 = vmatprep.subr.bf16.mxu0 %v1991
  %2374 = vmatpush1.bf16.msra.mxu0 %v1990
  %2375 = vmatprep.subr.bf16.mxu0 %v2012
  %2376 = vmatpush1.bf16.msra.mxu0 %v2011
  %2377 = vmatprep.subr.bf16.mxu0 %v2033
  %2378 = vmatpush1.bf16.msra.mxu0 %v2032
  %2379 = vmatprep.subr.bf16.mxu0 %v2054
  %2380 = vmatpush1.bf16.msra.mxu0 %v2053
  %2381 = vmatprep.subr.bf16.mxu0 0
  %2382 = vmatpush1.bf16.msra.mxu0 0
  %2383 = vmatprep.subr.bf16.mxu0 0
  %2384 = vmatpush1.bf16.msra.mxu0 0
  %2385 = vmatprep.subr.bf16.mxu0 0
  %2386 = vmatpush1.bf16.msra.mxu0 0
  %2387 = vmatprep.subr.bf16.mxu0 0
  %2388 = vmatpush1.bf16.msra.mxu0 0
  %2389 = vmatprep.subr.bf16.mxu0 0
  %2390 = vmatpush1.bf16.msra.mxu0 0
  %2391 = vmatprep.subr.bf16.mxu0 0
  %2392 = vmatpush1.bf16.msra.mxu0 0
  %2393 = vmatprep.subr.bf16.mxu0 0
  %2394 = vmatpush1.bf16.msra.mxu0 0
  %2395 = vmatprep.mubr.bf16.mxu0 %v2074
  %2396 = vmatmul.mubr.bf16.gmra.mrb[0].mxu0 %v2069
  %v2397 = vpop.f32.mrb[0].mxu0
  %v2398 = vadd.f32 %v2064, %v2397
  %v2399 = vpop.f32.mrb[0].mxu0
  %v2400 = vadd.f32 %v2064, %v2399
  %v2401 = vpop.f32.mrb[0].mxu0
  %v2402 = vpop.f32.mrb[0].mxu0
  %2403 = vdwg.mxu0
  %2404 = vmatprep.subr.bf16.mxu0 %v1888
  %2405 = vmatpush1.bf16.msra.mxu0 %v1887
  %2406 = vmatprep.subr.bf16.mxu0 %v1909
  %2407 = vmatpush1.bf16.msra.mxu0 %v1908
  %2408 = vmatprep.subr.bf16.mxu0 %v1930
  %2409 = vmatpush1.bf16.msra.mxu0 %v1929
  %2410 = vmatprep.subr.bf16.mxu0 %v1951
  %2411 = vmatpush1.bf16.msra.mxu0 %v1950
  %2412 = vmatprep.subr.bf16.mxu0 %v1972
  %2413 = vmatpush1.bf16.msra.mxu0 %v1971
  %2414 = vmatprep.subr.bf16.mxu0 %v1993
  %2415 = vmatpush1.bf16.msra.mxu0 %v1992
  %2416 = vmatprep.subr.bf16.mxu0 %v2014
  %2417 = vmatpush1.bf16.msra.mxu0 %v2013
  %2418 = vmatprep.subr.bf16.mxu0 %v2035
  %2419 = vmatpush1.bf16.msra.mxu0 %v2034
  %2420 = vmatprep.subr.bf16.mxu0 %v2056
  %2421 = vmatpush1.bf16.msra.mxu0 %v2055
  %2422 = vmatprep.subr.bf16.mxu0 0
  %2423 = vmatpush1.bf16.msra.mxu0 0
  %2424 = vmatprep.subr.bf16.mxu0 0
  %2425 = vmatpush1.bf16.msra.mxu0 0
  %2426 = vmatprep.subr.bf16.mxu0 0
  %2427 = vmatpush1.bf16.msra.mxu0 0
  %2428 = vmatprep.subr.bf16.mxu0 0
  %2429 = vmatpush1.bf16.msra.mxu0 0
  %2430 = vmatprep.subr.bf16.mxu0 0
  %2431 = vmatpush1.bf16.msra.mxu0 0
  %2432 = vmatprep.subr.bf16.mxu0 0
  %2433 = vmatpush1.bf16.msra.mxu0 0
  %2434 = vmatprep.subr.bf16.mxu0 0
  %2435 = vmatpush1.bf16.msra.mxu0 0
  %2436 = vmatprep.mubr.bf16.mxu0 %v2074
  %2437 = vmatmul.mubr.bf16.gmra.mrb[0].mxu0 %v2069
  %v2438 = vpop.f32.mrb[0].mxu0
  %v2439 = vadd.f32 %v2064, %v2438
  %v2440 = vpop.f32.mrb[0].mxu0
  %v2441 = vadd.f32 %v2064, %v2440
  %v2442 = vpop.f32.mrb[0].mxu0
  %v2443 = vpop.f32.mrb[0].mxu0
  %2444 = vdwg.mxu0
  %2445 = vmatprep.subr.bf16.mxu0 %v1890
  %2446 = vmatpush1.bf16.msra.mxu0 %v1889
  %2447 = vmatprep.subr.bf16.mxu0 %v1911
  %2448 = vmatpush1.bf16.msra.mxu0 %v1910
  %2449 = vmatprep.subr.bf16.mxu0 %v1932
  %2450 = vmatpush1.bf16.msra.mxu0 %v1931
  %2451 = vmatprep.subr.bf16.mxu0 %v1953
  %2452 = vmatpush1.bf16.msra.mxu0 %v1952
  %2453 = vmatprep.subr.bf16.mxu0 %v1974
  %2454 = vmatpush1.bf16.msra.mxu0 %v1973
  %2455 = vmatprep.subr.bf16.mxu0 %v1995
  %2456 = vmatpush1.bf16.msra.mxu0 %v1994
  %2457 = vmatprep.subr.bf16.mxu0 %v2016
  %2458 = vmatpush1.bf16.msra.mxu0 %v2015
  %2459 = vmatprep.subr.bf16.mxu0 %v2037
  %2460 = vmatpush1.bf16.msra.mxu0 %v2036
  %2461 = vmatprep.subr.bf16.mxu0 %v2058
  %2462 = vmatpush1.bf16.msra.mxu0 %v2057
  %2463 = vmatprep.subr.bf16.mxu0 0
  %2464 = vmatpush1.bf16.msra.mxu0 0
  %2465 = vmatprep.subr.bf16.mxu0 0
  %2466 = vmatpush1.bf16.msra.mxu0 0
  %2467 = vmatprep.subr.bf16.mxu0 0
  %2468 = vmatpush1.bf16.msra.mxu0 0
  %2469 = vmatprep.subr.bf16.mxu0 0
  %2470 = vmatpush1.bf16.msra.mxu0 0
  %2471 = vmatprep.subr.bf16.mxu0 0
  %2472 = vmatpush1.bf16.msra.mxu0 0
  %2473 = vmatprep.subr.bf16.mxu0 0
  %2474 = vmatpush1.bf16.msra.mxu0 0
  %2475 = vmatprep.subr.bf16.mxu0 0
  %2476 = vmatpush1.bf16.msra.mxu0 0
  %2477 = vmatprep.mubr.bf16.mxu0 %v2074
  %2478 = vmatmul.mubr.bf16.gmra.mrb[0].mxu0 %v2069
  %v2479 = vpop.f32.mrb[0].mxu0
  %v2480 = vadd.f32 %v2064, %v2479
  %v2481 = vpop.f32.mrb[0].mxu0
  %v2482 = vadd.f32 %v2064, %v2481
  %v2483 = vpop.f32.mrb[0].mxu0
  %v2484 = vpop.f32.mrb[0].mxu0
  %2485 = vdwg.mxu0
  %2486 = vmatprep.subr.bf16.mxu0 0
  %2487 = vmatpush1.bf16.msra.mxu0 %v1891
  %2488 = vmatprep.subr.bf16.mxu0 0
  %2489 = vmatpush1.bf16.msra.mxu0 %v1912
  %2490 = vmatprep.subr.bf16.mxu0 0
  %2491 = vmatpush1.bf16.msra.mxu0 %v1933
  %2492 = vmatprep.subr.bf16.mxu0 0
  %2493 = vmatpush1.bf16.msra.mxu0 %v1954
  %2494 = vmatprep.subr.bf16.mxu0 0
  %2495 = vmatpush1.bf16.msra.mxu0 %v1975
  %2496 = vmatprep.subr.bf16.mxu0 0
  %2497 = vmatpush1.bf16.msra.mxu0 %v1996
  %2498 = vmatprep.subr.bf16.mxu0 0
  %2499 = vmatpush1.bf16.msra.mxu0 %v2017
  %2500 = vmatprep.subr.bf16.mxu0 0
  %2501 = vmatpush1.bf16.msra.mxu0 %v2038
  %2502 = vmatprep.subr.bf16.mxu0 0
  %2503 = vmatpush1.bf16.msra.mxu0 %v2059
  %2504 = vmatprep.subr.bf16.mxu0 0
  %2505 = vmatpush1.bf16.msra.mxu0 0
  %2506 = vmatprep.subr.bf16.mxu0 0
  %2507 = vmatpush1.bf16.msra.mxu0 0
  %2508 = vmatprep.subr.bf16.mxu0 0
  %2509 = vmatpush1.bf16.msra.mxu0 0
  %2510 = vmatprep.subr.bf16.mxu0 0
  %2511 = vmatpush1.bf16.msra.mxu0 0
  %2512 = vmatprep.subr.bf16.mxu0 0
  %2513 = vmatpush1.bf16.msra.mxu0 0
  %2514 = vmatprep.subr.bf16.mxu0 0
  %2515 = vmatpush1.bf16.msra.mxu0 0
  %2516 = vmatprep.subr.bf16.mxu0 0
  %2517 = vmatpush1.bf16.msra.mxu0 0
  %2518 = vmatprep.mubr.bf16.mxu0 %v2074
  %2519 = vmatmul.mubr.bf16.gmra.mrb[0].mxu0 %v2069
  %v2520 = vpop.f32.mrb[0].mxu0
  %v2521 = vadd.f32 %v2064, %v2520
  %v2522 = vpop.f32.mrb[0].mxu0
  %v2523 = vpop.f32.mrb[0].mxu0
  %v2524 = vpop.f32.mrb[0].mxu0
  %2525 = vdwg.mxu0
  %v2526 = vmax.f32 %v2111, 0.0
  %v2527 = vmax.f32 %v2113, 0.0
  %v2528 = vmax.f32 %v2152, 0.0
  %v2529 = vmax.f32 %v2154, 0.0
  %v2530 = vmax.f32 %v2193, 0.0
  %v2531 = vmax.f32 %v2195, 0.0
  %v2532 = vmax.f32 %v2234, 0.0
  %v2533 = vmax.f32 %v2236, 0.0
  %v2534 = vmax.f32 %v2275, 0.0
  %v2535 = vmax.f32 %v2277, 0.0
  %v2536 = vmax.f32 %v2316, 0.0
  %v2537 = vmax.f32 %v2318, 0.0
  %v2538 = vmax.f32 %v2357, 0.0
  %v2539 = vmax.f32 %v2359, 0.0
  %v2540 = vmax.f32 %v2398, 0.0
  %v2541 = vmax.f32 %v2400, 0.0
  %v2542 = vmax.f32 %v2439, 0.0
  %v2543 = vmax.f32 %v2441, 0.0
  %v2544 = vmax.f32 %v2480, 0.0
  %v2545 = vmax.f32 %v2482, 0.0
  %v2546 = vmax.f32 %v2521, 0.0
  %v2547 = vld [vmem:[%s3] sm:$0xff]
  %v2548 = vld [vmem:[%s3 + $0x8] sm:$0xff]
  %v2549 = vld [vmem:[%s3 + $0x10] sm:$0xff]
  %v2550 = vld [vmem:[%s3 + $0x18] sm:$0xff]
  %v2551 = vld [vmem:[%s3 + $0x20] sm:$0xff]
  %v2552 = vld [vmem:[%s3 + $0x28] sm:$0xff]
  %v2553 = vld [vmem:[%s3 + $0x30] sm:$0xff]
  %v2554 = vld [vmem:[%s3 + $0x38] sm:$0xff]
  %v2555 = vld [vmem:[%s3 + $0x40] sm:$0xff]
  %v2556 = vld [vmem:[%s3 + $0x48] sm:$0xff]
  %v2557 = vld [vmem:[%s3 + $0x50] sm:$0xff]
  %v2558 = vld [vmem:[%s3 + $0x58] sm:$0xff]
  %v2559 = vld [vmem:[%s3 + $0x60] sm:$0xff]
  %v2560 = vld [vmem:[%s3 + $0x68] sm:$0xff]
  %v2561 = vld [vmem:[%s3 + $0x70] sm:$0xff]
  %v2562 = vld [vmem:[%s3 + $0x78] sm:$0xff]
  %v2563 = vld [vmem:[%s3 + $0x80] sm:$0xff]
  %v2564 = vld [vmem:[%s3 + $0x88] sm:$0xff]
  %v2565 = vld [vmem:[%s3 + $0x90] sm:$0xff]
  %v2566 = vld [vmem:[%s3 + $0x98] sm:$0xff]
  %v2567 = vld [vmem:[%s3 + $0xa0] sm:$0xff]
  %v2568 = vld [vmem:[%s3 + $0xa8] sm:$0xff]
  %v2569 = vld [vmem:[%s3 + $0xb0] sm:$0xff]
  %v2570 = vld [vmem:[%s3 + $0xb8] sm:$0xff]
  %v2571 = vld [vmem:[%s3 + $0xc0] sm:$0xff]
  %v2572 = vld [vmem:[%s3 + $0xc8] sm:$0xff]
  %v2573 = vld [vmem:[%s3 + $0xd0] sm:$0xff]
  %v2574 = vld [vmem:[%s3 + $0xd8] sm:$0xff]
  %v2575 = vld [vmem:[%s3 + $0xe0] sm:$0xff]
  %v2576 = vld [vmem:[%s3 + $0xe8] sm:$0xff]
  %v2577 = vld [vmem:[%s3 + $0xf0] sm:$0xff]
  %v2578 = vld [vmem:[%s3 + $0xf8] sm:$0xff]
  %v2579 = vld [vmem:[%s3 + $0x100] sm:$0xff]
  %v2580 = vld [vmem:[%s3 + $0x108] sm:$0xff]
  %v2581 = vld [vmem:[%s3 + $0x110] sm:$0xff]
  %v2582 = vld [vmem:[%s3 + $0x118] sm:$0xff]
  %v2583 = vld [vmem:[%s3 + $0x120] sm:$0xff]
  %v2584 = vld [vmem:[%s3 + $0x128] sm:$0xff]
  %v2585 = vld [vmem:[%s3 + $0x130] sm:$0xff]
  %v2586 = vld [vmem:[%s3 + $0x138] sm:$0xff]
  %v2587 = vld [vmem:[%s3 + $0x140] sm:$0xff]
  %v2588 = vld [vmem:[%s3 + $0x148] sm:$0xff]
  %v2589 = vld [vmem:[%s3 + $0x150] sm:$0xff]
  %v2590 = vld [vmem:[%s3 + $0x158] sm:$0xff]
  %v2591 = vld [vmem:[%s3 + $0x160] sm:$0xff]
  %v2592 = vld [vmem:[%s3 + $0x168] sm:$0xff]
  %v2593 = vld [vmem:[%s3 + $0x170] sm:$0xff]
  %v2594 = vld [vmem:[%s3 + $0x178] sm:$0xff]
  %v2595 = vld [vmem:[%s3 + $0x180] sm:$0xff]
  %v2596 = vld [vmem:[%s3 + $0x188] sm:$0xff]
  %v2597 = vld [vmem:[%s3 + $0x190] sm:$0xff]
  %v2598 = vld [vmem:[%s3 + $0x198] sm:$0xff]
  %v2599 = vld [vmem:[%s3 + $0x1a0] sm:$0xff]
  %v2600 = vld [vmem:[%s3 + $0x1a8] sm:$0xff]
  %v2601 = vld [vmem:[%s3 + $0x1b0] sm:$0xff]
  %v2602 = vld [vmem:[%s3 + $0x1b8] sm:$0xff]
  %v2603 = vld [vmem:[%s3 + $0x1c0] sm:$0xff]
  %v2604 = vld [vmem:[%s3 + $0x1c8] sm:$0xff]
  %v2605 = vld [vmem:[%s3 + $0x1d0] sm:$0xff]
  %v2606 = vld [vmem:[%s3 + $0x1d8] sm:$0xff]
  %v2607 = vld [vmem:[%s3 + $0x1e0] sm:$0xff]
  %v2608 = vld [vmem:[%s3 + $0x1e8] sm:$0xff]
  %v2609 = vld [vmem:[%s3 + $0x1f0] sm:$0xff]
  %v2610 = vld [vmem:[%s3 + $0x1f8] sm:$0xff]
  %v2611 = vld [vmem:[%s3 + $0x200] sm:$0xff]
  %v2612 = vld [vmem:[%s3 + $0x208] sm:$0xff]
  %v2613 = vld [vmem:[%s3 + $0x210] sm:$0xff]
  %v2614 = vld [vmem:[%s3 + $0x218] sm:$0xff]
  %v2615 = vld [vmem:[%s3 + $0x220] sm:$0xff]
  %v2616 = vld [vmem:[%s3 + $0x228] sm:$0xff]
  %v2617 = vld [vmem:[%s3 + $0x230] sm:$0xff]
  %v2618 = vld [vmem:[%s3 + $0x238] sm:$0xff]
  %v2619 = vld [vmem:[%s3 + $0x240] sm:$0xff]
  %v2620 = vld [vmem:[%s3 + $0x248] sm:$0xff]
  %v2621 = vld [vmem:[%s3 + $0x250] sm:$0xff]
  %v2622 = vld [vmem:[%s3 + $0x258] sm:$0xff]
  %v2623 = vld [vmem:[%s3 + $0x260] sm:$0xff]
  %v2624 = vld [vmem:[%s3 + $0x268] sm:$0xff]
  %v2625 = vld [vmem:[%s3 + $0x270] sm:$0xff]
  %v2626 = vld [vmem:[%s3 + $0x278] sm:$0xff]
  %v2627 = vld [vmem:[%s3 + $0x280] sm:$0xff]
  %v2628 = vld [vmem:[%s3 + $0x288] sm:$0xff]
  %v2629 = vld [vmem:[%s3 + $0x290] sm:$0xff]
  %v2630 = vld [vmem:[%s3 + $0x298] sm:$0xff]
  %v2631 = vld [vmem:[%s3 + $0x2a0] sm:$0xff]
  %v2632 = vld [vmem:[%s3 + $0x2a8] sm:$0xff]
  %v2633 = vld [vmem:[%s3 + $0x2b0] sm:$0xff]
  %v2634 = vld [vmem:[%s3 + $0x2b8] sm:$0xff]
  %v2635 = vld [vmem:[%s3 + $0x2c0] sm:$0xff]
  %v2636 = vld [vmem:[%s3 + $0x2c8] sm:$0xff]
  %v2637 = vld [vmem:[%s3 + $0x2d0] sm:$0xff]
  %v2638 = vld [vmem:[%s3 + $0x2d8] sm:$0xff]
  %v2639 = vld [vmem:[%s3 + $0x2e0] sm:$0xff]
  %v2640 = vld [vmem:[%s3 + $0x2e8] sm:$0xff]
  %v2641 = vld [vmem:[%s3 + $0x2f0] sm:$0xff]
  %v2642 = vld [vmem:[%s3 + $0x2f8] sm:$0xff]
  %v2643 = vld [vmem:[%s3 + $0x300] sm:$0xff]
  %v2644 = vld [vmem:[%s3 + $0x308] sm:$0xff]
  %v2645 = vld [vmem:[%s3 + $0x310] sm:$0xff]
  %v2646 = vld [vmem:[%s3 + $0x318] sm:$0xff]
  %v2647 = vld [vmem:[%s3 + $0x320] sm:$0xff]
  %v2648 = vld [vmem:[%s3 + $0x328] sm:$0xff]
  %v2649 = vld [vmem:[%s3 + $0x330] sm:$0xff]
  %v2650 = vld [vmem:[%s3 + $0x338] sm:$0xff]
  %v2651 = vld [vmem:[%s3 + $0x340] sm:$0xff]
  %v2652 = vld [vmem:[%s3 + $0x348] sm:$0xff]
  %v2653 = vld [vmem:[%s3 + $0x350] sm:$0xff]
  %v2654 = vld [vmem:[%s3 + $0x358] sm:$0xff]
  %v2655 = vld [vmem:[%s3 + $0x360] sm:$0xff]
  %v2656 = vld [vmem:[%s3 + $0x368] sm:$0xff]
  %v2657 = vld [vmem:[%s3 + $0x370] sm:$0xff]
  %v2658 = vld [vmem:[%s3 + $0x378] sm:$0xff]
  %v2659 = vld [vmem:[%s3 + $0x380] sm:$0xff]
  %v2660 = vld [vmem:[%s3 + $0x388] sm:$0xff]
  %v2661 = vld [vmem:[%s3 + $0x390] sm:$0xff]
  %v2662 = vld [vmem:[%s3 + $0x398] sm:$0xff]
  %v2663 = vld [vmem:[%s3 + $0x3a0] sm:$0xff]
  %v2664 = vld [vmem:[%s3 + $0x3a8] sm:$0xff]
  %v2665 = vld [vmem:[%s3 + $0x3b0] sm:$0xff]
  %v2666 = vld [vmem:[%s3 + $0x3b8] sm:$0xff]
  %v2667 = vld [vmem:[%s3 + $0x3c0] sm:$0xff]
  %v2668 = vld [vmem:[%s3 + $0x3c8] sm:$0xff]
  %v2669 = vld [vmem:[%s3 + $0x3d0] sm:$0xff]
  %v2670 = vld [vmem:[%s3 + $0x3d8] sm:$0xff]
  %v2671 = vld [vmem:[%s3 + $0x3e0] sm:$0xff]
  %v2672 = vld [vmem:[%s3 + $0x3e8] sm:$0xff]
  %v2673 = vld [vmem:[%s3 + $0x3f0] sm:$0xff]
  %v2674 = vld [vmem:[%s3 + $0x3f8] sm:$0xff]
  %v2675 = vld [vmem:[%s3 + $0x400] sm:$0xff]
  %v2676 = vld [vmem:[%s3 + $0x408] sm:$0xff]
  %v2677 = vld [vmem:[%s3 + $0x410] sm:$0xff]
  %v2678 = vld [vmem:[%s3 + $0x418] sm:$0xff]
  %v2679 = vld [vmem:[%s3 + $0x420] sm:$0xff]
  %v2680 = vld [vmem:[%s3 + $0x428] sm:$0xff]
  %v2681 = vld [vmem:[%s3 + $0x430] sm:$0xff]
  %v2682 = vld [vmem:[%s3 + $0x438] sm:$0xff]
  %v2683 = vld [vmem:[%s3 + $0x440] sm:$0xff]
  %v2684 = vld [vmem:[%s3 + $0x448] sm:$0xff]
  %v2685 = vld [vmem:[%s3 + $0x450] sm:$0xff]
  %v2686 = vld [vmem:[%s3 + $0x458] sm:$0xff]
  %v2687 = vld [vmem:[%s3 + $0x460] sm:$0xff]
  %v2688 = vld [vmem:[%s3 + $0x468] sm:$0xff]
  %v2689 = vld [vmem:[%s3 + $0x470] sm:$0xff]
  %v2690 = vld [vmem:[%s3 + $0x478] sm:$0xff]
  %v2691 = vld [vmem:[%s3 + $0x480] sm:$0xff]
  %v2692 = vld [vmem:[%s3 + $0x488] sm:$0xff]
  %v2693 = vld [vmem:[%s3 + $0x490] sm:$0xff]
  %v2694 = vld [vmem:[%s3 + $0x498] sm:$0xff]
  %v2695 = vld [vmem:[%s3 + $0x4a0] sm:$0xff]
  %v2696 = vld [vmem:[%s3 + $0x4a8] sm:$0xff]
  %v2697 = vld [vmem:[%s3 + $0x4b0] sm:$0xff]
  %v2698 = vld [vmem:[%s3 + $0x4b8] sm:$0xff]
  %v2699 = vld [vmem:[%s3 + $0x4c0] sm:$0xff]
  %v2700 = vld [vmem:[%s3 + $0x4c8] sm:$0xff]
  %v2701 = vld [vmem:[%s3 + $0x4d0] sm:$0xff]
  %v2702 = vld [vmem:[%s3 + $0x4d8] sm:$0xff]
  %v2703 = vld [vmem:[%s3 + $0x4e0] sm:$0xff]
  %v2704 = vld [vmem:[%s3 + $0x4e8] sm:$0xff]
  %v2705 = vld [vmem:[%s3 + $0x4f0] sm:$0xff]
  %v2706 = vld [vmem:[%s3 + $0x4f8] sm:$0xff]
  %v2707 = vld [vmem:[%s3 + $0x500] sm:$0xff]
  %v2708 = vld [vmem:[%s3 + $0x508] sm:$0xff]
  %v2709 = vld [vmem:[%s3 + $0x510] sm:$0xff]
  %v2710 = vld [vmem:[%s3 + $0x518] sm:$0xff]
  %v2711 = vld [vmem:[%s3 + $0x520] sm:$0xff]
  %v2712 = vld [vmem:[%s3 + $0x528] sm:$0xff]
  %v2713 = vld [vmem:[%s3 + $0x530] sm:$0xff]
  %v2714 = vld [vmem:[%s3 + $0x538] sm:$0xff]
  %v2715 = vld [vmem:[%s3 + $0x540] sm:$0xff]
  %v2716 = vld [vmem:[%s3 + $0x548] sm:$0xff]
  %v2717 = vld [vmem:[%s3 + $0x550] sm:$0xff]
  %v2718 = vld [vmem:[%s3 + $0x558] sm:$0xff]
  %v2719 = vld [vmem:[%s3 + $0x560] sm:$0xff]
  %v2720 = vld [vmem:[%s3 + $0x568] sm:$0xff]
  %v2721 = vld [vmem:[%s3 + $0x570] sm:$0xff]
  %v2722 = vld [vmem:[%s3 + $0x578] sm:$0xff]
  %v2723 = vld [vmem:[%s3 + $0x580] sm:$0xff]
  %v2724 = vld [vmem:[%s3 + $0x588] sm:$0xff]
  %v2725 = vld [vmem:[%s3 + $0x590] sm:$0xff]
  %v2726 = vld [vmem:[%s3 + $0x598] sm:$0xff]
  %v2727 = vld [vmem:[%s3 + $0x5a0] sm:$0xff]
  %v2728 = vld [vmem:[%s3 + $0x5a8] sm:$0xff]
  %v2729 = vld [vmem:[%s3 + $0x5b0] sm:$0xff]
  %v2730 = vld [vmem:[%s3 + $0x5b8] sm:$0xff]
  %v2731 = vld [vmem:[%s3 + $0x5c0] sm:$0xff]
  %v2732 = vld [vmem:[%s3 + $0x5c8] sm:$0xff]
  %v2733 = vld [vmem:[%s3 + $0x5d0] sm:$0xff]
  %v2734 = vld [vmem:[%s3 + $0x5d8] sm:$0xff]
  %v2735 = vld [vmem:[%s3 + $0x5e0] sm:$0xff]
  %v2736 = vld [vmem:[%s3 + $0x5e8] sm:$0xff]
  %v2737 = vld [vmem:[%s3 + $0x5f0] sm:$0xff]
  %v2738 = vld [vmem:[%s3 + $0x5f8] sm:$0xff]
  %v2739 = vld [vmem:[%s3 + $0x600] sm:$0xff]
  %v2740 = vld [vmem:[%s3 + $0x608] sm:$0xff]
  %v2741 = vld [vmem:[%s3 + $0x610] sm:$0xff]
  %v2742 = vld [vmem:[%s3 + $0x618] sm:$0xff]
  %v2743 = vld [vmem:[%s3 + $0x620] sm:$0xff]
  %v2744 = vld [vmem:[%s3 + $0x628] sm:$0xff]
  %v2745 = vld [vmem:[%s3 + $0x630] sm:$0xff]
  %v2746 = vld [vmem:[%s3 + $0x638] sm:$0xff]
  %v2747 = vld [vmem:[%s3 + $0x640] sm:$0xff]
  %v2748 = vld [vmem:[%s3 + $0x648] sm:$0xff]
  %v2749 = vld [vmem:[%s3 + $0x650] sm:$0xff]
  %v2750 = vld [vmem:[%s3 + $0x658] sm:$0xff]
  %v2751 = vld [vmem:[%s3 + $0x660] sm:$0xff]
  %v2752 = vld [vmem:[%s3 + $0x668] sm:$0xff]
  %v2753 = vld [vmem:[%s3 + $0x670] sm:$0xff]
  %v2754 = vld [vmem:[%s3 + $0x678] sm:$0xff]
  %v2755 = vld [vmem:[%s3 + $0x680] sm:$0xff]
  %v2756 = vld [vmem:[%s3 + $0x688] sm:$0xff]
  %v2757 = vld [vmem:[%s3 + $0x690] sm:$0xff]
  %v2758 = vld [vmem:[%s3 + $0x698] sm:$0xff]
  %v2759 = vld [vmem:[%s3 + $0x6a0] sm:$0xff]
  %v2760 = vld [vmem:[%s3 + $0x6a8] sm:$0xff]
  %v2761 = vld [vmem:[%s3 + $0x6b0] sm:$0xff]
  %v2762 = vld [vmem:[%s3 + $0x6b8] sm:$0xff]
  %v2763 = vld [vmem:[%s3 + $0x6c0] sm:$0xff]
  %v2764 = vld [vmem:[%s3 + $0x6c8] sm:$0xff]
  %v2765 = vld [vmem:[%s3 + $0x6d0] sm:$0xff]
  %v2766 = vld [vmem:[%s3 + $0x6d8] sm:$0xff]
  %v2767 = vld [vmem:[%s3 + $0x6e0] sm:$0xff]
  %v2768 = vld [vmem:[%s3 + $0x6e8] sm:$0xff]
  %v2769 = vld [vmem:[%s3 + $0x6f0] sm:$0xff]
  %v2770 = vld [vmem:[%s3 + $0x6f8] sm:$0xff]
  %v2771 = vld [vmem:[%s3 + $0x700] sm:$0xff]
  %v2772 = vld [vmem:[%s3 + $0x708] sm:$0xff]
  %v2773 = vld [vmem:[%s3 + $0x710] sm:$0xff]
  %v2774 = vld [vmem:[%s3 + $0x718] sm:$0xff]
  %v2775 = vld [vmem:[%s3 + $0x720] sm:$0xff]
  %v2776 = vld [vmem:[%s3 + $0x728] sm:$0xff]
  %v2777 = vld [vmem:[%s3 + $0x730] sm:$0xff]
  %v2778 = vld [vmem:[%s3 + $0x738] sm:$0xff]
  %v2779 = vld [vmem:[%s3 + $0x740] sm:$0xff]
  %v2780 = vld [vmem:[%s3 + $0x748] sm:$0xff]
  %v2781 = vld [vmem:[%s3 + $0x750] sm:$0xff]
  %v2782 = vld [vmem:[%s3 + $0x758] sm:$0xff]
  %v2783 = vld [vmem:[%s3 + $0x760] sm:$0xff]
  %v2784 = vld [vmem:[%s3 + $0x768] sm:$0xff]
  %v2785 = vld [vmem:[%s3 + $0x770] sm:$0xff]
  %v2786 = vld [vmem:[%s3 + $0x778] sm:$0xff]
  %v2787 = vld [vmem:[%s3 + $0x780] sm:$0xff]
  %v2788 = vld [vmem:[%s3 + $0x788] sm:$0xff]
  %v2789 = vld [vmem:[%s3 + $0x790] sm:$0xff]
  %v2790 = vld [vmem:[%s3 + $0x798] sm:$0xff]
  %v2791 = vld [vmem:[%s3 + $0x7a0] sm:$0xff]
  %v2792 = vld [vmem:[%s3 + $0x7a8] sm:$0xff]
  %v2793 = vld [vmem:[%s3 + $0x7b0] sm:$0xff]
  %v2794 = vld [vmem:[%s3 + $0x7b8] sm:$0xff]
  %v2795 = vld [vmem:[%s3 + $0x7c0] sm:$0xff]
  %v2796 = vld [vmem:[%s3 + $0x7c8] sm:$0xff]
  %v2797 = vld [vmem:[%s3 + $0x7d0] sm:$0xff]
  %v2798 = vld [vmem:[%s3 + $0x7d8] sm:$0xff]
  %v2799 = vld [vmem:[%s3 + $0x7e0] sm:$0xff]
  %v2800 = vld [vmem:[%s3 + $0x7e8] sm:$0xff]
  %v2801 = vld [vmem:[%s3 + $0x7f0] sm:$0xff]
  %v2802 = vld [vmem:[%s3 + $0x7f8] sm:$0xff]
  %v2803 = vld [vmem:[%s3 + $0x800] sm:$0xff]
  %v2804 = vld [vmem:[%s3 + $0x808] sm:$0xff]
  %v2805 = vld [vmem:[%s3 + $0x810] sm:$0xff]
  %v2806 = vld [vmem:[%s3 + $0x818] sm:$0xff]
  %v2807 = vld [vmem:[%s3 + $0x820] sm:$0xff]
  %v2808 = vld [vmem:[%s3 + $0x828] sm:$0xff]
  %v2809 = vld [vmem:[%s3 + $0x830] sm:$0xff]
  %v2810 = vld [vmem:[%s3 + $0x838] sm:$0xff]
  %v2811 = vld [vmem:[%s3 + $0x840] sm:$0xff]
  %v2812 = vld [vmem:[%s3 + $0x848] sm:$0xff]
  %v2813 = vld [vmem:[%s3 + $0x850] sm:$0xff]
  %v2814 = vld [vmem:[%s3 + $0x858] sm:$0xff]
  %v2815 = vld [vmem:[%s3 + $0x860] sm:$0xff]
  %v2816 = vld [vmem:[%s3 + $0x868] sm:$0xff]
  %v2817 = vld [vmem:[%s3 + $0x870] sm:$0xff]
  %v2818 = vld [vmem:[%s3 + $0x878] sm:$0xff]
  %v2819 = vld [vmem:[%s3 + $0x880] sm:$0xff]
  %v2820 = vld [vmem:[%s3 + $0x888] sm:$0xff]
  %v2821 = vld [vmem:[%s3 + $0x890] sm:$0xff]
  %v2822 = vld [vmem:[%s3 + $0x898] sm:$0xff]
  %v2823 = vld [vmem:[%s3 + $0x8a0] sm:$0xff]
  %v2824 = vld [vmem:[%s3 + $0x8a8] sm:$0xff]
  %v2825 = vld [vmem:[%s3 + $0x8b0] sm:$0xff]
  %v2826 = vld [vmem:[%s3 + $0x8b8] sm:$0xff]
  %v2827 = vld [vmem:[%s3 + $0x8c0] sm:$0xff]
  %v2828 = vld [vmem:[%s3 + $0x8c8] sm:$0xff]
  %v2829 = vld [vmem:[%s3 + $0x8d0] sm:$0xff]
  %v2830 = vld [vmem:[%s3 + $0x8d8] sm:$0xff]
  %v2831 = vld [vmem:[%s3 + $0x8e0] sm:$0xff]
  %v2832 = vld [vmem:[%s3 + $0x8e8] sm:$0xff]
  %v2833 = vld [vmem:[%s3 + $0x8f0] sm:$0xff]
  %v2834 = vld [vmem:[%s3 + $0x8f8] sm:$0xff]
  %v2835 = vld [vmem:[%s3 + $0x900] sm:$0xff]
  %v2836 = vld [vmem:[%s3 + $0x908] sm:$0xff]
  %v2837 = vld [vmem:[%s3 + $0x910] sm:$0xff]
  %v2838 = vld [vmem:[%s3 + $0x918] sm:$0xff]
  %v2839 = vld [vmem:[%s3 + $0x920] sm:$0xff]
  %v2840 = vld [vmem:[%s3 + $0x928] sm:$0xff]
  %v2841 = vld [vmem:[%s3 + $0x930] sm:$0xff]
  %v2842 = vld [vmem:[%s3 + $0x938] sm:$0xff]
  %v2843 = vld [vmem:[%s3 + $0x940] sm:$0xff]
  %v2844 = vld [vmem:[%s3 + $0x948] sm:$0xff]
  %v2845 = vld [vmem:[%s3 + $0x950] sm:$0xff]
  %v2846 = vld [vmem:[%s3 + $0x958] sm:$0xff]
  %v2847 = vld [vmem:[%s3 + $0x960] sm:$0xff]
  %v2848 = vld [vmem:[%s3 + $0x968] sm:$0xff]
  %v2849 = vld [vmem:[%s3 + $0x970] sm:$0xff]
  %v2850 = vld [vmem:[%s3 + $0x978] sm:$0xff]
  %v2851 = vld [vmem:[%s3 + $0x980] sm:$0xff]
  %v2852 = vld [vmem:[%s3 + $0x988] sm:$0xff]
  %v2853 = vld [vmem:[%s3 + $0x990] sm:$0xff]
  %v2854 = vld [vmem:[%s3 + $0x998] sm:$0xff]
  %v2855 = vld [vmem:[%s3 + $0x9a0] sm:$0xff]
  %v2856 = vld [vmem:[%s3 + $0x9a8] sm:$0xff]
  %v2857 = vld [vmem:[%s3 + $0x9b0] sm:$0xff]
  %v2858 = vld [vmem:[%s3 + $0x9b8] sm:$0xff]
  %v2859 = vld [vmem:[%s3 + $0x9c0] sm:$0xff]
  %v2860 = vld [vmem:[%s3 + $0x9c8] sm:$0xff]
  %v2861 = vld [vmem:[%s3 + $0x9d0] sm:$0xff]
  %v2862 = vld [vmem:[%s3 + $0x9d8] sm:$0xff]
  %v2863 = vld [vmem:[%s3 + $0x9e0] sm:$0xff]
  %v2864 = vld [vmem:[%s3 + $0x9e8] sm:$0xff]
  %v2865 = vld [vmem:[%s3 + $0x9f0] sm:$0xff]
  %v2866 = vld [vmem:[%s3 + $0x9f8] sm:$0xff]
  %v2867 = vld [vmem:[%s3 + $0xa00] sm:$0xff]
  %v2868 = vld [vmem:[%s3 + $0xa08] sm:$0xff]
  %v2869 = vld [vmem:[%s3 + $0xa10] sm:$0xff]
  %v2870 = vld [vmem:[%s3 + $0xa18] sm:$0xff]
  %v2872 = vsel %vm172, %v2546, 0
  %2874 = vmatprep.subr.mxu0 0.0
  %2875 = vmatpush1.msra.mxu0 %v2547
  %2876 = vmatprep.subr.mxu0 0.0
  %2877 = vmatpush1.msra.mxu0 %v2548
  %2878 = vmatprep.subr.mxu0 0.0
  %2879 = vmatpush1.msra.mxu0 %v2549
  %2880 = vmatprep.subr.mxu0 0.0
  %2881 = vmatpush1.msra.mxu0 %v2550
  %2882 = vmatprep.subr.mxu0 0.0
  %2883 = vmatpush1.msra.mxu0 %v2551
  %2884 = vmatprep.subr.mxu0 0.0
  %2885 = vmatpush1.msra.mxu0 %v2552
  %2886 = vmatprep.subr.mxu0 0.0
  %2887 = vmatpush1.msra.mxu0 %v2553
  %2888 = vmatprep.subr.mxu0 0.0
  %2889 = vmatpush1.msra.mxu0 %v2554
  %2890 = vmatprep.subr.mxu0 0.0
  %2891 = vmatpush1.msra.mxu0 %v2555
  %2892 = vmatprep.subr.mxu0 0.0
  %2893 = vmatpush1.msra.mxu0 %v2556
  %2894 = vmatprep.subr.mxu0 0.0
  %2895 = vmatpush1.msra.mxu0 %v2557
  %2896 = vmatprep.subr.mxu0 0.0
  %2897 = vmatpush1.msra.mxu0 %v2558
  %2898 = vmatprep.subr.mxu0 0.0
  %2899 = vmatpush1.msra.mxu0 %v2559
  %2900 = vmatprep.subr.mxu0 0.0
  %2901 = vmatpush1.msra.mxu0 %v2560
  %2902 = vmatprep.subr.mxu0 0.0
  %2903 = vmatpush1.msra.mxu0 %v2561
  %2904 = vmatprep.subr.mxu0 0.0
  %2905 = vmatpush1.msra.mxu0 %v2562
  %2906 = vmatprep.subr.mxu0 0.0
  %2907 = vmatpush1.msra.mxu0 %v2563
  %2908 = vmatprep.subr.mxu0 0.0
  %2909 = vmatpush1.msra.mxu0 %v2564
  %2910 = vmatprep.subr.mxu0 0.0
  %2911 = vmatpush1.msra.mxu0 %v2565
  %2912 = vmatprep.subr.mxu0 0.0
  %2913 = vmatpush1.msra.mxu0 %v2566
  %2914 = vmatprep.subr.mxu0 0.0
  %2915 = vmatpush1.msra.mxu0 %v2567
  %2916 = vmatprep.subr.mxu0 0.0
  %2917 = vmatpush1.msra.mxu0 %v2568
  %2918 = vmatprep.subr.mxu0 0.0
  %2919 = vmatpush1.msra.mxu0 %v2569
  %2920 = vmatprep.subr.mxu0 0.0
  %2921 = vmatpush1.msra.mxu0 %v2570
  %2922 = vmatprep.subr.mxu0 0.0
  %2923 = vmatpush1.msra.mxu0 %v2571
  %2924 = vmatprep.subr.mxu0 0.0
  %2925 = vmatpush1.msra.mxu0 %v2572
  %2926 = vmatprep.subr.mxu0 0.0
  %2927 = vmatpush1.msra.mxu0 %v2573
  %2928 = vmatprep.subr.mxu0 0.0
  %2929 = vmatpush1.msra.mxu0 %v2574
  %2930 = vmatprep.subr.mxu0 0.0
  %2931 = vmatpush1.msra.mxu0 %v2575
  %2932 = vmatprep.subr.mxu0 0.0
  %2933 = vmatpush1.msra.mxu0 %v2576
  %2934 = vmatprep.subr.mxu0 0.0
  %2935 = vmatpush1.msra.mxu0 %v2577
  %2936 = vmatprep.subr.mxu0 0.0
  %2937 = vmatpush1.msra.mxu0 %v2578
  %2938 = vmatprep.mubr.f32.mxu0 %v2527
  %2939 = vmatmul.mubr.f32.gmra.mrb[0].mxu0 %v2526
  %v2940 = vpop.f32.mrb[0].mxu0
  %v2941 = vadd.f32 0.0, %v2940
  %v2942 = vpop.f32.mrb[0].mxu0
  %2943 = vdwg.mxu0
  %2944 = vmatprep.subr.mxu0 0.0
  %2945 = vmatpush1.msra.mxu0 %v2579
  %2946 = vmatprep.subr.mxu0 0.0
  %2947 = vmatpush1.msra.mxu0 %v2580
  %2948 = vmatprep.subr.mxu0 0.0
  %2949 = vmatpush1.msra.mxu0 %v2581
  %2950 = vmatprep.subr.mxu0 0.0
  %2951 = vmatpush1.msra.mxu0 %v2582
  %2952 = vmatprep.subr.mxu0 0.0
  %2953 = vmatpush1.msra.mxu0 %v2583
  %2954 = vmatprep.subr.mxu0 0.0
  %2955 = vmatpush1.msra.mxu0 %v2584
  %2956 = vmatprep.subr.mxu0 0.0
  %2957 = vmatpush1.msra.mxu0 %v2585
  %2958 = vmatprep.subr.mxu0 0.0
  %2959 = vmatpush1.msra.mxu0 %v2586
  %2960 = vmatprep.subr.mxu0 0.0
  %2961 = vmatpush1.msra.mxu0 %v2587
  %2962 = vmatprep.subr.mxu0 0.0
  %2963 = vmatpush1.msra.mxu0 %v2588
  %2964 = vmatprep.subr.mxu0 0.0
  %2965 = vmatpush1.msra.mxu0 %v2589
  %2966 = vmatprep.subr.mxu0 0.0
  %2967 = vmatpush1.msra.mxu0 %v2590
  %2968 = vmatprep.subr.mxu0 0.0
  %2969 = vmatpush1.msra.mxu0 %v2591
  %2970 = vmatprep.subr.mxu0 0.0
  %2971 = vmatpush1.msra.mxu0 %v2592
  %2972 = vmatprep.subr.mxu0 0.0
  %2973 = vmatpush1.msra.mxu0 %v2593
  %2974 = vmatprep.subr.mxu0 0.0
  %2975 = vmatpush1.msra.mxu0 %v2594
  %2976 = vmatprep.subr.mxu0 0.0
  %2977 = vmatpush1.msra.mxu0 %v2595
  %2978 = vmatprep.subr.mxu0 0.0
  %2979 = vmatpush1.msra.mxu0 %v2596
  %2980 = vmatprep.subr.mxu0 0.0
  %2981 = vmatpush1.msra.mxu0 %v2597
  %2982 = vmatprep.subr.mxu0 0.0
  %2983 = vmatpush1.msra.mxu0 %v2598
  %2984 = vmatprep.subr.mxu0 0.0
  %2985 = vmatpush1.msra.mxu0 %v2599
  %2986 = vmatprep.subr.mxu0 0.0
  %2987 = vmatpush1.msra.mxu0 %v2600
  %2988 = vmatprep.subr.mxu0 0.0
  %2989 = vmatpush1.msra.mxu0 %v2601
  %2990 = vmatprep.subr.mxu0 0.0
  %2991 = vmatpush1.msra.mxu0 %v2602
  %2992 = vmatprep.subr.mxu0 0.0
  %2993 = vmatpush1.msra.mxu0 %v2603
  %2994 = vmatprep.subr.mxu0 0.0
  %2995 = vmatpush1.msra.mxu0 %v2604
  %2996 = vmatprep.subr.mxu0 0.0
  %2997 = vmatpush1.msra.mxu0 %v2605
  %2998 = vmatprep.subr.mxu0 0.0
  %2999 = vmatpush1.msra.mxu0 %v2606
  %3000 = vmatprep.subr.mxu0 0.0
  %3001 = vmatpush1.msra.mxu0 %v2607
  %3002 = vmatprep.subr.mxu0 0.0
  %3003 = vmatpush1.msra.mxu0 %v2608
  %3004 = vmatprep.subr.mxu0 0.0
  %3005 = vmatpush1.msra.mxu0 %v2609
  %3006 = vmatprep.subr.mxu0 0.0
  %3007 = vmatpush1.msra.mxu0 %v2610
  %3008 = vmatprep.mubr.f32.mxu0 %v2529
  %3009 = vmatmul.mubr.f32.gmra.mrb[0].mxu0 %v2528
  %v3010 = vpop.f32.mrb[0].mxu0
  %v3011 = vadd.f32 %v2941, %v3010
  %v3012 = vpop.f32.mrb[0].mxu0
  %3013 = vdwg.mxu0
  %3014 = vmatprep.subr.mxu0 0.0
  %3015 = vmatpush1.msra.mxu0 %v2611
  %3016 = vmatprep.subr.mxu0 0.0
  %3017 = vmatpush1.msra.mxu0 %v2612
  %3018 = vmatprep.subr.mxu0 0.0
  %3019 = vmatpush1.msra.mxu0 %v2613
  %3020 = vmatprep.subr.mxu0 0.0
  %3021 = vmatpush1.msra.mxu0 %v2614
  %3022 = vmatprep.subr.mxu0 0.0
  %3023 = vmatpush1.msra.mxu0 %v2615
  %3024 = vmatprep.subr.mxu0 0.0
  %3025 = vmatpush1.msra.mxu0 %v2616
  %3026 = vmatprep.subr.mxu0 0.0
  %3027 = vmatpush1.msra.mxu0 %v2617
  %3028 = vmatprep.subr.mxu0 0.0
  %3029 = vmatpush1.msra.mxu0 %v2618
  %3030 = vmatprep.subr.mxu0 0.0
  %3031 = vmatpush1.msra.mxu0 %v2619
  %3032 = vmatprep.subr.mxu0 0.0
  %3033 = vmatpush1.msra.mxu0 %v2620
  %3034 = vmatprep.subr.mxu0 0.0
  %3035 = vmatpush1.msra.mxu0 %v2621
  %3036 = vmatprep.subr.mxu0 0.0
  %3037 = vmatpush1.msra.mxu0 %v2622
  %3038 = vmatprep.subr.mxu0 0.0
  %3039 = vmatpush1.msra.mxu0 %v2623
  %3040 = vmatprep.subr.mxu0 0.0
  %3041 = vmatpush1.msra.mxu0 %v2624
  %3042 = vmatprep.subr.mxu0 0.0
  %3043 = vmatpush1.msra.mxu0 %v2625
  %3044 = vmatprep.subr.mxu0 0.0
  %3045 = vmatpush1.msra.mxu0 %v2626
  %3046 = vmatprep.subr.mxu0 0.0
  %3047 = vmatpush1.msra.mxu0 %v2627
  %3048 = vmatprep.subr.mxu0 0.0
  %3049 = vmatpush1.msra.mxu0 %v2628
  %3050 = vmatprep.subr.mxu0 0.0
  %3051 = vmatpush1.msra.mxu0 %v2629
  %3052 = vmatprep.subr.mxu0 0.0
  %3053 = vmatpush1.msra.mxu0 %v2630
  %3054 = vmatprep.subr.mxu0 0.0
  %3055 = vmatpush1.msra.mxu0 %v2631
  %3056 = vmatprep.subr.mxu0 0.0
  %3057 = vmatpush1.msra.mxu0 %v2632
  %3058 = vmatprep.subr.mxu0 0.0
  %3059 = vmatpush1.msra.mxu0 %v2633
  %3060 = vmatprep.subr.mxu0 0.0
  %3061 = vmatpush1.msra.mxu0 %v2634
  %3062 = vmatprep.subr.mxu0 0.0
  %3063 = vmatpush1.msra.mxu0 %v2635
  %3064 = vmatprep.subr.mxu0 0.0
  %3065 = vmatpush1.msra.mxu0 %v2636
  %3066 = vmatprep.subr.mxu0 0.0
  %3067 = vmatpush1.msra.mxu0 %v2637
  %3068 = vmatprep.subr.mxu0 0.0
  %3069 = vmatpush1.msra.mxu0 %v2638
  %3070 = vmatprep.subr.mxu0 0.0
  %3071 = vmatpush1.msra.mxu0 %v2639
  %3072 = vmatprep.subr.mxu0 0.0
  %3073 = vmatpush1.msra.mxu0 %v2640
  %3074 = vmatprep.subr.mxu0 0.0
  %3075 = vmatpush1.msra.mxu0 %v2641
  %3076 = vmatprep.subr.mxu0 0.0
  %3077 = vmatpush1.msra.mxu0 %v2642
  %3078 = vmatprep.mubr.f32.mxu0 %v2531
  %3079 = vmatmul.mubr.f32.gmra.mrb[0].mxu0 %v2530
  %v3080 = vpop.f32.mrb[0].mxu0
  %v3081 = vadd.f32 %v3011, %v3080
  %v3082 = vpop.f32.mrb[0].mxu0
  %3083 = vdwg.mxu0
  %3084 = vmatprep.subr.mxu0 0.0
  %3085 = vmatpush1.msra.mxu0 %v2643
  %3086 = vmatprep.subr.mxu0 0.0
  %3087 = vmatpush1.msra.mxu0 %v2644
  %3088 = vmatprep.subr.mxu0 0.0
  %3089 = vmatpush1.msra.mxu0 %v2645
  %3090 = vmatprep.subr.mxu0 0.0
  %3091 = vmatpush1.msra.mxu0 %v2646
  %3092 = vmatprep.subr.mxu0 0.0
  %3093 = vmatpush1.msra.mxu0 %v2647
  %3094 = vmatprep.subr.mxu0 0.0
  %3095 = vmatpush1.msra.mxu0 %v2648
  %3096 = vmatprep.subr.mxu0 0.0
  %3097 = vmatpush1.msra.mxu0 %v2649
  %3098 = vmatprep.subr.mxu0 0.0
  %3099 = vmatpush1.msra.mxu0 %v2650
  %3100 = vmatprep.subr.mxu0 0.0
  %3101 = vmatpush1.msra.mxu0 %v2651
  %3102 = vmatprep.subr.mxu0 0.0
  %3103 = vmatpush1.msra.mxu0 %v2652
  %3104 = vmatprep.subr.mxu0 0.0
  %3105 = vmatpush1.msra.mxu0 %v2653
  %3106 = vmatprep.subr.mxu0 0.0
  %3107 = vmatpush1.msra.mxu0 %v2654
  %3108 = vmatprep.subr.mxu0 0.0
  %3109 = vmatpush1.msra.mxu0 %v2655
  %3110 = vmatprep.subr.mxu0 0.0
  %3111 = vmatpush1.msra.mxu0 %v2656
  %3112 = vmatprep.subr.mxu0 0.0
  %3113 = vmatpush1.msra.mxu0 %v2657
  %3114 = vmatprep.subr.mxu0 0.0
  %3115 = vmatpush1.msra.mxu0 %v2658
  %3116 = vmatprep.subr.mxu0 0.0
  %3117 = vmatpush1.msra.mxu0 %v2659
  %3118 = vmatprep.subr.mxu0 0.0
  %3119 = vmatpush1.msra.mxu0 %v2660
  %3120 = vmatprep.subr.mxu0 0.0
  %3121 = vmatpush1.msra.mxu0 %v2661
  %3122 = vmatprep.subr.mxu0 0.0
  %3123 = vmatpush1.msra.mxu0 %v2662
  %3124 = vmatprep.subr.mxu0 0.0
  %3125 = vmatpush1.msra.mxu0 %v2663
  %3126 = vmatprep.subr.mxu0 0.0
  %3127 = vmatpush1.msra.mxu0 %v2664
  %3128 = vmatprep.subr.mxu0 0.0
  %3129 = vmatpush1.msra.mxu0 %v2665
  %3130 = vmatprep.subr.mxu0 0.0
  %3131 = vmatpush1.msra.mxu0 %v2666
  %3132 = vmatprep.subr.mxu0 0.0
  %3133 = vmatpush1.msra.mxu0 %v2667
  %3134 = vmatprep.subr.mxu0 0.0
  %3135 = vmatpush1.msra.mxu0 %v2668
  %3136 = vmatprep.subr.mxu0 0.0
  %3137 = vmatpush1.msra.mxu0 %v2669
  %3138 = vmatprep.subr.mxu0 0.0
  %3139 = vmatpush1.msra.mxu0 %v2670
  %3140 = vmatprep.subr.mxu0 0.0
  %3141 = vmatpush1.msra.mxu0 %v2671
  %3142 = vmatprep.subr.mxu0 0.0
  %3143 = vmatpush1.msra.mxu0 %v2672
  %3144 = vmatprep.subr.mxu0 0.0
  %3145 = vmatpush1.msra.mxu0 %v2673
  %3146 = vmatprep.subr.mxu0 0.0
  %3147 = vmatpush1.msra.mxu0 %v2674
  %3148 = vmatprep.mubr.f32.mxu0 %v2533
  %3149 = vmatmul.mubr.f32.gmra.mrb[0].mxu0 %v2532
  %v3150 = vpop.f32.mrb[0].mxu0
  %v3151 = vadd.f32 %v3081, %v3150
  %v3152 = vpop.f32.mrb[0].mxu0
  %3153 = vdwg.mxu0
  %3154 = vmatprep.subr.mxu0 0.0
  %3155 = vmatpush1.msra.mxu0 %v2675
  %3156 = vmatprep.subr.mxu0 0.0
  %3157 = vmatpush1.msra.mxu0 %v2676
  %3158 = vmatprep.subr.mxu0 0.0
  %3159 = vmatpush1.msra.mxu0 %v2677
  %3160 = vmatprep.subr.mxu0 0.0
  %3161 = vmatpush1.msra.mxu0 %v2678
  %3162 = vmatprep.subr.mxu0 0.0
  %3163 = vmatpush1.msra.mxu0 %v2679
  %3164 = vmatprep.subr.mxu0 0.0
  %3165 = vmatpush1.msra.mxu0 %v2680
  %3166 = vmatprep.subr.mxu0 0.0
  %3167 = vmatpush1.msra.mxu0 %v2681
  %3168 = vmatprep.subr.mxu0 0.0
  %3169 = vmatpush1.msra.mxu0 %v2682
  %3170 = vmatprep.subr.mxu0 0.0
  %3171 = vmatpush1.msra.mxu0 %v2683
  %3172 = vmatprep.subr.mxu0 0.0
  %3173 = vmatpush1.msra.mxu0 %v2684
  %3174 = vmatprep.subr.mxu0 0.0
  %3175 = vmatpush1.msra.mxu0 %v2685
  %3176 = vmatprep.subr.mxu0 0.0
  %3177 = vmatpush1.msra.mxu0 %v2686
  %3178 = vmatprep.subr.mxu0 0.0
  %3179 = vmatpush1.msra.mxu0 %v2687
  %3180 = vmatprep.subr.mxu0 0.0
  %3181 = vmatpush1.msra.mxu0 %v2688
  %3182 = vmatprep.subr.mxu0 0.0
  %3183 = vmatpush1.msra.mxu0 %v2689
  %3184 = vmatprep.subr.mxu0 0.0
  %3185 = vmatpush1.msra.mxu0 %v2690
  %3186 = vmatprep.subr.mxu0 0.0
  %3187 = vmatpush1.msra.mxu0 %v2691
  %3188 = vmatprep.subr.mxu0 0.0
  %3189 = vmatpush1.msra.mxu0 %v2692
  %3190 = vmatprep.subr.mxu0 0.0
  %3191 = vmatpush1.msra.mxu0 %v2693
  %3192 = vmatprep.subr.mxu0 0.0
  %3193 = vmatpush1.msra.mxu0 %v2694
  %3194 = vmatprep.subr.mxu0 0.0
  %3195 = vmatpush1.msra.mxu0 %v2695
  %3196 = vmatprep.subr.mxu0 0.0
  %3197 = vmatpush1.msra.mxu0 %v2696
  %3198 = vmatprep.subr.mxu0 0.0
  %3199 = vmatpush1.msra.mxu0 %v2697
  %3200 = vmatprep.subr.mxu0 0.0
  %3201 = vmatpush1.msra.mxu0 %v2698
  %3202 = vmatprep.subr.mxu0 0.0
  %3203 = vmatpush1.msra.mxu0 %v2699
  %3204 = vmatprep.subr.mxu0 0.0
  %3205 = vmatpush1.msra.mxu0 %v2700
  %3206 = vmatprep.subr.mxu0 0.0
  %3207 = vmatpush1.msra.mxu0 %v2701
  %3208 = vmatprep.subr.mxu0 0.0
  %3209 = vmatpush1.msra.mxu0 %v2702
  %3210 = vmatprep.subr.mxu0 0.0
  %3211 = vmatpush1.msra.mxu0 %v2703
  %3212 = vmatprep.subr.mxu0 0.0
  %3213 = vmatpush1.msra.mxu0 %v2704
  %3214 = vmatprep.subr.mxu0 0.0
  %3215 = vmatpush1.msra.mxu0 %v2705
  %3216 = vmatprep.subr.mxu0 0.0
  %3217 = vmatpush1.msra.mxu0 %v2706
  %3218 = vmatprep.mubr.f32.mxu0 %v2535
  %3219 = vmatmul.mubr.f32.gmra.mrb[0].mxu0 %v2534
  %v3220 = vpop.f32.mrb[0].mxu0
  %v3221 = vadd.f32 %v3151, %v3220
  %v3222 = vpop.f32.mrb[0].mxu0
  %3223 = vdwg.mxu0
  %3224 = vmatprep.subr.mxu0 0.0
  %3225 = vmatpush1.msra.mxu0 %v2707
  %3226 = vmatprep.subr.mxu0 0.0
  %3227 = vmatpush1.msra.mxu0 %v2708
  %3228 = vmatprep.subr.mxu0 0.0
  %3229 = vmatpush1.msra.mxu0 %v2709
  %3230 = vmatprep.subr.mxu0 0.0
  %3231 = vmatpush1.msra.mxu0 %v2710
  %3232 = vmatprep.subr.mxu0 0.0
  %3233 = vmatpush1.msra.mxu0 %v2711
  %3234 = vmatprep.subr.mxu0 0.0
  %3235 = vmatpush1.msra.mxu0 %v2712
  %3236 = vmatprep.subr.mxu0 0.0
  %3237 = vmatpush1.msra.mxu0 %v2713
  %3238 = vmatprep.subr.mxu0 0.0
  %3239 = vmatpush1.msra.mxu0 %v2714
  %3240 = vmatprep.subr.mxu0 0.0
  %3241 = vmatpush1.msra.mxu0 %v2715
  %3242 = vmatprep.subr.mxu0 0.0
  %3243 = vmatpush1.msra.mxu0 %v2716
  %3244 = vmatprep.subr.mxu0 0.0
  %3245 = vmatpush1.msra.mxu0 %v2717
  %3246 = vmatprep.subr.mxu0 0.0
  %3247 = vmatpush1.msra.mxu0 %v2718
  %3248 = vmatprep.subr.mxu0 0.0
  %3249 = vmatpush1.msra.mxu0 %v2719
  %3250 = vmatprep.subr.mxu0 0.0
  %3251 = vmatpush1.msra.mxu0 %v2720
  %3252 = vmatprep.subr.mxu0 0.0
  %3253 = vmatpush1.msra.mxu0 %v2721
  %3254 = vmatprep.subr.mxu0 0.0
  %3255 = vmatpush1.msra.mxu0 %v2722
  %3256 = vmatprep.subr.mxu0 0.0
  %3257 = vmatpush1.msra.mxu0 %v2723
  %3258 = vmatprep.subr.mxu0 0.0
  %3259 = vmatpush1.msra.mxu0 %v2724
  %3260 = vmatprep.subr.mxu0 0.0
  %3261 = vmatpush1.msra.mxu0 %v2725
  %3262 = vmatprep.subr.mxu0 0.0
  %3263 = vmatpush1.msra.mxu0 %v2726
  %3264 = vmatprep.subr.mxu0 0.0
  %3265 = vmatpush1.msra.mxu0 %v2727
  %3266 = vmatprep.subr.mxu0 0.0
  %3267 = vmatpush1.msra.mxu0 %v2728
  %3268 = vmatprep.subr.mxu0 0.0
  %3269 = vmatpush1.msra.mxu0 %v2729
  %3270 = vmatprep.subr.mxu0 0.0
  %3271 = vmatpush1.msra.mxu0 %v2730
  %3272 = vmatprep.subr.mxu0 0.0
  %3273 = vmatpush1.msra.mxu0 %v2731
  %3274 = vmatprep.subr.mxu0 0.0
  %3275 = vmatpush1.msra.mxu0 %v2732
  %3276 = vmatprep.subr.mxu0 0.0
  %3277 = vmatpush1.msra.mxu0 %v2733
  %3278 = vmatprep.subr.mxu0 0.0
  %3279 = vmatpush1.msra.mxu0 %v2734
  %3280 = vmatprep.subr.mxu0 0.0
  %3281 = vmatpush1.msra.mxu0 %v2735
  %3282 = vmatprep.subr.mxu0 0.0
  %3283 = vmatpush1.msra.mxu0 %v2736
  %3284 = vmatprep.subr.mxu0 0.0
  %3285 = vmatpush1.msra.mxu0 %v2737
  %3286 = vmatprep.subr.mxu0 0.0
  %3287 = vmatpush1.msra.mxu0 %v2738
  %3288 = vmatprep.mubr.f32.mxu0 %v2537
  %3289 = vmatmul.mubr.f32.gmra.mrb[0].mxu0 %v2536
  %v3290 = vpop.f32.mrb[0].mxu0
  %v3291 = vadd.f32 %v3221, %v3290
  %v3292 = vpop.f32.mrb[0].mxu0
  %3293 = vdwg.mxu0
  %3294 = vmatprep.subr.mxu0 0.0
  %3295 = vmatpush1.msra.mxu0 %v2739
  %3296 = vmatprep.subr.mxu0 0.0
  %3297 = vmatpush1.msra.mxu0 %v2740
  %3298 = vmatprep.subr.mxu0 0.0
  %3299 = vmatpush1.msra.mxu0 %v2741
  %3300 = vmatprep.subr.mxu0 0.0
  %3301 = vmatpush1.msra.mxu0 %v2742
  %3302 = vmatprep.subr.mxu0 0.0
  %3303 = vmatpush1.msra.mxu0 %v2743
  %3304 = vmatprep.subr.mxu0 0.0
  %3305 = vmatpush1.msra.mxu0 %v2744
  %3306 = vmatprep.subr.mxu0 0.0
  %3307 = vmatpush1.msra.mxu0 %v2745
  %3308 = vmatprep.subr.mxu0 0.0
  %3309 = vmatpush1.msra.mxu0 %v2746
  %3310 = vmatprep.subr.mxu0 0.0
  %3311 = vmatpush1.msra.mxu0 %v2747
  %3312 = vmatprep.subr.mxu0 0.0
  %3313 = vmatpush1.msra.mxu0 %v2748
  %3314 = vmatprep.subr.mxu0 0.0
  %3315 = vmatpush1.msra.mxu0 %v2749
  %3316 = vmatprep.subr.mxu0 0.0
  %3317 = vmatpush1.msra.mxu0 %v2750
  %3318 = vmatprep.subr.mxu0 0.0
  %3319 = vmatpush1.msra.mxu0 %v2751
  %3320 = vmatprep.subr.mxu0 0.0
  %3321 = vmatpush1.msra.mxu0 %v2752
  %3322 = vmatprep.subr.mxu0 0.0
  %3323 = vmatpush1.msra.mxu0 %v2753
  %3324 = vmatprep.subr.mxu0 0.0
  %3325 = vmatpush1.msra.mxu0 %v2754
  %3326 = vmatprep.subr.mxu0 0.0
  %3327 = vmatpush1.msra.mxu0 %v2755
  %3328 = vmatprep.subr.mxu0 0.0
  %3329 = vmatpush1.msra.mxu0 %v2756
  %3330 = vmatprep.subr.mxu0 0.0
  %3331 = vmatpush1.msra.mxu0 %v2757
  %3332 = vmatprep.subr.mxu0 0.0
  %3333 = vmatpush1.msra.mxu0 %v2758
  %3334 = vmatprep.subr.mxu0 0.0
  %3335 = vmatpush1.msra.mxu0 %v2759
  %3336 = vmatprep.subr.mxu0 0.0
  %3337 = vmatpush1.msra.mxu0 %v2760
  %3338 = vmatprep.subr.mxu0 0.0
  %3339 = vmatpush1.msra.mxu0 %v2761
  %3340 = vmatprep.subr.mxu0 0.0
  %3341 = vmatpush1.msra.mxu0 %v2762
  %3342 = vmatprep.subr.mxu0 0.0
  %3343 = vmatpush1.msra.mxu0 %v2763
  %3344 = vmatprep.subr.mxu0 0.0
  %3345 = vmatpush1.msra.mxu0 %v2764
  %3346 = vmatprep.subr.mxu0 0.0
  %3347 = vmatpush1.msra.mxu0 %v2765
  %3348 = vmatprep.subr.mxu0 0.0
  %3349 = vmatpush1.msra.mxu0 %v2766
  %3350 = vmatprep.subr.mxu0 0.0
  %3351 = vmatpush1.msra.mxu0 %v2767
  %3352 = vmatprep.subr.mxu0 0.0
  %3353 = vmatpush1.msra.mxu0 %v2768
  %3354 = vmatprep.subr.mxu0 0.0
  %3355 = vmatpush1.msra.mxu0 %v2769
  %3356 = vmatprep.subr.mxu0 0.0
  %3357 = vmatpush1.msra.mxu0 %v2770
  %3358 = vmatprep.mubr.f32.mxu0 %v2539
  %3359 = vmatmul.mubr.f32.gmra.mrb[0].mxu0 %v2538
  %v3360 = vpop.f32.mrb[0].mxu0
  %v3361 = vadd.f32 %v3291, %v3360
  %v3362 = vpop.f32.mrb[0].mxu0
  %3363 = vdwg.mxu0
  %3364 = vmatprep.subr.mxu0 0.0
  %3365 = vmatpush1.msra.mxu0 %v2771
  %3366 = vmatprep.subr.mxu0 0.0
  %3367 = vmatpush1.msra.mxu0 %v2772
  %3368 = vmatprep.subr.mxu0 0.0
  %3369 = vmatpush1.msra.mxu0 %v2773
  %3370 = vmatprep.subr.mxu0 0.0
  %3371 = vmatpush1.msra.mxu0 %v2774
  %3372 = vmatprep.subr.mxu0 0.0
  %3373 = vmatpush1.msra.mxu0 %v2775
  %3374 = vmatprep.subr.mxu0 0.0
  %3375 = vmatpush1.msra.mxu0 %v2776
  %3376 = vmatprep.subr.mxu0 0.0
  %3377 = vmatpush1.msra.mxu0 %v2777
  %3378 = vmatprep.subr.mxu0 0.0
  %3379 = vmatpush1.msra.mxu0 %v2778
  %3380 = vmatprep.subr.mxu0 0.0
  %3381 = vmatpush1.msra.mxu0 %v2779
  %3382 = vmatprep.subr.mxu0 0.0
  %3383 = vmatpush1.msra.mxu0 %v2780
  %3384 = vmatprep.subr.mxu0 0.0
  %3385 = vmatpush1.msra.mxu0 %v2781
  %3386 = vmatprep.subr.mxu0 0.0
  %3387 = vmatpush1.msra.mxu0 %v2782
  %3388 = vmatprep.subr.mxu0 0.0
  %3389 = vmatpush1.msra.mxu0 %v2783
  %3390 = vmatprep.subr.mxu0 0.0
  %3391 = vmatpush1.msra.mxu0 %v2784
  %3392 = vmatprep.subr.mxu0 0.0
  %3393 = vmatpush1.msra.mxu0 %v2785
  %3394 = vmatprep.subr.mxu0 0.0
  %3395 = vmatpush1.msra.mxu0 %v2786
  %3396 = vmatprep.subr.mxu0 0.0
  %3397 = vmatpush1.msra.mxu0 %v2787
  %3398 = vmatprep.subr.mxu0 0.0
  %3399 = vmatpush1.msra.mxu0 %v2788
  %3400 = vmatprep.subr.mxu0 0.0
  %3401 = vmatpush1.msra.mxu0 %v2789
  %3402 = vmatprep.subr.mxu0 0.0
  %3403 = vmatpush1.msra.mxu0 %v2790
  %3404 = vmatprep.subr.mxu0 0.0
  %3405 = vmatpush1.msra.mxu0 %v2791
  %3406 = vmatprep.subr.mxu0 0.0
  %3407 = vmatpush1.msra.mxu0 %v2792
  %3408 = vmatprep.subr.mxu0 0.0
  %3409 = vmatpush1.msra.mxu0 %v2793
  %3410 = vmatprep.subr.mxu0 0.0
  %3411 = vmatpush1.msra.mxu0 %v2794
  %3412 = vmatprep.subr.mxu0 0.0
  %3413 = vmatpush1.msra.mxu0 %v2795
  %3414 = vmatprep.subr.mxu0 0.0
  %3415 = vmatpush1.msra.mxu0 %v2796
  %3416 = vmatprep.subr.mxu0 0.0
  %3417 = vmatpush1.msra.mxu0 %v2797
  %3418 = vmatprep.subr.mxu0 0.0
  %3419 = vmatpush1.msra.mxu0 %v2798
  %3420 = vmatprep.subr.mxu0 0.0
  %3421 = vmatpush1.msra.mxu0 %v2799
  %3422 = vmatprep.subr.mxu0 0.0
  %3423 = vmatpush1.msra.mxu0 %v2800
  %3424 = vmatprep.subr.mxu0 0.0
  %3425 = vmatpush1.msra.mxu0 %v2801
  %3426 = vmatprep.subr.mxu0 0.0
  %3427 = vmatpush1.msra.mxu0 %v2802
  %3428 = vmatprep.mubr.f32.mxu0 %v2541
  %3429 = vmatmul.mubr.f32.gmra.mrb[0].mxu0 %v2540
  %v3430 = vpop.f32.mrb[0].mxu0
  %v3431 = vadd.f32 %v3361, %v3430
  %v3432 = vpop.f32.mrb[0].mxu0
  %3433 = vdwg.mxu0
  %3434 = vmatprep.subr.mxu0 0.0
  %3435 = vmatpush1.msra.mxu0 %v2803
  %3436 = vmatprep.subr.mxu0 0.0
  %3437 = vmatpush1.msra.mxu0 %v2804
  %3438 = vmatprep.subr.mxu0 0.0
  %3439 = vmatpush1.msra.mxu0 %v2805
  %3440 = vmatprep.subr.mxu0 0.0
  %3441 = vmatpush1.msra.mxu0 %v2806
  %3442 = vmatprep.subr.mxu0 0.0
  %3443 = vmatpush1.msra.mxu0 %v2807
  %3444 = vmatprep.subr.mxu0 0.0
  %3445 = vmatpush1.msra.mxu0 %v2808
  %3446 = vmatprep.subr.mxu0 0.0
  %3447 = vmatpush1.msra.mxu0 %v2809
  %3448 = vmatprep.subr.mxu0 0.0
  %3449 = vmatpush1.msra.mxu0 %v2810
  %3450 = vmatprep.subr.mxu0 0.0
  %3451 = vmatpush1.msra.mxu0 %v2811
  %3452 = vmatprep.subr.mxu0 0.0
  %3453 = vmatpush1.msra.mxu0 %v2812
  %3454 = vmatprep.subr.mxu0 0.0
  %3455 = vmatpush1.msra.mxu0 %v2813
  %3456 = vmatprep.subr.mxu0 0.0
  %3457 = vmatpush1.msra.mxu0 %v2814
  %3458 = vmatprep.subr.mxu0 0.0
  %3459 = vmatpush1.msra.mxu0 %v2815
  %3460 = vmatprep.subr.mxu0 0.0
  %3461 = vmatpush1.msra.mxu0 %v2816
  %3462 = vmatprep.subr.mxu0 0.0
  %3463 = vmatpush1.msra.mxu0 %v2817
  %3464 = vmatprep.subr.mxu0 0.0
  %3465 = vmatpush1.msra.mxu0 %v2818
  %3466 = vmatprep.subr.mxu0 0.0
  %3467 = vmatpush1.msra.mxu0 %v2819
  %3468 = vmatprep.subr.mxu0 0.0
  %3469 = vmatpush1.msra.mxu0 %v2820
  %3470 = vmatprep.subr.mxu0 0.0
  %3471 = vmatpush1.msra.mxu0 %v2821
  %3472 = vmatprep.subr.mxu0 0.0
  %3473 = vmatpush1.msra.mxu0 %v2822
  %3474 = vmatprep.subr.mxu0 0.0
  %3475 = vmatpush1.msra.mxu0 %v2823
  %3476 = vmatprep.subr.mxu0 0.0
  %3477 = vmatpush1.msra.mxu0 %v2824
  %3478 = vmatprep.subr.mxu0 0.0
  %3479 = vmatpush1.msra.mxu0 %v2825
  %3480 = vmatprep.subr.mxu0 0.0
  %3481 = vmatpush1.msra.mxu0 %v2826
  %3482 = vmatprep.subr.mxu0 0.0
  %3483 = vmatpush1.msra.mxu0 %v2827
  %3484 = vmatprep.subr.mxu0 0.0
  %3485 = vmatpush1.msra.mxu0 %v2828
  %3486 = vmatprep.subr.mxu0 0.0
  %3487 = vmatpush1.msra.mxu0 %v2829
  %3488 = vmatprep.subr.mxu0 0.0
  %3489 = vmatpush1.msra.mxu0 %v2830
  %3490 = vmatprep.subr.mxu0 0.0
  %3491 = vmatpush1.msra.mxu0 %v2831
  %3492 = vmatprep.subr.mxu0 0.0
  %3493 = vmatpush1.msra.mxu0 %v2832
  %3494 = vmatprep.subr.mxu0 0.0
  %3495 = vmatpush1.msra.mxu0 %v2833
  %3496 = vmatprep.subr.mxu0 0.0
  %3497 = vmatpush1.msra.mxu0 %v2834
  %3498 = vmatprep.mubr.f32.mxu0 %v2543
  %3499 = vmatmul.mubr.f32.gmra.mrb[0].mxu0 %v2542
  %v3500 = vpop.f32.mrb[0].mxu0
  %v3501 = vadd.f32 %v3431, %v3500
  %v3502 = vpop.f32.mrb[0].mxu0
  %3503 = vdwg.mxu0
  %3504 = vmatprep.subr.mxu0 0.0
  %3505 = vmatpush1.msra.mxu0 %v2835
  %3506 = vmatprep.subr.mxu0 0.0
  %3507 = vmatpush1.msra.mxu0 %v2836
  %3508 = vmatprep.subr.mxu0 0.0
  %3509 = vmatpush1.msra.mxu0 %v2837
  %3510 = vmatprep.subr.mxu0 0.0
  %3511 = vmatpush1.msra.mxu0 %v2838
  %3512 = vmatprep.subr.mxu0 0.0
  %3513 = vmatpush1.msra.mxu0 %v2839
  %3514 = vmatprep.subr.mxu0 0.0
  %3515 = vmatpush1.msra.mxu0 %v2840
  %3516 = vmatprep.subr.mxu0 0.0
  %3517 = vmatpush1.msra.mxu0 %v2841
  %3518 = vmatprep.subr.mxu0 0.0
  %3519 = vmatpush1.msra.mxu0 %v2842
  %3520 = vmatprep.subr.mxu0 0.0
  %3521 = vmatpush1.msra.mxu0 %v2843
  %3522 = vmatprep.subr.mxu0 0.0
  %3523 = vmatpush1.msra.mxu0 %v2844
  %3524 = vmatprep.subr.mxu0 0.0
  %3525 = vmatpush1.msra.mxu0 %v2845
  %3526 = vmatprep.subr.mxu0 0.0
  %3527 = vmatpush1.msra.mxu0 %v2846
  %3528 = vmatprep.subr.mxu0 0.0
  %3529 = vmatpush1.msra.mxu0 %v2847
  %3530 = vmatprep.subr.mxu0 0.0
  %3531 = vmatpush1.msra.mxu0 %v2848
  %3532 = vmatprep.subr.mxu0 0.0
  %3533 = vmatpush1.msra.mxu0 %v2849
  %3534 = vmatprep.subr.mxu0 0.0
  %3535 = vmatpush1.msra.mxu0 %v2850
  %3536 = vmatprep.subr.mxu0 0.0
  %3537 = vmatpush1.msra.mxu0 %v2851
  %3538 = vmatprep.subr.mxu0 0.0
  %3539 = vmatpush1.msra.mxu0 %v2852
  %3540 = vmatprep.subr.mxu0 0.0
  %3541 = vmatpush1.msra.mxu0 %v2853
  %3542 = vmatprep.subr.mxu0 0.0
  %3543 = vmatpush1.msra.mxu0 %v2854
  %3544 = vmatprep.subr.mxu0 0.0
  %3545 = vmatpush1.msra.mxu0 %v2855
  %3546 = vmatprep.subr.mxu0 0.0
  %3547 = vmatpush1.msra.mxu0 %v2856
  %3548 = vmatprep.subr.mxu0 0.0
  %3549 = vmatpush1.msra.mxu0 %v2857
  %3550 = vmatprep.subr.mxu0 0.0
  %3551 = vmatpush1.msra.mxu0 %v2858
  %3552 = vmatprep.subr.mxu0 0.0
  %3553 = vmatpush1.msra.mxu0 %v2859
  %3554 = vmatprep.subr.mxu0 0.0
  %3555 = vmatpush1.msra.mxu0 %v2860
  %3556 = vmatprep.subr.mxu0 0.0
  %3557 = vmatpush1.msra.mxu0 %v2861
  %3558 = vmatprep.subr.mxu0 0.0
  %3559 = vmatpush1.msra.mxu0 %v2862
  %3560 = vmatprep.subr.mxu0 0.0
  %3561 = vmatpush1.msra.mxu0 %v2863
  %3562 = vmatprep.subr.mxu0 0.0
  %3563 = vmatpush1.msra.mxu0 %v2864
  %3564 = vmatprep.subr.mxu0 0.0
  %3565 = vmatpush1.msra.mxu0 %v2865
  %3566 = vmatprep.subr.mxu0 0.0
  %3567 = vmatpush1.msra.mxu0 %v2866
  %3568 = vmatprep.mubr.f32.mxu0 %v2545
  %3569 = vmatmul.mubr.f32.gmra.mrb[0].mxu0 %v2544
  %v3570 = vpop.f32.mrb[0].mxu0
  %v3571 = vadd.f32 %v3501, %v3570
  %v3572 = vpop.f32.mrb[0].mxu0
  %3573 = vdwg.mxu0
  %3574 = vmatprep.subr.mxu0 0.0
  %3575 = vmatpush1.msra.mxu0 %v2867
  %3576 = vmatprep.subr.mxu0 0.0
  %3577 = vmatpush1.msra.mxu0 %v2868
  %3578 = vmatprep.subr.mxu0 0.0
  %3579 = vmatpush1.msra.mxu0 %v2869
  %3580 = vmatprep.subr.mxu0 0.0
  %3581 = vmatpush1.msra.mxu0 %v2870
  %3582 = vmatprep.subr.mxu0 0.0
  %3583 = vmatpush1.msra.mxu0 0.0
  %3584 = vmatprep.subr.mxu0 0.0
  %3585 = vmatpush1.msra.mxu0 0.0
  %3586 = vmatprep.subr.mxu0 0.0
  %3587 = vmatpush1.msra.mxu0 0.0
  %3588 = vmatprep.subr.mxu0 0.0
  %3589 = vmatpush1.msra.mxu0 0.0
  %3590 = vmatprep.subr.mxu0 0.0
  %3591 = vmatpush1.msra.mxu0 0.0
  %3592 = vmatprep.subr.mxu0 0.0
  %3593 = vmatpush1.msra.mxu0 0.0
  %3594 = vmatprep.subr.mxu0 0.0
  %3595 = vmatpush1.msra.mxu0 0.0
  %3596 = vmatprep.subr.mxu0 0.0
  %3597 = vmatpush1.msra.mxu0 0.0
  %3598 = vmatprep.subr.mxu0 0.0
  %3599 = vmatpush1.msra.mxu0 0.0
  %3600 = vmatprep.subr.mxu0 0.0
  %3601 = vmatpush1.msra.mxu0 0.0
  %3602 = vmatprep.subr.mxu0 0.0
  %3603 = vmatpush1.msra.mxu0 0.0
  %3604 = vmatprep.subr.mxu0 0.0
  %3605 = vmatpush1.msra.mxu0 0.0
  %3606 = vmatprep.subr.mxu0 0.0
  %3607 = vmatpush1.msra.mxu0 0.0
  %3608 = vmatprep.subr.mxu0 0.0
  %3609 = vmatpush1.msra.mxu0 0.0
  %3610 = vmatprep.subr.mxu0 0.0
  %3611 = vmatpush1.msra.mxu0 0.0
  %3612 = vmatprep.subr.mxu0 0.0
  %3613 = vmatpush1.msra.mxu0 0.0
  %3614 = vmatprep.subr.mxu0 0.0
  %3615 = vmatpush1.msra.mxu0 0.0
  %3616 = vmatprep.subr.mxu0 0.0
  %3617 = vmatpush1.msra.mxu0 0.0
  %3618 = vmatprep.subr.mxu0 0.0
  %3619 = vmatpush1.msra.mxu0 0.0
  %3620 = vmatprep.subr.mxu0 0.0
  %3621 = vmatpush1.msra.mxu0 0.0
  %3622 = vmatprep.subr.mxu0 0.0
  %3623 = vmatpush1.msra.mxu0 0.0
  %3624 = vmatprep.subr.mxu0 0.0
  %3625 = vmatpush1.msra.mxu0 0.0
  %3626 = vmatprep.subr.mxu0 0.0
  %3627 = vmatpush1.msra.mxu0 0.0
  %3628 = vmatprep.subr.mxu0 0.0
  %3629 = vmatpush1.msra.mxu0 0.0
  %3630 = vmatprep.subr.mxu0 0.0
  %3631 = vmatpush1.msra.mxu0 0.0
  %3632 = vmatprep.subr.mxu0 0.0
  %3633 = vmatpush1.msra.mxu0 0.0
  %3634 = vmatprep.subr.mxu0 0.0
  %3635 = vmatpush1.msra.mxu0 0.0
  %3636 = vmatprep.subr.mxu0 0.0
  %3637 = vmatpush1.msra.mxu0 0.0
  %3638 = vmatprep.mubr.f32.mxu0 0.0
  %3639 = vmatmul.mubr.f32.gmra.mrb[0].mxu0 %v2872
  %v3640 = vpop.f32.mrb[0].mxu0
  %v3641 = vadd.f32 %v3571, %v3640
  %v3642 = vpop.f32.mrb[0].mxu0
  %3643 = vdwg.mxu0
  %v3644 = vld [vmem:[%s4] sm:$0xff]
  %v3645 = vld [vmem:[%s5] sm:$0x1]
  %v3647 = vlaneseq
  %v3648 = vshrl.u32 %v3647, 7
  %v3649 = vsub.s32 0, %v3648
  %v3650 = vrot.slane %v3645, %v3649
  %3652 = vxpose.xlu0.b32.start [1/16] %v3641, 128
  %3653 = vxpose.xlu0.b32.cont [2/16] 0.0, 128
  %3654 = vxpose.xlu0.b32.cont [3/16] 0.0, 128
  %3655 = vxpose.xlu0.b32.cont [4/16] 0.0, 128
  %3656 = vxpose.xlu0.b32.cont [5/16] 0.0, 128
  %3657 = vxpose.xlu0.b32.cont [6/16] 0.0, 128
  %3658 = vxpose.xlu0.b32.cont [7/16] 0.0, 128
  %3659 = vxpose.xlu0.b32.cont [8/16] 0.0, 128
  %3660 = vxpose.xlu0.b32.cont [9/16] 0.0, 128
  %3661 = vxpose.xlu0.b32.cont [10/16] 0.0, 128
  %3662 = vxpose.xlu0.b32.cont [11/16] 0.0, 128
  %3663 = vxpose.xlu0.b32.cont [12/16] 0.0, 128
  %3664 = vxpose.xlu0.b32.cont [13/16] 0.0, 128
  %3665 = vxpose.xlu0.b32.cont [14/16] 0.0, 128
  %3666 = vxpose.xlu0.b32.cont [15/16] 0.0, 128
  %3667 = vxpose.xlu0.b32.end [16/16] 0.0, 128
  %v3668 = vpop.trf.xlu0
  %v3669 = vpop.trf.xlu0
  %v3670 = vpop.trf.xlu0
  %v3671 = vpop.trf.xlu0
  %v3672 = vpop.trf.xlu0
  %v3673 = vpop.trf.xlu0
  %v3674 = vpop.trf.xlu0
  %v3675 = vpop.trf.xlu0
  %v3676 = vpop.trf.xlu0
  %v3677 = vpop.trf.xlu0
  %v3678 = vpop.trf.xlu0
  %v3679 = vpop.trf.xlu0
  %v3680 = vpop.trf.xlu0
  %v3681 = vpop.trf.xlu0
  %v3682 = vpop.trf.xlu0
  %v3683 = vpop.trf.xlu0
  %vm3684 = vcmask 64512
  %v3686 = vsel %vm3684, %v3668, 0
  %3688 = vmatprep.subr.mxu0 0.0
  %3689 = vmatpush1.msra.mxu0 %v3644
  %3690 = vmatprep.subr.mxu0 0.0
  %3691 = vmatpush1.msra.mxu0 0.0
  %3692 = vmatprep.subr.mxu0 0.0
  %3693 = vmatpush1.msra.mxu0 0.0
  %3694 = vmatprep.subr.mxu0 0.0
  %3695 = vmatpush1.msra.mxu0 0.0
  %3696 = vmatprep.subr.mxu0 0.0
  %3697 = vmatpush1.msra.mxu0 0.0
  %3698 = vmatprep.subr.mxu0 0.0
  %3699 = vmatpush1.msra.mxu0 0.0
  %3700 = vmatprep.subr.mxu0 0.0
  %3701 = vmatpush1.msra.mxu0 0.0
  %3702 = vmatprep.subr.mxu0 0.0
  %3703 = vmatpush1.msra.mxu0 0.0
  %3704 = vmatprep.subr.mxu0 0.0
  %3705 = vmatpush1.msra.mxu0 0.0
  %3706 = vmatprep.subr.mxu0 0.0
  %3707 = vmatpush1.msra.mxu0 0.0
  %3708 = vmatprep.subr.mxu0 0.0
  %3709 = vmatpush1.msra.mxu0 0.0
  %3710 = vmatprep.subr.mxu0 0.0
  %3711 = vmatpush1.msra.mxu0 0.0
  %3712 = vmatprep.subr.mxu0 0.0
  %3713 = vmatpush1.msra.mxu0 0.0
  %3714 = vmatprep.subr.mxu0 0.0
  %3715 = vmatpush1.msra.mxu0 0.0
  %3716 = vmatprep.subr.mxu0 0.0
  %3717 = vmatpush1.msra.mxu0 0.0
  %3718 = vmatprep.subr.mxu0 0.0
  %3719 = vmatpush1.msra.mxu0 0.0
  %3720 = vmatprep.subr.mxu0 0.0
  %3721 = vmatpush1.msra.mxu0 0.0
  %3722 = vmatprep.subr.mxu0 0.0
  %3723 = vmatpush1.msra.mxu0 0.0
  %3724 = vmatprep.subr.mxu0 0.0
  %3725 = vmatpush1.msra.mxu0 0.0
  %3726 = vmatprep.subr.mxu0 0.0
  %3727 = vmatpush1.msra.mxu0 0.0
  %3728 = vmatprep.subr.mxu0 0.0
  %3729 = vmatpush1.msra.mxu0 0.0
  %3730 = vmatprep.subr.mxu0 0.0
  %3731 = vmatpush1.msra.mxu0 0.0
  %3732 = vmatprep.subr.mxu0 0.0
  %3733 = vmatpush1.msra.mxu0 0.0
  %3734 = vmatprep.subr.mxu0 0.0
  %3735 = vmatpush1.msra.mxu0 0.0
  %3736 = vmatprep.subr.mxu0 0.0
  %3737 = vmatpush1.msra.mxu0 0.0
  %3738 = vmatprep.subr.mxu0 0.0
  %3739 = vmatpush1.msra.mxu0 0.0
  %3740 = vmatprep.subr.mxu0 0.0
  %3741 = vmatpush1.msra.mxu0 0.0
  %3742 = vmatprep.subr.mxu0 0.0
  %3743 = vmatpush1.msra.mxu0 0.0
  %3744 = vmatprep.subr.mxu0 0.0
  %3745 = vmatpush1.msra.mxu0 0.0
  %3746 = vmatprep.subr.mxu0 0.0
  %3747 = vmatpush1.msra.mxu0 0.0
  %3748 = vmatprep.subr.mxu0 0.0
  %3749 = vmatpush1.msra.mxu0 0.0
  %3750 = vmatprep.subr.mxu0 0.0
  %3751 = vmatpush1.msra.mxu0 0.0
  %3752 = vmatprep.mubr.f32.mxu0 0.0
  %3753 = vmatmul.mubr.f32.gmra.mrb[0].mxu0 %v3686
  %v3754 = vpop.f32.mrb[0].mxu0
  %v3755 = vadd.f32 %v3650, %v3754
  %v3756 = vpop.f32.mrb[0].mxu0
  %3757 = vdwg.mxu0
  %3758 = vst [vmem:[%s6] sm:$0xff] %v3755
  // Predicated region
  $region26: #{fused_model_tta_forward.1} parent=0 // pred_check
    _
  $region27: #{fused_model_tta_forward.1} parent=0 // pred_check_branch
    %3760 = sbr.rel (0) target = $region29
  $region28: #{fused_model_tta_forward.1} parent=0 // pred_region
    _
  $region29: #{fused_model_tta_forward.1} parent=0 // pred_fallthru
    _
  // Predicated region
  $region30: #{fused_model_tta_forward.1} parent=0 // pred_check
    _
  $region31: #{fused_model_tta_forward.1} parent=0 // pred_check_branch
    %3762 = sbr.rel (0) target = $region33
  $region32: #{fused_model_tta_forward.1} parent=0 // pred_region
    _
  $region33: #{fused_model_tta_forward.1} parent=0 // pred_fallthru
    _

</llo_original>
